<compile_context>
chip_gen: v7x
topology: tpu7x:2x2x1
jax: 0.10.0
libtpu: 0.0.40
codegen_flags: <defaults>
</compile_context>

<pallas_src>
import math

import jax
import jax.numpy as jnp
from jax.experimental import pallas as pl
from jax.experimental.pallas import tpu as pltpu

# --------------------- model config (mini vit_base_patch16) ---------------------
IMG = 32
PATCH = 16
IN_CHANS = 3
EMBED_DIM = 128
DEPTH = 2
NUM_HEADS = 4
HEAD_DIM = EMBED_DIM // NUM_HEADS
MLP_HIDDEN = 4 * EMBED_DIM
NUM_CLASSES = 2
NUM_PATCHES = (IMG // PATCH) ** 2
SEQ = NUM_PATCHES + 1            # +1 cls token
PATCH_DIM = IN_CHANS * PATCH * PATCH
HEAD_PAD = 128                   # lane-dense classifier width; real logits in cols [:2]
LN_EPS = 1e-6                    # timm ViT LayerNorm eps
NEG_INF = -1e30
GELU_APPROX = True               # tanh GELU (EUP); set False for exact-erf nn.GELU parity

_VSPEC = pl.BlockSpec(memory_space=pltpu.MemorySpace.VMEM)   # whole array, VMEM resident


# ------------------------------ fused forward kernel ------------------------------
def _vit_fused_kernel(
    # activations / constant masks
    patches_ref, addend_ref, attn_bias_ref, cls_mask_ref,
    # patch embed
    patch_w_ref,
    # per-block weights, stacked along a leading DEPTH axis
    ln1_g_ref, ln1_b_ref, qkv_w_ref, qkv_b_ref, proj_w_ref, proj_b_ref,
    ln2_g_ref, ln2_b_ref, fc1_w_ref, fc1_b_ref, fc2_w_ref, fc2_b_ref,
    # final norm + (padded, bf16) classifier head
    norm_g_ref, norm_b_ref, head_w_ref, head_b_ref,
    # outputs
    probs_ref, logits_ref,
):
    f32 = jnp.float32
    bf16 = jnp.bfloat16
    scale = 1.0 / math.sqrt(HEAD_DIM)

    def layer_norm(x, g, b):
        mu = jnp.mean(x, axis=-1, keepdims=True)
        xc = x - mu
        var = jnp.mean(xc * xc, axis=-1, keepdims=True)   # biased var (PyTorch LN)
        return xc * jax.lax.rsqrt(var + LN_EPS) * g + b

    def mm_bf16(a, w_bf16):            # bf16 MXU operands, f32 accumulation
        return jnp.dot(a.astype(bf16), w_bf16, preferred_element_type=f32)

    attn_bias = attn_bias_ref[...]     # [RP, RP]: 0 same image, -1e30 cross image / pad

    # Patch embedding (Conv2d k=16,s=16 as matmul). `addend` already carries
    # patch_b / cls token / positional embedding per row (cls rows of `patches`
    # are zero, so they pick up exactly cls + pos[0]); padded rows are zero.
    z = mm_bf16(patches_ref[...], patch_w_ref[...]) + addend_ref[...]   # [RP, D] f32

    for d in range(DEPTH):                       # DEPTH=2: statically unrolled
        # ---- multi-head self attention ----
        y = layer_norm(z, ln1_g_ref[d], ln1_b_ref[d])
        qkv = mm_bf16(y, qkv_w_ref[d]) + qkv_b_ref[d]                   # [RP, 3D]
        head_outs = []
        for h in range(NUM_HEADS):               # small, statically unrolled
            lo = h * HEAD_DIM
            q = qkv[:, lo:lo + HEAD_DIM].astype(bf16)
            k = qkv[:, EMBED_DIM + lo:EMBED_DIM + lo + HEAD_DIM].astype(bf16)
            v = qkv[:, 2 * EMBED_DIM + lo:2 * EMBED_DIM + lo + HEAD_DIM].astype(bf16)
            # Q K^T over all (padded) rows at once; cross-image / padded entries
            # are killed with the precomputed additive block-diagonal bias.
            s = jax.lax.dot_general(q, k, (((1,), (1,)), ((), ())),
                                    preferred_element_type=f32) * scale + attn_bias
            s = s - jnp.max(s, axis=-1, keepdims=True)
            p = jnp.exp(s)
            p = p * pl.reciprocal(jnp.sum(p, axis=-1, keepdims=True), approx=True)
            head_outs.append(jnp.dot(p.astype(bf16), v,
                                     preferred_element_type=f32))       # [RP, hd]
        # lane-concat heads, then ONE full-depth output projection
        attn_cat = jnp.concatenate(head_outs, axis=-1)                  # [RP, D]
        z = z + mm_bf16(attn_cat, proj_w_ref[d]) + proj_b_ref[d]

        # ---- MLP ----
        y = layer_norm(z, ln2_g_ref[d], ln2_b_ref[d])
        hid = jax.nn.gelu(mm_bf16(y, fc1_w_ref[d]) + fc1_b_ref[d],
                          approximate=GELU_APPROX)
        z = z + mm_bf16(hid, fc2_w_ref[d]) + fc2_b_ref[d]

    # ---- final norm, head on ALL token rows (cls rows picked outside), softmax ----
    z = layer_norm(z, norm_g_ref[...], norm_b_ref[...])
    logits = mm_bf16(z, head_w_ref[...]) + head_b_ref[...]              # [RP, 128] padded
    logits_ref[...] = logits

    masked = logits + cls_mask_ref[...]          # -1e30 on padded class columns
    m = jnp.max(masked, axis=-1, keepdims=True)
    e = jnp.exp(masked - m)
    probs_ref[...] = e / jnp.sum(e, axis=-1, keepdims=True)   # exact div: sums to 1


# ------------------------------ parameter init -----------------------------------
def init_params(key):
    def nrm(k, shape, std=0.02):
        return std * jax.random.normal(k, shape, dtype=jnp.float32)

    ks = iter(jax.random.split(key, 8 + DEPTH * 4))
    params = {
        "patch_w": nrm(next(ks), (PATCH_DIM, EMBED_DIM)),
        "patch_b": jnp.zeros((EMBED_DIM,), jnp.float32),
        "cls": nrm(next(ks), (1, 1, EMBED_DIM)),
        "pos": nrm(next(ks), (1, SEQ, EMBED_DIM)),
        "norm_g": jnp.ones((EMBED_DIM,), jnp.float32),
        "norm_b": jnp.zeros((EMBED_DIM,), jnp.float32),
        "head_w": nrm(next(ks), (EMBED_DIM, NUM_CLASSES)),
        "head_b": jnp.zeros((NUM_CLASSES,), jnp.float32),
        "blocks": [],
    }
    for _ in range(DEPTH):
        params["blocks"].append({
            "ln1_g": jnp.ones((EMBED_DIM,), jnp.float32),
            "ln1_b": jnp.zeros((EMBED_DIM,), jnp.float32),
            "qkv_w": nrm(next(ks), (EMBED_DIM, 3 * EMBED_DIM)),
            "qkv_b": jnp.zeros((3 * EMBED_DIM,), jnp.float32),
            "proj_w": nrm(next(ks), (EMBED_DIM, EMBED_DIM)),
            "proj_b": jnp.zeros((EMBED_DIM,), jnp.float32),
            "ln2_g": jnp.ones((EMBED_DIM,), jnp.float32),
            "ln2_b": jnp.zeros((EMBED_DIM,), jnp.float32),
            "fc1_w": nrm(next(ks), (EMBED_DIM, MLP_HIDDEN)),
            "fc1_b": jnp.zeros((MLP_HIDDEN,), jnp.float32),
            "fc2_w": nrm(next(ks), (MLP_HIDDEN, EMBED_DIM)),
            "fc2_b": jnp.zeros((EMBED_DIM,), jnp.float32),
        })
    return params


# -------------------------------- forward pass ------------------------------------
def _stack(blocks, name, dtype=None):
    w = jnp.stack([blk[name] for blk in blocks])
    return w if dtype is None else w.astype(dtype)


def vit_forward(x, params):
    """x: NCHW float32 [B, 3, 32, 32] -> (probs [B, 2], logits [B, 2])."""
    B = x.shape[0]
    BS = B * SEQ
    BS_PAD = ((BS + 15) // 16) * 16              # aligned token-row count (16 here)
    bf16 = jnp.bfloat16
    gh, gw = IMG // PATCH, IMG // PATCH

    # ---- layout plumbing (XLA): patchify NCHW, zero row reserved for cls token ----
    patches = x.reshape(B, IN_CHANS, gh, PATCH, gw, PATCH)
    patches = patches.transpose(0, 2, 4, 1, 3, 5).reshape(B, NUM_PATCHES, PATCH_DIM)
    patches = jnp.concatenate(
        [jnp.zeros((B, 1, PATCH_DIM), x.dtype), patches], axis=1
    ).reshape(BS, PATCH_DIM)
    patches = jnp.concatenate(
        [patches, jnp.zeros((BS_PAD - BS, PATCH_DIM), x.dtype)], axis=0
    ).astype(bf16)                                                   # [BS_PAD, 768] bf16

    # per-row additive term: cls rows -> cls + pos[0]; patch rows -> patch_b + pos[s]
    row_bias = jnp.where(
        (jnp.arange(SEQ) == 0)[:, None],
        params["cls"][0, 0][None, :],
        params["patch_b"][None, :],
    ) + params["pos"][0]                                            # [SEQ, D]
    addend = jnp.broadcast_to(row_bias[None], (B, SEQ, EMBED_DIM)).reshape(BS, EMBED_DIM)
    addend = jnp.concatenate(
        [addend, jnp.zeros((BS_PAD - BS, EMBED_DIM), jnp.float32)], axis=0)

    # constant masks: block-diagonal attention bias (padded rows isolated), class mask
    ridx = jnp.arange(BS_PAD) // SEQ             # padded rows get ids >= B -> masked off
    attn_bias = jnp.where(ridx[:, None] == ridx[None, :], 0.0, NEG_INF).astype(jnp.float32)
    cls_mask = jnp.where(jnp.arange(HEAD_PAD) < NUM_CLASSES, 0.0, NEG_INF
                         ).astype(jnp.float32)[None, :]

    # lane-dense (128-wide) zero-padded classifier head, bf16 MXU operand
    head_w = jnp.zeros((EMBED_DIM, HEAD_PAD), jnp.float32).at[:, :NUM_CLASSES].set(
        params["head_w"]).astype(bf16)
    head_b = jnp.zeros((1, HEAD_PAD), jnp.float32).at[0, :NUM_CLASSES].set(
        params["head_b"])

    blocks = params["blocks"]
    args = (
        patches,                                      # [BS_PAD, PATCH_DIM] bf16
        addend,                                       # [BS_PAD, D] f32
        attn_bias,                                    # [BS_PAD, BS_PAD] f32
        cls_mask,                                     # [1, 128] f32
        params["patch_w"].astype(bf16),               # [PATCH_DIM, D] bf16
        _stack(blocks, "ln1_g")[:, None, :], _stack(blocks, "ln1_b")[:, None, :],
        _stack(blocks, "qkv_w", bf16), _stack(blocks, "qkv_b")[:, None, :],
        _stack(blocks, "proj_w", bf16), _stack(blocks, "proj_b")[:, None, :],
        _stack(blocks, "ln2_g")[:, None, :], _stack(blocks, "ln2_b")[:, None, :],
        _stack(blocks, "fc1_w", bf16), _stack(blocks, "fc1_b")[:, None, :],
        _stack(blocks, "fc2_w", bf16), _stack(blocks, "fc2_b")[:, None, :],
        params["norm_g"][None, :], params["norm_b"][None, :],
        head_w, head_b,
    )

    probs_pad, logits_pad = pl.pallas_call(
        _vit_fused_kernel,
        out_shape=(jax.ShapeDtypeStruct((BS_PAD, HEAD_PAD), jnp.float32),
                   jax.ShapeDtypeStruct((BS_PAD, HEAD_PAD), jnp.float32)),
        in_specs=[_VSPEC] * len(args),
        out_specs=(_VSPEC, _VSPEC),
    )(*args)

    # cls rows sit at token-row b*SEQ; pick them + the 2 real classes (XLA plumbing)
    probs = probs_pad[:BS:SEQ, :NUM_CLASSES]
    logits = logits_pad[:BS:SEQ, :NUM_CLASSES]
    return probs, logits


if __name__ == "__main__":
    key = jax.random.PRNGKey(0)
    pkey, xkey = jax.random.split(key)
    params = init_params(pkey)
    x = jax.random.normal(xkey, (2, IN_CHANS, IMG, IMG), dtype=jnp.float32)  # NCHW

    probs, logits = jax.jit(vit_forward)(x, params)
    jax.block_until_ready((probs, logits))

    assert probs.shape == (2, NUM_CLASSES) and logits.shape == (2, NUM_CLASSES)
    assert bool(jnp.all(jnp.isfinite(logits)))
    assert bool(jnp.allclose(jnp.sum(probs, axis=1), 1.0, atol=1e-5))
    print("KERNEL_OK")
</pallas_src>

<mosaic_0001>
module attributes {stable_mosaic.version = 11 : i64} {
  func.func @_vit_fused_kernel(%arg0: memref<16x768xbf16, #tpu.memory_space<vmem>>, %arg1: memref<16x128xf32, #tpu.memory_space<vmem>>, %arg2: memref<16x16xf32, #tpu.memory_space<vmem>>, %arg3: memref<1x128xf32, #tpu.memory_space<vmem>>, %arg4: memref<768x128xbf16, #tpu.memory_space<vmem>>, %arg5: memref<2x1x128xf32, #tpu.memory_space<vmem>>, %arg6: memref<2x1x128xf32, #tpu.memory_space<vmem>>, %arg7: memref<2x128x384xbf16, #tpu.memory_space<vmem>>, %arg8: memref<2x1x384xf32, #tpu.memory_space<vmem>>, %arg9: memref<2x128x128xbf16, #tpu.memory_space<vmem>>, %arg10: memref<2x1x128xf32, #tpu.memory_space<vmem>>, %arg11: memref<2x1x128xf32, #tpu.memory_space<vmem>>, %arg12: memref<2x1x128xf32, #tpu.memory_space<vmem>>, %arg13: memref<2x128x512xbf16, #tpu.memory_space<vmem>>, %arg14: memref<2x1x512xf32, #tpu.memory_space<vmem>>, %arg15: memref<2x512x128xbf16, #tpu.memory_space<vmem>>, %arg16: memref<2x1x128xf32, #tpu.memory_space<vmem>>, %arg17: memref<1x128xf32, #tpu.memory_space<vmem>>, %arg18: memref<1x128xf32, #tpu.memory_space<vmem>>, %arg19: memref<128x128xbf16, #tpu.memory_space<vmem>>, %arg20: memref<1x128xf32, #tpu.memory_space<vmem>>, %arg21: memref<16x128xf32, #tpu.memory_space<vmem>>, %arg22: memref<16x128xf32, #tpu.memory_space<vmem>>) attributes {dimension_semantics = [], scalar_prefetch = 0 : i64, scratch_operands = 0 : i64, tpu.core_type = #tpu.core_type<tc>} {
    %c0 = arith.constant 0 : index
    %c0_0 = arith.constant 0 : index
    %0 = vector.load %arg2[%c0, %c0_0] : memref<16x16xf32, #tpu.memory_space<vmem>>, vector<16x16xf32>
    %c0_1 = arith.constant 0 : index
    %c0_2 = arith.constant 0 : index
    %1 = vector.load %arg0[%c0_1, %c0_2] : memref<16x768xbf16, #tpu.memory_space<vmem>>, vector<16x768xbf16>
    %c0_3 = arith.constant 0 : index
    %c0_4 = arith.constant 0 : index
    %2 = vector.load %arg4[%c0_3, %c0_4] : memref<768x128xbf16, #tpu.memory_space<vmem>>, vector<768x128xbf16>
    %cst = arith.constant dense<0.000000e+00> : vector<16x128xf32>
    %3 = tpu.matmul %1, %2, %cst {dimension_numbers = #tpu.dot_dimension_numbers<[1], [0], [0], [1], [0, 0, 1, 1], [], []>} : vector<16x768xbf16>, vector<768x128xbf16>, vector<16x128xf32> -> vector<16x128xf32>
    %c0_5 = arith.constant 0 : index
    %c0_6 = arith.constant 0 : index
    %4 = vector.load %arg1[%c0_5, %c0_6] : memref<16x128xf32, #tpu.memory_space<vmem>>, vector<16x128xf32>
    %5 = arith.addf %3, %4 : vector<16x128xf32>
    %c0_7 = arith.constant 0 : index
    %c0_8 = arith.constant 0 : index
    %c0_9 = arith.constant 0 : index
    %6 = vector.load %arg5[%c0_7, %c0_8, %c0_9] : memref<2x1x128xf32, #tpu.memory_space<vmem>>, vector<1x1x128xf32>
    %7 = vector.shape_cast %6 : vector<1x1x128xf32> to vector<1x128xf32>
    %c0_10 = arith.constant 0 : index
    %c0_11 = arith.constant 0 : index
    %c0_12 = arith.constant 0 : index
    %8 = vector.load %arg6[%c0_10, %c0_11, %c0_12] : memref<2x1x128xf32, #tpu.memory_space<vmem>>, vector<1x1x128xf32>
    %9 = vector.shape_cast %8 : vector<1x1x128xf32> to vector<1x128xf32>
    %cst_13 = arith.constant dense<0.000000e+00> : vector<16xf32>
    %10 = vector.multi_reduction <add>, %5, %cst_13 [1] : vector<16x128xf32> to vector<16xf32>
    %11 = vector.shape_cast %10 : vector<16xf32> to vector<16x1xf32>
    %cst_14 = arith.constant 1.280000e+02 : f32
    %12 = vector.broadcast %cst_14 : f32 to vector<16x1xf32>
    %13 = arith.divf %11, %12 : vector<16x1xf32>
    %14 = vector.broadcast %13 : vector<16x1xf32> to vector<16x128xf32>
    %15 = arith.subf %5, %14 : vector<16x128xf32>
    %16 = arith.mulf %15, %15 : vector<16x128xf32>
    %cst_15 = arith.constant dense<0.000000e+00> : vector<16xf32>
    %17 = vector.multi_reduction <add>, %16, %cst_15 [1] : vector<16x128xf32> to vector<16xf32>
    %18 = vector.shape_cast %17 : vector<16xf32> to vector<16x1xf32>
    %cst_16 = arith.constant 1.280000e+02 : f32
    %19 = vector.broadcast %cst_16 : f32 to vector<16x1xf32>
    %20 = arith.divf %18, %19 : vector<16x1xf32>
    %cst_17 = arith.constant 9.99999997E-7 : f32
    %21 = vector.broadcast %cst_17 : f32 to vector<16x1xf32>
    %22 = arith.addf %20, %21 : vector<16x1xf32>
    %23 = math.rsqrt %22 : vector<16x1xf32>
    %24 = vector.broadcast %23 : vector<16x1xf32> to vector<16x128xf32>
    %25 = arith.mulf %15, %24 : vector<16x128xf32>
    %26 = vector.broadcast %7 : vector<1x128xf32> to vector<16x128xf32>
    %27 = arith.mulf %25, %26 : vector<16x128xf32>
    %28 = vector.broadcast %9 : vector<1x128xf32> to vector<16x128xf32>
    %29 = arith.addf %27, %28 : vector<16x128xf32>
    %c0_18 = arith.constant 0 : index
    %c0_19 = arith.constant 0 : index
    %c0_20 = arith.constant 0 : index
    %30 = vector.load %arg7[%c0_18, %c0_19, %c0_20] : memref<2x128x384xbf16, #tpu.memory_space<vmem>>, vector<1x128x384xbf16>
    %31 = vector.shape_cast %30 : vector<1x128x384xbf16> to vector<128x384xbf16>
    %32 = arith.truncf %29 : vector<16x128xf32> to vector<16x128xbf16>
    %cst_21 = arith.constant dense<0.000000e+00> : vector<16x384xf32>
    %33 = tpu.matmul %32, %31, %cst_21 {dimension_numbers = #tpu.dot_dimension_numbers<[1], [0], [0], [1], [0, 0, 1, 1], [], []>} : vector<16x128xbf16>, vector<128x384xbf16>, vector<16x384xf32> -> vector<16x384xf32>
    %c0_22 = arith.constant 0 : index
    %c0_23 = arith.constant 0 : index
    %c0_24 = arith.constant 0 : index
    %34 = vector.load %arg8[%c0_22, %c0_23, %c0_24] : memref<2x1x384xf32, #tpu.memory_space<vmem>>, vector<1x1x384xf32>
    %35 = vector.shape_cast %34 : vector<1x1x384xf32> to vector<1x384xf32>
    %36 = vector.broadcast %35 : vector<1x384xf32> to vector<16x384xf32>
    %37 = arith.addf %33, %36 : vector<16x384xf32>
    %38 = vector.extract_strided_slice %37 {offsets = [0, 0], sizes = [16, 32], strides = [1, 1]} : vector<16x384xf32> to vector<16x32xf32>
    %39 = arith.truncf %38 : vector<16x32xf32> to vector<16x32xbf16>
    %40 = vector.extract_strided_slice %37 {offsets = [0, 128], sizes = [16, 32], strides = [1, 1]} : vector<16x384xf32> to vector<16x32xf32>
    %41 = arith.truncf %40 : vector<16x32xf32> to vector<16x32xbf16>
    %42 = vector.extract_strided_slice %37 {offsets = [0, 256], sizes = [16, 32], strides = [1, 1]} : vector<16x384xf32> to vector<16x32xf32>
    %43 = arith.truncf %42 : vector<16x32xf32> to vector<16x32xbf16>
    %cst_25 = arith.constant dense<0.000000e+00> : vector<16x16xf32>
    %44 = tpu.matmul %39, %41, %cst_25 {dimension_numbers = #tpu.dot_dimension_numbers<[1], [1], [0], [0], [0, 0, 1, 0], [], []>} : vector<16x32xbf16>, vector<16x32xbf16>, vector<16x16xf32> -> vector<16x16xf32>
    %cst_26 = arith.constant 0.176776692 : f32
    %45 = vector.broadcast %cst_26 : f32 to vector<16x16xf32>
    %46 = arith.mulf %44, %45 : vector<16x16xf32>
    %47 = arith.addf %46, %0 : vector<16x16xf32>
    %cst_27 = arith.constant dense<0xFF800000> : vector<16xf32>
    %48 = vector.multi_reduction <maximumf>, %47, %cst_27 [1] : vector<16x16xf32> to vector<16xf32>
    %49 = vector.shape_cast %48 : vector<16xf32> to vector<16x1xf32>
    %50 = vector.broadcast %49 : vector<16x1xf32> to vector<16x16xf32>
    %51 = arith.subf %47, %50 : vector<16x16xf32>
    %52 = math.exp %51 : vector<16x16xf32>
    %cst_28 = arith.constant dense<0.000000e+00> : vector<16xf32>
    %53 = vector.multi_reduction <add>, %52, %cst_28 [1] : vector<16x16xf32> to vector<16xf32>
    %54 = vector.shape_cast %53 : vector<16xf32> to vector<16x1xf32>
    %55 = tpu.reciprocal %54 {approx = true} : vector<16x1xf32> -> vector<16x1xf32>
    %56 = vector.broadcast %55 : vector<16x1xf32> to vector<16x16xf32>
    %57 = arith.mulf %52, %56 : vector<16x16xf32>
    %58 = arith.truncf %57 : vector<16x16xf32> to vector<16x16xbf16>
    %cst_29 = arith.constant dense<0.000000e+00> : vector<16x32xf32>
    %59 = tpu.matmul %58, %43, %cst_29 {dimension_numbers = #tpu.dot_dimension_numbers<[1], [0], [0], [1], [0, 0, 1, 1], [], []>} : vector<16x16xbf16>, vector<16x32xbf16>, vector<16x32xf32> -> vector<16x32xf32>
    %60 = vector.extract_strided_slice %37 {offsets = [0, 32], sizes = [16, 32], strides = [1, 1]} : vector<16x384xf32> to vector<16x32xf32>
    %61 = arith.truncf %60 : vector<16x32xf32> to vector<16x32xbf16>
    %62 = vector.extract_strided_slice %37 {offsets = [0, 160], sizes = [16, 32], strides = [1, 1]} : vector<16x384xf32> to vector<16x32xf32>
    %63 = arith.truncf %62 : vector<16x32xf32> to vector<16x32xbf16>
    %64 = vector.extract_strided_slice %37 {offsets = [0, 288], sizes = [16, 32], strides = [1, 1]} : vector<16x384xf32> to vector<16x32xf32>
    %65 = arith.truncf %64 : vector<16x32xf32> to vector<16x32xbf16>
    %cst_30 = arith.constant dense<0.000000e+00> : vector<16x16xf32>
    %66 = tpu.matmul %61, %63, %cst_30 {dimension_numbers = #tpu.dot_dimension_numbers<[1], [1], [0], [0], [0, 0, 1, 0], [], []>} : vector<16x32xbf16>, vector<16x32xbf16>, vector<16x16xf32> -> vector<16x16xf32>
    %cst_31 = arith.constant 0.176776692 : f32
    %67 = vector.broadcast %cst_31 : f32 to vector<16x16xf32>
    %68 = arith.mulf %66, %67 : vector<16x16xf32>
    %69 = arith.addf %68, %0 : vector<16x16xf32>
    %cst_32 = arith.constant dense<0xFF800000> : vector<16xf32>
    %70 = vector.multi_reduction <maximumf>, %69, %cst_32 [1] : vector<16x16xf32> to vector<16xf32>
    %71 = vector.shape_cast %70 : vector<16xf32> to vector<16x1xf32>
    %72 = vector.broadcast %71 : vector<16x1xf32> to vector<16x16xf32>
    %73 = arith.subf %69, %72 : vector<16x16xf32>
    %74 = math.exp %73 : vector<16x16xf32>
    %cst_33 = arith.constant dense<0.000000e+00> : vector<16xf32>
    %75 = vector.multi_reduction <add>, %74, %cst_33 [1] : vector<16x16xf32> to vector<16xf32>
    %76 = vector.shape_cast %75 : vector<16xf32> to vector<16x1xf32>
    %77 = tpu.reciprocal %76 {approx = true} : vector<16x1xf32> -> vector<16x1xf32>
    %78 = vector.broadcast %77 : vector<16x1xf32> to vector<16x16xf32>
    %79 = arith.mulf %74, %78 : vector<16x16xf32>
    %80 = arith.truncf %79 : vector<16x16xf32> to vector<16x16xbf16>
    %cst_34 = arith.constant dense<0.000000e+00> : vector<16x32xf32>
    %81 = tpu.matmul %80, %65, %cst_34 {dimension_numbers = #tpu.dot_dimension_numbers<[1], [0], [0], [1], [0, 0, 1, 1], [], []>} : vector<16x16xbf16>, vector<16x32xbf16>, vector<16x32xf32> -> vector<16x32xf32>
    %82 = vector.extract_strided_slice %37 {offsets = [0, 64], sizes = [16, 32], strides = [1, 1]} : vector<16x384xf32> to vector<16x32xf32>
    %83 = arith.truncf %82 : vector<16x32xf32> to vector<16x32xbf16>
    %84 = vector.extract_strided_slice %37 {offsets = [0, 192], sizes = [16, 32], strides = [1, 1]} : vector<16x384xf32> to vector<16x32xf32>
    %85 = arith.truncf %84 : vector<16x32xf32> to vector<16x32xbf16>
    %86 = vector.extract_strided_slice %37 {offsets = [0, 320], sizes = [16, 32], strides = [1, 1]} : vector<16x384xf32> to vector<16x32xf32>
    %87 = arith.truncf %86 : vector<16x32xf32> to vector<16x32xbf16>
    %cst_35 = arith.constant dense<0.000000e+00> : vector<16x16xf32>
    %88 = tpu.matmul %83, %85, %cst_35 {dimension_numbers = #tpu.dot_dimension_numbers<[1], [1], [0], [0], [0, 0, 1, 0], [], []>} : vector<16x32xbf16>, vector<16x32xbf16>, vector<16x16xf32> -> vector<16x16xf32>
    %cst_36 = arith.constant 0.176776692 : f32
    %89 = vector.broadcast %cst_36 : f32 to vector<16x16xf32>
    %90 = arith.mulf %88, %89 : vector<16x16xf32>
    %91 = arith.addf %90, %0 : vector<16x16xf32>
    %cst_37 = arith.constant dense<0xFF800000> : vector<16xf32>
    %92 = vector.multi_reduction <maximumf>, %91, %cst_37 [1] : vector<16x16xf32> to vector<16xf32>
    %93 = vector.shape_cast %92 : vector<16xf32> to vector<16x1xf32>
    %94 = vector.broadcast %93 : vector<16x1xf32> to vector<16x16xf32>
    %95 = arith.subf %91, %94 : vector<16x16xf32>
    %96 = math.exp %95 : vector<16x16xf32>
    %cst_38 = arith.constant dense<0.000000e+00> : vector<16xf32>
    %97 = vector.multi_reduction <add>, %96, %cst_38 [1] : vector<16x16xf32> to vector<16xf32>
    %98 = vector.shape_cast %97 : vector<16xf32> to vector<16x1xf32>
    %99 = tpu.reciprocal %98 {approx = true} : vector<16x1xf32> -> vector<16x1xf32>
    %100 = vector.broadcast %99 : vector<16x1xf32> to vector<16x16xf32>
    %101 = arith.mulf %96, %100 : vector<16x16xf32>
    %102 = arith.truncf %101 : vector<16x16xf32> to vector<16x16xbf16>
    %cst_39 = arith.constant dense<0.000000e+00> : vector<16x32xf32>
    %103 = tpu.matmul %102, %87, %cst_39 {dimension_numbers = #tpu.dot_dimension_numbers<[1], [0], [0], [1], [0, 0, 1, 1], [], []>} : vector<16x16xbf16>, vector<16x32xbf16>, vector<16x32xf32> -> vector<16x32xf32>
    %104 = vector.extract_strided_slice %37 {offsets = [0, 96], sizes = [16, 32], strides = [1, 1]} : vector<16x384xf32> to vector<16x32xf32>
    %105 = arith.truncf %104 : vector<16x32xf32> to vector<16x32xbf16>
    %106 = vector.extract_strided_slice %37 {offsets = [0, 224], sizes = [16, 32], strides = [1, 1]} : vector<16x384xf32> to vector<16x32xf32>
    %107 = arith.truncf %106 : vector<16x32xf32> to vector<16x32xbf16>
    %108 = vector.extract_strided_slice %37 {offsets = [0, 352], sizes = [16, 32], strides = [1, 1]} : vector<16x384xf32> to vector<16x32xf32>
    %109 = arith.truncf %108 : vector<16x32xf32> to vector<16x32xbf16>
    %cst_40 = arith.constant dense<0.000000e+00> : vector<16x16xf32>
    %110 = tpu.matmul %105, %107, %cst_40 {dimension_numbers = #tpu.dot_dimension_numbers<[1], [1], [0], [0], [0, 0, 1, 0], [], []>} : vector<16x32xbf16>, vector<16x32xbf16>, vector<16x16xf32> -> vector<16x16xf32>
    %cst_41 = arith.constant 0.176776692 : f32
    %111 = vector.broadcast %cst_41 : f32 to vector<16x16xf32>
    %112 = arith.mulf %110, %111 : vector<16x16xf32>
    %113 = arith.addf %112, %0 : vector<16x16xf32>
    %cst_42 = arith.constant dense<0xFF800000> : vector<16xf32>
    %114 = vector.multi_reduction <maximumf>, %113, %cst_42 [1] : vector<16x16xf32> to vector<16xf32>
    %115 = vector.shape_cast %114 : vector<16xf32> to vector<16x1xf32>
    %116 = vector.broadcast %115 : vector<16x1xf32> to vector<16x16xf32>
    %117 = arith.subf %113, %116 : vector<16x16xf32>
    %118 = math.exp %117 : vector<16x16xf32>
    %cst_43 = arith.constant dense<0.000000e+00> : vector<16xf32>
    %119 = vector.multi_reduction <add>, %118, %cst_43 [1] : vector<16x16xf32> to vector<16xf32>
    %120 = vector.shape_cast %119 : vector<16xf32> to vector<16x1xf32>
    %121 = tpu.reciprocal %120 {approx = true} : vector<16x1xf32> -> vector<16x1xf32>
    %122 = vector.broadcast %121 : vector<16x1xf32> to vector<16x16xf32>
    %123 = arith.mulf %118, %122 : vector<16x16xf32>
    %124 = arith.truncf %123 : vector<16x16xf32> to vector<16x16xbf16>
    %cst_44 = arith.constant dense<0.000000e+00> : vector<16x32xf32>
    %125 = tpu.matmul %124, %109, %cst_44 {dimension_numbers = #tpu.dot_dimension_numbers<[1], [0], [0], [1], [0, 0, 1, 1], [], []>} : vector<16x16xbf16>, vector<16x32xbf16>, vector<16x32xf32> -> vector<16x32xf32>
    %126 = tpu.concatenate %59, %81, %103, %125 in 1 : vector<16x32xf32>, vector<16x32xf32>, vector<16x32xf32>, vector<16x32xf32> -> vector<16x128xf32>
    %c0_45 = arith.constant 0 : index
    %c0_46 = arith.constant 0 : index
    %c0_47 = arith.constant 0 : index
    %127 = vector.load %arg9[%c0_45, %c0_46, %c0_47] : memref<2x128x128xbf16, #tpu.memory_space<vmem>>, vector<1x128x128xbf16>
    %128 = vector.shape_cast %127 : vector<1x128x128xbf16> to vector<128x128xbf16>
    %129 = arith.truncf %126 : vector<16x128xf32> to vector<16x128xbf16>
    %cst_48 = arith.constant dense<0.000000e+00> : vector<16x128xf32>
    %130 = tpu.matmul %129, %128, %cst_48 {dimension_numbers = #tpu.dot_dimension_numbers<[1], [0], [0], [1], [0, 0, 1, 1], [], []>} : vector<16x128xbf16>, vector<128x128xbf16>, vector<16x128xf32> -> vector<16x128xf32>
    %131 = arith.addf %5, %130 : vector<16x128xf32>
    %c0_49 = arith.constant 0 : index
    %c0_50 = arith.constant 0 : index
    %c0_51 = arith.constant 0 : index
    %132 = vector.load %arg10[%c0_49, %c0_50, %c0_51] : memref<2x1x128xf32, #tpu.memory_space<vmem>>, vector<1x1x128xf32>
    %133 = vector.shape_cast %132 : vector<1x1x128xf32> to vector<1x128xf32>
    %134 = vector.broadcast %133 : vector<1x128xf32> to vector<16x128xf32>
    %135 = arith.addf %131, %134 : vector<16x128xf32>
    %c0_52 = arith.constant 0 : index
    %c0_53 = arith.constant 0 : index
    %c0_54 = arith.constant 0 : index
    %136 = vector.load %arg11[%c0_52, %c0_53, %c0_54] : memref<2x1x128xf32, #tpu.memory_space<vmem>>, vector<1x1x128xf32>
    %137 = vector.shape_cast %136 : vector<1x1x128xf32> to vector<1x128xf32>
    %c0_55 = arith.constant 0 : index
    %c0_56 = arith.constant 0 : index
    %c0_57 = arith.constant 0 : index
    %138 = vector.load %arg12[%c0_55, %c0_56, %c0_57] : memref<2x1x128xf32, #tpu.memory_space<vmem>>, vector<1x1x128xf32>
    %139 = vector.shape_cast %138 : vector<1x1x128xf32> to vector<1x128xf32>
    %cst_58 = arith.constant dense<0.000000e+00> : vector<16xf32>
    %140 = vector.multi_reduction <add>, %135, %cst_58 [1] : vector<16x128xf32> to vector<16xf32>
    %141 = vector.shape_cast %140 : vector<16xf32> to vector<16x1xf32>
    %cst_59 = arith.constant 1.280000e+02 : f32
    %142 = vector.broadcast %cst_59 : f32 to vector<16x1xf32>
    %143 = arith.divf %141, %142 : vector<16x1xf32>
    %144 = vector.broadcast %143 : vector<16x1xf32> to vector<16x128xf32>
    %145 = arith.subf %135, %144 : vector<16x128xf32>
    %146 = arith.mulf %145, %145 : vector<16x128xf32>
    %cst_60 = arith.constant dense<0.000000e+00> : vector<16xf32>
    %147 = vector.multi_reduction <add>, %146, %cst_60 [1] : vector<16x128xf32> to vector<16xf32>
    %148 = vector.shape_cast %147 : vector<16xf32> to vector<16x1xf32>
    %cst_61 = arith.constant 1.280000e+02 : f32
    %149 = vector.broadcast %cst_61 : f32 to vector<16x1xf32>
    %150 = arith.divf %148, %149 : vector<16x1xf32>
    %cst_62 = arith.constant 9.99999997E-7 : f32
    %151 = vector.broadcast %cst_62 : f32 to vector<16x1xf32>
    %152 = arith.addf %150, %151 : vector<16x1xf32>
    %153 = math.rsqrt %152 : vector<16x1xf32>
    %154 = vector.broadcast %153 : vector<16x1xf32> to vector<16x128xf32>
    %155 = arith.mulf %145, %154 : vector<16x128xf32>
    %156 = vector.broadcast %137 : vector<1x128xf32> to vector<16x128xf32>
    %157 = arith.mulf %155, %156 : vector<16x128xf32>
    %158 = vector.broadcast %139 : vector<1x128xf32> to vector<16x128xf32>
    %159 = arith.addf %157, %158 : vector<16x128xf32>
    %c0_63 = arith.constant 0 : index
    %c0_64 = arith.constant 0 : index
    %c0_65 = arith.constant 0 : index
    %160 = vector.load %arg13[%c0_63, %c0_64, %c0_65] : memref<2x128x512xbf16, #tpu.memory_space<vmem>>, vector<1x128x512xbf16>
    %161 = vector.shape_cast %160 : vector<1x128x512xbf16> to vector<128x512xbf16>
    %162 = arith.truncf %159 : vector<16x128xf32> to vector<16x128xbf16>
    %cst_66 = arith.constant dense<0.000000e+00> : vector<16x512xf32>
    %163 = tpu.matmul %162, %161, %cst_66 {dimension_numbers = #tpu.dot_dimension_numbers<[1], [0], [0], [1], [0, 0, 1, 1], [], []>} : vector<16x128xbf16>, vector<128x512xbf16>, vector<16x512xf32> -> vector<16x512xf32>
    %c0_67 = arith.constant 0 : index
    %c0_68 = arith.constant 0 : index
    %c0_69 = arith.constant 0 : index
    %164 = vector.load %arg14[%c0_67, %c0_68, %c0_69] : memref<2x1x512xf32, #tpu.memory_space<vmem>>, vector<1x1x512xf32>
    %165 = vector.shape_cast %164 : vector<1x1x512xf32> to vector<1x512xf32>
    %166 = vector.broadcast %165 : vector<1x512xf32> to vector<16x512xf32>
    %167 = arith.addf %163, %166 : vector<16x512xf32>
    %168 = arith.mulf %167, %167 : vector<16x512xf32>
    %169 = arith.mulf %167, %168 : vector<16x512xf32>
    %cst_70 = arith.constant 4.471500e-02 : f32
    %170 = vector.broadcast %cst_70 : f32 to vector<16x512xf32>
    %171 = arith.mulf %170, %169 : vector<16x512xf32>
    %172 = arith.addf %167, %171 : vector<16x512xf32>
    %cst_71 = arith.constant 0.797884583 : f32
    %173 = vector.broadcast %cst_71 : f32 to vector<16x512xf32>
    %174 = arith.mulf %173, %172 : vector<16x512xf32>
    %175 = math.tanh %174 : vector<16x512xf32>
    %cst_72 = arith.constant 1.000000e+00 : f32
    %176 = vector.broadcast %cst_72 : f32 to vector<16x512xf32>
    %177 = arith.addf %176, %175 : vector<16x512xf32>
    %cst_73 = arith.constant 5.000000e-01 : f32
    %178 = vector.broadcast %cst_73 : f32 to vector<16x512xf32>
    %179 = arith.mulf %178, %177 : vector<16x512xf32>
    %180 = arith.mulf %167, %179 : vector<16x512xf32>
    %c0_74 = arith.constant 0 : index
    %c0_75 = arith.constant 0 : index
    %c0_76 = arith.constant 0 : index
    %181 = vector.load %arg15[%c0_74, %c0_75, %c0_76] : memref<2x512x128xbf16, #tpu.memory_space<vmem>>, vector<1x512x128xbf16>
    %182 = vector.shape_cast %181 : vector<1x512x128xbf16> to vector<512x128xbf16>
    %183 = arith.truncf %180 : vector<16x512xf32> to vector<16x512xbf16>
    %cst_77 = arith.constant dense<0.000000e+00> : vector<16x128xf32>
    %184 = tpu.matmul %183, %182, %cst_77 {dimension_numbers = #tpu.dot_dimension_numbers<[1], [0], [0], [1], [0, 0, 1, 1], [], []>} : vector<16x512xbf16>, vector<512x128xbf16>, vector<16x128xf32> -> vector<16x128xf32>
    %185 = arith.addf %135, %184 : vector<16x128xf32>
    %c0_78 = arith.constant 0 : index
    %c0_79 = arith.constant 0 : index
    %c0_80 = arith.constant 0 : index
    %186 = vector.load %arg16[%c0_78, %c0_79, %c0_80] : memref<2x1x128xf32, #tpu.memory_space<vmem>>, vector<1x1x128xf32>
    %187 = vector.shape_cast %186 : vector<1x1x128xf32> to vector<1x128xf32>
    %188 = vector.broadcast %187 : vector<1x128xf32> to vector<16x128xf32>
    %189 = arith.addf %185, %188 : vector<16x128xf32>
    %c1 = arith.constant 1 : index
    %c0_81 = arith.constant 0 : index
    %c0_82 = arith.constant 0 : index
    %190 = vector.load %arg5[%c1, %c0_81, %c0_82] : memref<2x1x128xf32, #tpu.memory_space<vmem>>, vector<1x1x128xf32>
    %191 = vector.shape_cast %190 : vector<1x1x128xf32> to vector<1x128xf32>
    %c1_83 = arith.constant 1 : index
    %c0_84 = arith.constant 0 : index
    %c0_85 = arith.constant 0 : index
    %192 = vector.load %arg6[%c1_83, %c0_84, %c0_85] : memref<2x1x128xf32, #tpu.memory_space<vmem>>, vector<1x1x128xf32>
    %193 = vector.shape_cast %192 : vector<1x1x128xf32> to vector<1x128xf32>
    %cst_86 = arith.constant dense<0.000000e+00> : vector<16xf32>
    %194 = vector.multi_reduction <add>, %189, %cst_86 [1] : vector<16x128xf32> to vector<16xf32>
    %195 = vector.shape_cast %194 : vector<16xf32> to vector<16x1xf32>
    %cst_87 = arith.constant 1.280000e+02 : f32
    %196 = vector.broadcast %cst_87 : f32 to vector<16x1xf32>
    %197 = arith.divf %195, %196 : vector<16x1xf32>
    %198 = vector.broadcast %197 : vector<16x1xf32> to vector<16x128xf32>
    %199 = arith.subf %189, %198 : vector<16x128xf32>
    %200 = arith.mulf %199, %199 : vector<16x128xf32>
    %cst_88 = arith.constant dense<0.000000e+00> : vector<16xf32>
    %201 = vector.multi_reduction <add>, %200, %cst_88 [1] : vector<16x128xf32> to vector<16xf32>
    %202 = vector.shape_cast %201 : vector<16xf32> to vector<16x1xf32>
    %cst_89 = arith.constant 1.280000e+02 : f32
    %203 = vector.broadcast %cst_89 : f32 to vector<16x1xf32>
    %204 = arith.divf %202, %203 : vector<16x1xf32>
    %cst_90 = arith.constant 9.99999997E-7 : f32
    %205 = vector.broadcast %cst_90 : f32 to vector<16x1xf32>
    %206 = arith.addf %204, %205 : vector<16x1xf32>
    %207 = math.rsqrt %206 : vector<16x1xf32>
    %208 = vector.broadcast %207 : vector<16x1xf32> to vector<16x128xf32>
    %209 = arith.mulf %199, %208 : vector<16x128xf32>
    %210 = vector.broadcast %191 : vector<1x128xf32> to vector<16x128xf32>
    %211 = arith.mulf %209, %210 : vector<16x128xf32>
    %212 = vector.broadcast %193 : vector<1x128xf32> to vector<16x128xf32>
    %213 = arith.addf %211, %212 : vector<16x128xf32>
    %c1_91 = arith.constant 1 : index
    %c0_92 = arith.constant 0 : index
    %c0_93 = arith.constant 0 : index
    %214 = vector.load %arg7[%c1_91, %c0_92, %c0_93] : memref<2x128x384xbf16, #tpu.memory_space<vmem>>, vector<1x128x384xbf16>
    %215 = vector.shape_cast %214 : vector<1x128x384xbf16> to vector<128x384xbf16>
    %216 = arith.truncf %213 : vector<16x128xf32> to vector<16x128xbf16>
    %cst_94 = arith.constant dense<0.000000e+00> : vector<16x384xf32>
    %217 = tpu.matmul %216, %215, %cst_94 {dimension_numbers = #tpu.dot_dimension_numbers<[1], [0], [0], [1], [0, 0, 1, 1], [], []>} : vector<16x128xbf16>, vector<128x384xbf16>, vector<16x384xf32> -> vector<16x384xf32>
    %c1_95 = arith.constant 1 : index
    %c0_96 = arith.constant 0 : index
    %c0_97 = arith.constant 0 : index
    %218 = vector.load %arg8[%c1_95, %c0_96, %c0_97] : memref<2x1x384xf32, #tpu.memory_space<vmem>>, vector<1x1x384xf32>
    %219 = vector.shape_cast %218 : vector<1x1x384xf32> to vector<1x384xf32>
    %220 = vector.broadcast %219 : vector<1x384xf32> to vector<16x384xf32>
    %221 = arith.addf %217, %220 : vector<16x384xf32>
    %222 = vector.extract_strided_slice %221 {offsets = [0, 0], sizes = [16, 32], strides = [1, 1]} : vector<16x384xf32> to vector<16x32xf32>
    %223 = arith.truncf %222 : vector<16x32xf32> to vector<16x32xbf16>
    %224 = vector.extract_strided_slice %221 {offsets = [0, 128], sizes = [16, 32], strides = [1, 1]} : vector<16x384xf32> to vector<16x32xf32>
    %225 = arith.truncf %224 : vector<16x32xf32> to vector<16x32xbf16>
    %226 = vector.extract_strided_slice %221 {offsets = [0, 256], sizes = [16, 32], strides = [1, 1]} : vector<16x384xf32> to vector<16x32xf32>
    %227 = arith.truncf %226 : vector<16x32xf32> to vector<16x32xbf16>
    %cst_98 = arith.constant dense<0.000000e+00> : vector<16x16xf32>
    %228 = tpu.matmul %223, %225, %cst_98 {dimension_numbers = #tpu.dot_dimension_numbers<[1], [1], [0], [0], [0, 0, 1, 0], [], []>} : vector<16x32xbf16>, vector<16x32xbf16>, vector<16x16xf32> -> vector<16x16xf32>
    %cst_99 = arith.constant 0.176776692 : f32
    %229 = vector.broadcast %cst_99 : f32 to vector<16x16xf32>
    %230 = arith.mulf %228, %229 : vector<16x16xf32>
    %231 = arith.addf %230, %0 : vector<16x16xf32>
    %cst_100 = arith.constant dense<0xFF800000> : vector<16xf32>
    %232 = vector.multi_reduction <maximumf>, %231, %cst_100 [1] : vector<16x16xf32> to vector<16xf32>
    %233 = vector.shape_cast %232 : vector<16xf32> to vector<16x1xf32>
    %234 = vector.broadcast %233 : vector<16x1xf32> to vector<16x16xf32>
    %235 = arith.subf %231, %234 : vector<16x16xf32>
    %236 = math.exp %235 : vector<16x16xf32>
    %cst_101 = arith.constant dense<0.000000e+00> : vector<16xf32>
    %237 = vector.multi_reduction <add>, %236, %cst_101 [1] : vector<16x16xf32> to vector<16xf32>
    %238 = vector.shape_cast %237 : vector<16xf32> to vector<16x1xf32>
    %239 = tpu.reciprocal %238 {approx = true} : vector<16x1xf32> -> vector<16x1xf32>
    %240 = vector.broadcast %239 : vector<16x1xf32> to vector<16x16xf32>
    %241 = arith.mulf %236, %240 : vector<16x16xf32>
    %242 = arith.truncf %241 : vector<16x16xf32> to vector<16x16xbf16>
    %cst_102 = arith.constant dense<0.000000e+00> : vector<16x32xf32>
    %243 = tpu.matmul %242, %227, %cst_102 {dimension_numbers = #tpu.dot_dimension_numbers<[1], [0], [0], [1], [0, 0, 1, 1], [], []>} : vector<16x16xbf16>, vector<16x32xbf16>, vector<16x32xf32> -> vector<16x32xf32>
    %244 = vector.extract_strided_slice %221 {offsets = [0, 32], sizes = [16, 32], strides = [1, 1]} : vector<16x384xf32> to vector<16x32xf32>
    %245 = arith.truncf %244 : vector<16x32xf32> to vector<16x32xbf16>
    %246 = vector.extract_strided_slice %221 {offsets = [0, 160], sizes = [16, 32], strides = [1, 1]} : vector<16x384xf32> to vector<16x32xf32>
    %247 = arith.truncf %246 : vector<16x32xf32> to vector<16x32xbf16>
    %248 = vector.extract_strided_slice %221 {offsets = [0, 288], sizes = [16, 32], strides = [1, 1]} : vector<16x384xf32> to vector<16x32xf32>
    %249 = arith.truncf %248 : vector<16x32xf32> to vector<16x32xbf16>
    %cst_103 = arith.constant dense<0.000000e+00> : vector<16x16xf32>
    %250 = tpu.matmul %245, %247, %cst_103 {dimension_numbers = #tpu.dot_dimension_numbers<[1], [1], [0], [0], [0, 0, 1, 0], [], []>} : vector<16x32xbf16>, vector<16x32xbf16>, vector<16x16xf32> -> vector<16x16xf32>
    %cst_104 = arith.constant 0.176776692 : f32
    %251 = vector.broadcast %cst_104 : f32 to vector<16x16xf32>
    %252 = arith.mulf %250, %251 : vector<16x16xf32>
    %253 = arith.addf %252, %0 : vector<16x16xf32>
    %cst_105 = arith.constant dense<0xFF800000> : vector<16xf32>
    %254 = vector.multi_reduction <maximumf>, %253, %cst_105 [1] : vector<16x16xf32> to vector<16xf32>
    %255 = vector.shape_cast %254 : vector<16xf32> to vector<16x1xf32>
    %256 = vector.broadcast %255 : vector<16x1xf32> to vector<16x16xf32>
    %257 = arith.subf %253, %256 : vector<16x16xf32>
    %258 = math.exp %257 : vector<16x16xf32>
    %cst_106 = arith.constant dense<0.000000e+00> : vector<16xf32>
    %259 = vector.multi_reduction <add>, %258, %cst_106 [1] : vector<16x16xf32> to vector<16xf32>
    %260 = vector.shape_cast %259 : vector<16xf32> to vector<16x1xf32>
    %261 = tpu.reciprocal %260 {approx = true} : vector<16x1xf32> -> vector<16x1xf32>
    %262 = vector.broadcast %261 : vector<16x1xf32> to vector<16x16xf32>
    %263 = arith.mulf %258, %262 : vector<16x16xf32>
    %264 = arith.truncf %263 : vector<16x16xf32> to vector<16x16xbf16>
    %cst_107 = arith.constant dense<0.000000e+00> : vector<16x32xf32>
    %265 = tpu.matmul %264, %249, %cst_107 {dimension_numbers = #tpu.dot_dimension_numbers<[1], [0], [0], [1], [0, 0, 1, 1], [], []>} : vector<16x16xbf16>, vector<16x32xbf16>, vector<16x32xf32> -> vector<16x32xf32>
    %266 = vector.extract_strided_slice %221 {offsets = [0, 64], sizes = [16, 32], strides = [1, 1]} : vector<16x384xf32> to vector<16x32xf32>
    %267 = arith.truncf %266 : vector<16x32xf32> to vector<16x32xbf16>
    %268 = vector.extract_strided_slice %221 {offsets = [0, 192], sizes = [16, 32], strides = [1, 1]} : vector<16x384xf32> to vector<16x32xf32>
    %269 = arith.truncf %268 : vector<16x32xf32> to vector<16x32xbf16>
    %270 = vector.extract_strided_slice %221 {offsets = [0, 320], sizes = [16, 32], strides = [1, 1]} : vector<16x384xf32> to vector<16x32xf32>
    %271 = arith.truncf %270 : vector<16x32xf32> to vector<16x32xbf16>
    %cst_108 = arith.constant dense<0.000000e+00> : vector<16x16xf32>
    %272 = tpu.matmul %267, %269, %cst_108 {dimension_numbers = #tpu.dot_dimension_numbers<[1], [1], [0], [0], [0, 0, 1, 0], [], []>} : vector<16x32xbf16>, vector<16x32xbf16>, vector<16x16xf32> -> vector<16x16xf32>
    %cst_109 = arith.constant 0.176776692 : f32
    %273 = vector.broadcast %cst_109 : f32 to vector<16x16xf32>
    %274 = arith.mulf %272, %273 : vector<16x16xf32>
    %275 = arith.addf %274, %0 : vector<16x16xf32>
    %cst_110 = arith.constant dense<0xFF800000> : vector<16xf32>
    %276 = vector.multi_reduction <maximumf>, %275, %cst_110 [1] : vector<16x16xf32> to vector<16xf32>
    %277 = vector.shape_cast %276 : vector<16xf32> to vector<16x1xf32>
    %278 = vector.broadcast %277 : vector<16x1xf32> to vector<16x16xf32>
    %279 = arith.subf %275, %278 : vector<16x16xf32>
    %280 = math.exp %279 : vector<16x16xf32>
    %cst_111 = arith.constant dense<0.000000e+00> : vector<16xf32>
    %281 = vector.multi_reduction <add>, %280, %cst_111 [1] : vector<16x16xf32> to vector<16xf32>
    %282 = vector.shape_cast %281 : vector<16xf32> to vector<16x1xf32>
    %283 = tpu.reciprocal %282 {approx = true} : vector<16x1xf32> -> vector<16x1xf32>
    %284 = vector.broadcast %283 : vector<16x1xf32> to vector<16x16xf32>
    %285 = arith.mulf %280, %284 : vector<16x16xf32>
    %286 = arith.truncf %285 : vector<16x16xf32> to vector<16x16xbf16>
    %cst_112 = arith.constant dense<0.000000e+00> : vector<16x32xf32>
    %287 = tpu.matmul %286, %271, %cst_112 {dimension_numbers = #tpu.dot_dimension_numbers<[1], [0], [0], [1], [0, 0, 1, 1], [], []>} : vector<16x16xbf16>, vector<16x32xbf16>, vector<16x32xf32> -> vector<16x32xf32>
    %288 = vector.extract_strided_slice %221 {offsets = [0, 96], sizes = [16, 32], strides = [1, 1]} : vector<16x384xf32> to vector<16x32xf32>
    %289 = arith.truncf %288 : vector<16x32xf32> to vector<16x32xbf16>
    %290 = vector.extract_strided_slice %221 {offsets = [0, 224], sizes = [16, 32], strides = [1, 1]} : vector<16x384xf32> to vector<16x32xf32>
    %291 = arith.truncf %290 : vector<16x32xf32> to vector<16x32xbf16>
    %292 = vector.extract_strided_slice %221 {offsets = [0, 352], sizes = [16, 32], strides = [1, 1]} : vector<16x384xf32> to vector<16x32xf32>
    %293 = arith.truncf %292 : vector<16x32xf32> to vector<16x32xbf16>
    %cst_113 = arith.constant dense<0.000000e+00> : vector<16x16xf32>
    %294 = tpu.matmul %289, %291, %cst_113 {dimension_numbers = #tpu.dot_dimension_numbers<[1], [1], [0], [0], [0, 0, 1, 0], [], []>} : vector<16x32xbf16>, vector<16x32xbf16>, vector<16x16xf32> -> vector<16x16xf32>
    %cst_114 = arith.constant 0.176776692 : f32
    %295 = vector.broadcast %cst_114 : f32 to vector<16x16xf32>
    %296 = arith.mulf %294, %295 : vector<16x16xf32>
    %297 = arith.addf %296, %0 : vector<16x16xf32>
    %cst_115 = arith.constant dense<0xFF800000> : vector<16xf32>
    %298 = vector.multi_reduction <maximumf>, %297, %cst_115 [1] : vector<16x16xf32> to vector<16xf32>
    %299 = vector.shape_cast %298 : vector<16xf32> to vector<16x1xf32>
    %300 = vector.broadcast %299 : vector<16x1xf32> to vector<16x16xf32>
    %301 = arith.subf %297, %300 : vector<16x16xf32>
    %302 = math.exp %301 : vector<16x16xf32>
    %cst_116 = arith.constant dense<0.000000e+00> : vector<16xf32>
    %303 = vector.multi_reduction <add>, %302, %cst_116 [1] : vector<16x16xf32> to vector<16xf32>
    %304 = vector.shape_cast %303 : vector<16xf32> to vector<16x1xf32>
    %305 = tpu.reciprocal %304 {approx = true} : vector<16x1xf32> -> vector<16x1xf32>
    %306 = vector.broadcast %305 : vector<16x1xf32> to vector<16x16xf32>
    %307 = arith.mulf %302, %306 : vector<16x16xf32>
    %308 = arith.truncf %307 : vector<16x16xf32> to vector<16x16xbf16>
    %cst_117 = arith.constant dense<0.000000e+00> : vector<16x32xf32>
    %309 = tpu.matmul %308, %293, %cst_117 {dimension_numbers = #tpu.dot_dimension_numbers<[1], [0], [0], [1], [0, 0, 1, 1], [], []>} : vector<16x16xbf16>, vector<16x32xbf16>, vector<16x32xf32> -> vector<16x32xf32>
    %310 = tpu.concatenate %243, %265, %287, %309 in 1 : vector<16x32xf32>, vector<16x32xf32>, vector<16x32xf32>, vector<16x32xf32> -> vector<16x128xf32>
    %c1_118 = arith.constant 1 : index
    %c0_119 = arith.constant 0 : index
    %c0_120 = arith.constant 0 : index
    %311 = vector.load %arg9[%c1_118, %c0_119, %c0_120] : memref<2x128x128xbf16, #tpu.memory_space<vmem>>, vector<1x128x128xbf16>
    %312 = vector.shape_cast %311 : vector<1x128x128xbf16> to vector<128x128xbf16>
    %313 = arith.truncf %310 : vector<16x128xf32> to vector<16x128xbf16>
    %cst_121 = arith.constant dense<0.000000e+00> : vector<16x128xf32>
    %314 = tpu.matmul %313, %312, %cst_121 {dimension_numbers = #tpu.dot_dimension_numbers<[1], [0], [0], [1], [0, 0, 1, 1], [], []>} : vector<16x128xbf16>, vector<128x128xbf16>, vector<16x128xf32> -> vector<16x128xf32>
    %315 = arith.addf %189, %314 : vector<16x128xf32>
    %c1_122 = arith.constant 1 : index
    %c0_123 = arith.constant 0 : index
    %c0_124 = arith.constant 0 : index
    %316 = vector.load %arg10[%c1_122, %c0_123, %c0_124] : memref<2x1x128xf32, #tpu.memory_space<vmem>>, vector<1x1x128xf32>
    %317 = vector.shape_cast %316 : vector<1x1x128xf32> to vector<1x128xf32>
    %318 = vector.broadcast %317 : vector<1x128xf32> to vector<16x128xf32>
    %319 = arith.addf %315, %318 : vector<16x128xf32>
    %c1_125 = arith.constant 1 : index
    %c0_126 = arith.constant 0 : index
    %c0_127 = arith.constant 0 : index
    %320 = vector.load %arg11[%c1_125, %c0_126, %c0_127] : memref<2x1x128xf32, #tpu.memory_space<vmem>>, vector<1x1x128xf32>
    %321 = vector.shape_cast %320 : vector<1x1x128xf32> to vector<1x128xf32>
    %c1_128 = arith.constant 1 : index
    %c0_129 = arith.constant 0 : index
    %c0_130 = arith.constant 0 : index
    %322 = vector.load %arg12[%c1_128, %c0_129, %c0_130] : memref<2x1x128xf32, #tpu.memory_space<vmem>>, vector<1x1x128xf32>
    %323 = vector.shape_cast %322 : vector<1x1x128xf32> to vector<1x128xf32>
    %cst_131 = arith.constant dense<0.000000e+00> : vector<16xf32>
    %324 = vector.multi_reduction <add>, %319, %cst_131 [1] : vector<16x128xf32> to vector<16xf32>
    %325 = vector.shape_cast %324 : vector<16xf32> to vector<16x1xf32>
    %cst_132 = arith.constant 1.280000e+02 : f32
    %326 = vector.broadcast %cst_132 : f32 to vector<16x1xf32>
    %327 = arith.divf %325, %326 : vector<16x1xf32>
    %328 = vector.broadcast %327 : vector<16x1xf32> to vector<16x128xf32>
    %329 = arith.subf %319, %328 : vector<16x128xf32>
    %330 = arith.mulf %329, %329 : vector<16x128xf32>
    %cst_133 = arith.constant dense<0.000000e+00> : vector<16xf32>
    %331 = vector.multi_reduction <add>, %330, %cst_133 [1] : vector<16x128xf32> to vector<16xf32>
    %332 = vector.shape_cast %331 : vector<16xf32> to vector<16x1xf32>
    %cst_134 = arith.constant 1.280000e+02 : f32
    %333 = vector.broadcast %cst_134 : f32 to vector<16x1xf32>
    %334 = arith.divf %332, %333 : vector<16x1xf32>
    %cst_135 = arith.constant 9.99999997E-7 : f32
    %335 = vector.broadcast %cst_135 : f32 to vector<16x1xf32>
    %336 = arith.addf %334, %335 : vector<16x1xf32>
    %337 = math.rsqrt %336 : vector<16x1xf32>
    %338 = vector.broadcast %337 : vector<16x1xf32> to vector<16x128xf32>
    %339 = arith.mulf %329, %338 : vector<16x128xf32>
    %340 = vector.broadcast %321 : vector<1x128xf32> to vector<16x128xf32>
    %341 = arith.mulf %339, %340 : vector<16x128xf32>
    %342 = vector.broadcast %323 : vector<1x128xf32> to vector<16x128xf32>
    %343 = arith.addf %341, %342 : vector<16x128xf32>
    %c1_136 = arith.constant 1 : index
    %c0_137 = arith.constant 0 : index
    %c0_138 = arith.constant 0 : index
    %344 = vector.load %arg13[%c1_136, %c0_137, %c0_138] : memref<2x128x512xbf16, #tpu.memory_space<vmem>>, vector<1x128x512xbf16>
    %345 = vector.shape_cast %344 : vector<1x128x512xbf16> to vector<128x512xbf16>
    %346 = arith.truncf %343 : vector<16x128xf32> to vector<16x128xbf16>
    %cst_139 = arith.constant dense<0.000000e+00> : vector<16x512xf32>
    %347 = tpu.matmul %346, %345, %cst_139 {dimension_numbers = #tpu.dot_dimension_numbers<[1], [0], [0], [1], [0, 0, 1, 1], [], []>} : vector<16x128xbf16>, vector<128x512xbf16>, vector<16x512xf32> -> vector<16x512xf32>
    %c1_140 = arith.constant 1 : index
    %c0_141 = arith.constant 0 : index
    %c0_142 = arith.constant 0 : index
    %348 = vector.load %arg14[%c1_140, %c0_141, %c0_142] : memref<2x1x512xf32, #tpu.memory_space<vmem>>, vector<1x1x512xf32>
    %349 = vector.shape_cast %348 : vector<1x1x512xf32> to vector<1x512xf32>
    %350 = vector.broadcast %349 : vector<1x512xf32> to vector<16x512xf32>
    %351 = arith.addf %347, %350 : vector<16x512xf32>
    %352 = arith.mulf %351, %351 : vector<16x512xf32>
    %353 = arith.mulf %351, %352 : vector<16x512xf32>
    %cst_143 = arith.constant 4.471500e-02 : f32
    %354 = vector.broadcast %cst_143 : f32 to vector<16x512xf32>
    %355 = arith.mulf %354, %353 : vector<16x512xf32>
    %356 = arith.addf %351, %355 : vector<16x512xf32>
    %cst_144 = arith.constant 0.797884583 : f32
    %357 = vector.broadcast %cst_144 : f32 to vector<16x512xf32>
    %358 = arith.mulf %357, %356 : vector<16x512xf32>
    %359 = math.tanh %358 : vector<16x512xf32>
    %cst_145 = arith.constant 1.000000e+00 : f32
    %360 = vector.broadcast %cst_145 : f32 to vector<16x512xf32>
    %361 = arith.addf %360, %359 : vector<16x512xf32>
    %cst_146 = arith.constant 5.000000e-01 : f32
    %362 = vector.broadcast %cst_146 : f32 to vector<16x512xf32>
    %363 = arith.mulf %362, %361 : vector<16x512xf32>
    %364 = arith.mulf %351, %363 : vector<16x512xf32>
    %c1_147 = arith.constant 1 : index
    %c0_148 = arith.constant 0 : index
    %c0_149 = arith.constant 0 : index
    %365 = vector.load %arg15[%c1_147, %c0_148, %c0_149] : memref<2x512x128xbf16, #tpu.memory_space<vmem>>, vector<1x512x128xbf16>
    %366 = vector.shape_cast %365 : vector<1x512x128xbf16> to vector<512x128xbf16>
    %367 = arith.truncf %364 : vector<16x512xf32> to vector<16x512xbf16>
    %cst_150 = arith.constant dense<0.000000e+00> : vector<16x128xf32>
    %368 = tpu.matmul %367, %366, %cst_150 {dimension_numbers = #tpu.dot_dimension_numbers<[1], [0], [0], [1], [0, 0, 1, 1], [], []>} : vector<16x512xbf16>, vector<512x128xbf16>, vector<16x128xf32> -> vector<16x128xf32>
    %369 = arith.addf %319, %368 : vector<16x128xf32>
    %c1_151 = arith.constant 1 : index
    %c0_152 = arith.constant 0 : index
    %c0_153 = arith.constant 0 : index
    %370 = vector.load %arg16[%c1_151, %c0_152, %c0_153] : memref<2x1x128xf32, #tpu.memory_space<vmem>>, vector<1x1x128xf32>
    %371 = vector.shape_cast %370 : vector<1x1x128xf32> to vector<1x128xf32>
    %372 = vector.broadcast %371 : vector<1x128xf32> to vector<16x128xf32>
    %373 = arith.addf %369, %372 : vector<16x128xf32>
    %c0_154 = arith.constant 0 : index
    %c0_155 = arith.constant 0 : index
    %374 = vector.load %arg17[%c0_154, %c0_155] : memref<1x128xf32, #tpu.memory_space<vmem>>, vector<1x128xf32>
    %c0_156 = arith.constant 0 : index
    %c0_157 = arith.constant 0 : index
    %375 = vector.load %arg18[%c0_156, %c0_157] : memref<1x128xf32, #tpu.memory_space<vmem>>, vector<1x128xf32>
    %cst_158 = arith.constant dense<0.000000e+00> : vector<16xf32>
    %376 = vector.multi_reduction <add>, %373, %cst_158 [1] : vector<16x128xf32> to vector<16xf32>
    %377 = vector.shape_cast %376 : vector<16xf32> to vector<16x1xf32>
    %cst_159 = arith.constant 1.280000e+02 : f32
    %378 = vector.broadcast %cst_159 : f32 to vector<16x1xf32>
    %379 = arith.divf %377, %378 : vector<16x1xf32>
    %380 = vector.broadcast %379 : vector<16x1xf32> to vector<16x128xf32>
    %381 = arith.subf %373, %380 : vector<16x128xf32>
    %382 = arith.mulf %381, %381 : vector<16x128xf32>
    %cst_160 = arith.constant dense<0.000000e+00> : vector<16xf32>
    %383 = vector.multi_reduction <add>, %382, %cst_160 [1] : vector<16x128xf32> to vector<16xf32>
    %384 = vector.shape_cast %383 : vector<16xf32> to vector<16x1xf32>
    %cst_161 = arith.constant 1.280000e+02 : f32
    %385 = vector.broadcast %cst_161 : f32 to vector<16x1xf32>
    %386 = arith.divf %384, %385 : vector<16x1xf32>
    %cst_162 = arith.constant 9.99999997E-7 : f32
    %387 = vector.broadcast %cst_162 : f32 to vector<16x1xf32>
    %388 = arith.addf %386, %387 : vector<16x1xf32>
    %389 = math.rsqrt %388 : vector<16x1xf32>
    %390 = vector.broadcast %389 : vector<16x1xf32> to vector<16x128xf32>
    %391 = arith.mulf %381, %390 : vector<16x128xf32>
    %392 = vector.broadcast %374 : vector<1x128xf32> to vector<16x128xf32>
    %393 = arith.mulf %391, %392 : vector<16x128xf32>
    %394 = vector.broadcast %375 : vector<1x128xf32> to vector<16x128xf32>
    %395 = arith.addf %393, %394 : vector<16x128xf32>
    %c0_163 = arith.constant 0 : index
    %c0_164 = arith.constant 0 : index
    %396 = vector.load %arg19[%c0_163, %c0_164] : memref<128x128xbf16, #tpu.memory_space<vmem>>, vector<128x128xbf16>
    %397 = arith.truncf %395 : vector<16x128xf32> to vector<16x128xbf16>
    %cst_165 = arith.constant dense<0.000000e+00> : vector<16x128xf32>
    %398 = tpu.matmul %397, %396, %cst_165 {dimension_numbers = #tpu.dot_dimension_numbers<[1], [0], [0], [1], [0, 0, 1, 1], [], []>} : vector<16x128xbf16>, vector<128x128xbf16>, vector<16x128xf32> -> vector<16x128xf32>
    %c0_166 = arith.constant 0 : index
    %c0_167 = arith.constant 0 : index
    %399 = vector.load %arg20[%c0_166, %c0_167] : memref<1x128xf32, #tpu.memory_space<vmem>>, vector<1x128xf32>
    %400 = vector.broadcast %399 : vector<1x128xf32> to vector<16x128xf32>
    %401 = arith.addf %398, %400 : vector<16x128xf32>
    %c0_168 = arith.constant 0 : index
    %c0_169 = arith.constant 0 : index
    %402 = vector.load %arg22[%c0_168, %c0_169] : memref<16x128xf32, #tpu.memory_space<vmem>>, vector<16x128xf32>
    tpu.vector_store %arg22[%c0_168, %c0_169], %401 {strides = array<i32>} : memref<16x128xf32, #tpu.memory_space<vmem>>, vector<16x128xf32>,
    %c0_170 = arith.constant 0 : index
    %c0_171 = arith.constant 0 : index
    %403 = vector.load %arg3[%c0_170, %c0_171] : memref<1x128xf32, #tpu.memory_space<vmem>>, vector<1x128xf32>
    %404 = vector.broadcast %403 : vector<1x128xf32> to vector<16x128xf32>
    %405 = arith.addf %401, %404 : vector<16x128xf32>
    %cst_172 = arith.constant dense<0xFF800000> : vector<16xf32>
    %406 = vector.multi_reduction <maximumf>, %405, %cst_172 [1] : vector<16x128xf32> to vector<16xf32>
    %407 = vector.shape_cast %406 : vector<16xf32> to vector<16x1xf32>
    %408 = vector.broadcast %407 : vector<16x1xf32> to vector<16x128xf32>
    %409 = arith.subf %405, %408 : vector<16x128xf32>
    %410 = math.exp %409 : vector<16x128xf32>
    %cst_173 = arith.constant dense<0.000000e+00> : vector<16xf32>
    %411 = vector.multi_reduction <add>, %410, %cst_173 [1] : vector<16x128xf32> to vector<16xf32>
    %412 = vector.shape_cast %411 : vector<16xf32> to vector<16x1xf32>
    %413 = vector.broadcast %412 : vector<16x1xf32> to vector<16x128xf32>
    %414 = arith.divf %410, %413 : vector<16x128xf32>
    %c0_174 = arith.constant 0 : index
    %c0_175 = arith.constant 0 : index
    %415 = vector.load %arg21[%c0_174, %c0_175] : memref<16x128xf32, #tpu.memory_space<vmem>>, vector<16x128xf32>
    tpu.vector_store %arg21[%c0_174, %c0_175], %414 {strides = array<i32>} : memref<16x128xf32, #tpu.memory_space<vmem>>, vector<16x128xf32>,
    return
  }
}

</mosaic_0001>

<llo_original>
// kernel: vit_forward.1
$region0: #{vit_forward.1}
  #allocation0 [shape = 'u32[]', space=smem, size = 0x4, offset = 0x4, fixed_abs, tag = 'smem constant byte address 0x4 - core index']
  #allocation1 [shape = 'u32[144,128]{1,0:T(1,128)}', space=vmem, size = 0x12000, scoped, tag = 'internal scratch']
  %s0 = inlined_call_operand.vmem [shape: bf16[16,768], index: 0, kind: input, shape index: {}]
  %s1 = inlined_call_operand.vmem [shape: f32[16,128], index: 1, kind: input, shape index: {}]
  %s2 = inlined_call_operand.vmem [shape: f32[16,16], index: 2, kind: input, shape index: {}]
  %s3 = inlined_call_operand.vmem [shape: f32[1,128], index: 3, kind: input, shape index: {}]
  %s4 = inlined_call_operand.vmem [shape: bf16[768,128], index: 4, kind: input, shape index: {}]
  %s5 = inlined_call_operand.vmem [shape: f32[2,1,128], index: 5, kind: input, shape index: {}]
  %s6 = inlined_call_operand.vmem [shape: f32[2,1,128], index: 6, kind: input, shape index: {}]
  %s7 = inlined_call_operand.vmem [shape: bf16[2,128,384], index: 7, kind: input, shape index: {}]
  %s8 = inlined_call_operand.vmem [shape: f32[2,1,384], index: 8, kind: input, shape index: {}]
  %s9 = inlined_call_operand.vmem [shape: bf16[2,128,128], index: 9, kind: input, shape index: {}]
  %s10 = inlined_call_operand.vmem [shape: f32[2,1,128], index: 10, kind: input, shape index: {}]
  %s11 = inlined_call_operand.vmem [shape: f32[2,1,128], index: 11, kind: input, shape index: {}]
  %s12 = inlined_call_operand.vmem [shape: f32[2,1,128], index: 12, kind: input, shape index: {}]
  %s13 = inlined_call_operand.vmem [shape: bf16[2,128,512], index: 13, kind: input, shape index: {}]
  %s14 = inlined_call_operand.vmem [shape: f32[2,1,512], index: 14, kind: input, shape index: {}]
  %s15 = inlined_call_operand.vmem [shape: bf16[2,512,128], index: 15, kind: input, shape index: {}]
  %s16 = inlined_call_operand.vmem [shape: f32[2,1,128], index: 16, kind: input, shape index: {}]
  %s17 = inlined_call_operand.vmem [shape: f32[1,128], index: 17, kind: input, shape index: {}]
  %s18 = inlined_call_operand.vmem [shape: f32[1,128], index: 18, kind: input, shape index: {}]
  %s19 = inlined_call_operand.vmem [shape: bf16[128,128], index: 19, kind: input, shape index: {}]
  %s20 = inlined_call_operand.vmem [shape: f32[1,128], index: 20, kind: input, shape index: {}]
  %s21 = inlined_call_operand.vmem [shape: f32[16,128], index: 21, kind: output, shape index: {0}]
  %s22 = inlined_call_operand.vmem [shape: f32[16,128], index: 22, kind: output, shape index: {1}]
  %23 = xla_tuple %s21, %s22
  %s24 = sld [smem:[#allocation0]]
  $region102: #{vit_forward.1} parent=0
    _
  %s26 = ssub.s32 1, %s24
  %s27 = scalar_select 0, %s26, %s24
  // Predicated region
  $region2: #{vit_forward.1} parent=0 // pred_check
    _
  $region3: #{vit_forward.1} parent=0 // pred_check_branch
    %29 = sbr.rel (0) target = $region5
  $region4: #{vit_forward.1} parent=0 // pred_region
    _
  $region5: #{vit_forward.1} parent=0 // pred_fallthru
    _
  // Predicated region
  $region6: #{vit_forward.1} parent=0 // pred_check
    _
  $region7: #{vit_forward.1} parent=0 // pred_check_branch
    %31 = sbr.rel (0) target = $region9
  $region8: #{vit_forward.1} parent=0 // pred_region
    _
  $region9: #{vit_forward.1} parent=0 // pred_fallthru
    _
  // Predicated region
  $region10: #{vit_forward.1} parent=0 // pred_check
    _
  $region11: #{vit_forward.1} parent=0 // pred_check_branch
    %33 = sbr.rel (0) target = $region13
  $region12: #{vit_forward.1} parent=0 // pred_region
    _
  $region13: #{vit_forward.1} parent=0 // pred_fallthru
    _
  // Predicated region
  $region14: #{vit_forward.1} parent=0 // pred_check
    _
  $region15: #{vit_forward.1} parent=0 // pred_check_branch
    %35 = sbr.rel (0) target = $region17
  $region16: #{vit_forward.1} parent=0 // pred_region
    _
  $region17: #{vit_forward.1} parent=0 // pred_fallthru
    _
  // Predicated region
  $region18: #{vit_forward.1} parent=0 // pred_check
    _
  $region19: #{vit_forward.1} parent=0 // pred_check_branch
    %37 = sbr.rel (0) target = $region21
  $region20: #{vit_forward.1} parent=0 // pred_region
    _
  $region21: #{vit_forward.1} parent=0 // pred_fallthru
    _
  // Predicated region
  $region22: #{vit_forward.1} parent=0 // pred_check
    _
  $region23: #{vit_forward.1} parent=0 // pred_check_branch
    %39 = sbr.rel (0) target = $region25
  $region24: #{vit_forward.1} parent=0 // pred_region
    _
  $region25: #{vit_forward.1} parent=0 // pred_fallthru
    _
  // Predicated region
  $region26: #{vit_forward.1} parent=0 // pred_check
    _
  $region27: #{vit_forward.1} parent=0 // pred_check_branch
    %41 = sbr.rel (0) target = $region29
  $region28: #{vit_forward.1} parent=0 // pred_region
    _
  $region29: #{vit_forward.1} parent=0 // pred_fallthru
    _
  // Predicated region
  $region30: #{vit_forward.1} parent=0 // pred_check
    _
  $region31: #{vit_forward.1} parent=0 // pred_check_branch
    %43 = sbr.rel (0) target = $region33
  $region32: #{vit_forward.1} parent=0 // pred_region
    _
  $region33: #{vit_forward.1} parent=0 // pred_fallthru
    _
  // Predicated region
  $region34: #{vit_forward.1} parent=0 // pred_check
    _
  $region35: #{vit_forward.1} parent=0 // pred_check_branch
    %45 = sbr.rel (0) target = $region37
  $region36: #{vit_forward.1} parent=0 // pred_region
    _
  $region37: #{vit_forward.1} parent=0 // pred_fallthru
    _
  // Predicated region
  $region38: #{vit_forward.1} parent=0 // pred_check
    _
  $region39: #{vit_forward.1} parent=0 // pred_check_branch
    %47 = sbr.rel (0) target = $region41
  $region40: #{vit_forward.1} parent=0 // pred_region
    _
  $region41: #{vit_forward.1} parent=0 // pred_fallthru
    _
  // Predicated region
  $region42: #{vit_forward.1} parent=0 // pred_check
    _
  $region43: #{vit_forward.1} parent=0 // pred_check_branch
    %49 = sbr.rel (0) target = $region45
  $region44: #{vit_forward.1} parent=0 // pred_region
    _
  $region45: #{vit_forward.1} parent=0 // pred_fallthru
    _
  // Predicated region
  $region46: #{vit_forward.1} parent=0 // pred_check
    _
  $region47: #{vit_forward.1} parent=0 // pred_check_branch
    %51 = sbr.rel (0) target = $region49
  $region48: #{vit_forward.1} parent=0 // pred_region
    _
  $region49: #{vit_forward.1} parent=0 // pred_fallthru
    _
  // Predicated region
  $region50: #{vit_forward.1} parent=0 // pred_check
    _
  $region51: #{vit_forward.1} parent=0 // pred_check_branch
    %53 = sbr.rel (0) target = $region53
  $region52: #{vit_forward.1} parent=0 // pred_region
    _
  $region53: #{vit_forward.1} parent=0 // pred_fallthru
    _
  // Predicated region
  $region54: #{vit_forward.1} parent=0 // pred_check
    _
  $region55: #{vit_forward.1} parent=0 // pred_check_branch
    %55 = sbr.rel (0) target = $region57
  $region56: #{vit_forward.1} parent=0 // pred_region
    _
  $region57: #{vit_forward.1} parent=0 // pred_fallthru
    _
  // Predicated region
  $region58: #{vit_forward.1} parent=0 // pred_check
    _
  $region59: #{vit_forward.1} parent=0 // pred_check_branch
    %57 = sbr.rel (0) target = $region61
  $region60: #{vit_forward.1} parent=0 // pred_region
    _
  $region61: #{vit_forward.1} parent=0 // pred_fallthru
    _
  // Predicated region
  $region62: #{vit_forward.1} parent=0 // pred_check
    _
  $region63: #{vit_forward.1} parent=0 // pred_check_branch
    %59 = sbr.rel (0) target = $region65
  $region64: #{vit_forward.1} parent=0 // pred_region
    _
  $region65: #{vit_forward.1} parent=0 // pred_fallthru
    _
  // Predicated region
  $region66: #{vit_forward.1} parent=0 // pred_check
    _
  $region67: #{vit_forward.1} parent=0 // pred_check_branch
    %61 = sbr.rel (0) target = $region69
  $region68: #{vit_forward.1} parent=0 // pred_region
    _
  $region69: #{vit_forward.1} parent=0 // pred_fallthru
    _
  // Predicated region
  $region70: #{vit_forward.1} parent=0 // pred_check
    _
  $region71: #{vit_forward.1} parent=0 // pred_check_branch
    %63 = sbr.rel (0) target = $region73
  $region72: #{vit_forward.1} parent=0 // pred_region
    _
  $region73: #{vit_forward.1} parent=0 // pred_fallthru
    _
  // Predicated region
  $region74: #{vit_forward.1} parent=0 // pred_check
    _
  $region75: #{vit_forward.1} parent=0 // pred_check_branch
    %65 = sbr.rel (0) target = $region77
  $region76: #{vit_forward.1} parent=0 // pred_region
    _
  $region77: #{vit_forward.1} parent=0 // pred_fallthru
    _
  // Predicated region
  $region78: #{vit_forward.1} parent=0 // pred_check
    _
  $region79: #{vit_forward.1} parent=0 // pred_check_branch
    %67 = sbr.rel (0) target = $region81
  $region80: #{vit_forward.1} parent=0 // pred_region
    _
  $region81: #{vit_forward.1} parent=0 // pred_fallthru
    _
  // Predicated region
  $region82: #{vit_forward.1} parent=0 // pred_check
    _
  $region83: #{vit_forward.1} parent=0 // pred_check_branch
    %69 = sbr.rel (0) target = $region85
  $region84: #{vit_forward.1} parent=0 // pred_region
    _
  $region85: #{vit_forward.1} parent=0 // pred_fallthru
    _
  %v71 = vld [vmem:[%s2] sm:$0xff]
  %v72 = vld [vmem:[%s2 + $0x8] sm:$0xff]
  %v73 = vld [vmem:[%s0] sm:$0xff]
  %v74 = vld [vmem:[%s0 + $0x8] sm:$0xff]
  %v75 = vld [vmem:[%s0 + $0x10] sm:$0xff]
  %v76 = vld [vmem:[%s0 + $0x18] sm:$0xff]
  %v77 = vld [vmem:[%s0 + $0x20] sm:$0xff]
  %v78 = vld [vmem:[%s0 + $0x28] sm:$0xff]
  %v79 = vld [vmem:[%s4] sm:$0xf]
  %v80 = vld [vmem:[%s4 + $0x4] sm:$0xf]
  %v81 = vld [vmem:[%s4 + $0x8] sm:$0xf]
  %v82 = vld [vmem:[%s4 + $0xc] sm:$0xf]
  %v83 = vld [vmem:[%s4 + $0x10] sm:$0xf]
  %v84 = vld [vmem:[%s4 + $0x14] sm:$0xf]
  %v85 = vld [vmem:[%s4 + $0x18] sm:$0xf]
  %v86 = vld [vmem:[%s4 + $0x1c] sm:$0xf]
  %v87 = vld [vmem:[%s4 + $0x20] sm:$0xf]
  %v88 = vld [vmem:[%s4 + $0x24] sm:$0xf]
  %v89 = vld [vmem:[%s4 + $0x28] sm:$0xf]
  %v90 = vld [vmem:[%s4 + $0x2c] sm:$0xf]
  %v91 = vld [vmem:[%s4 + $0x30] sm:$0xf]
  %v92 = vld [vmem:[%s4 + $0x34] sm:$0xf]
  %v93 = vld [vmem:[%s4 + $0x38] sm:$0xf]
  %v94 = vld [vmem:[%s4 + $0x3c] sm:$0xf]
  %v95 = vld [vmem:[%s4 + $0x40] sm:$0xf]
  %v96 = vld [vmem:[%s4 + $0x44] sm:$0xf]
  %v97 = vld [vmem:[%s4 + $0x48] sm:$0xf]
  %v98 = vld [vmem:[%s4 + $0x4c] sm:$0xf]
  %v99 = vld [vmem:[%s4 + $0x50] sm:$0xf]
  %v100 = vld [vmem:[%s4 + $0x54] sm:$0xf]
  %v101 = vld [vmem:[%s4 + $0x58] sm:$0xf]
  %v102 = vld [vmem:[%s4 + $0x5c] sm:$0xf]
  %v103 = vld [vmem:[%s4 + $0x60] sm:$0xf]
  %v104 = vld [vmem:[%s4 + $0x64] sm:$0xf]
  %v105 = vld [vmem:[%s4 + $0x68] sm:$0xf]
  %v106 = vld [vmem:[%s4 + $0x6c] sm:$0xf]
  %v107 = vld [vmem:[%s4 + $0x70] sm:$0xf]
  %v108 = vld [vmem:[%s4 + $0x74] sm:$0xf]
  %v109 = vld [vmem:[%s4 + $0x78] sm:$0xf]
  %v110 = vld [vmem:[%s4 + $0x7c] sm:$0xf]
  %v111 = vld [vmem:[%s4 + $0x80] sm:$0xf]
  %v112 = vld [vmem:[%s4 + $0x84] sm:$0xf]
  %v113 = vld [vmem:[%s4 + $0x88] sm:$0xf]
  %v114 = vld [vmem:[%s4 + $0x8c] sm:$0xf]
  %v115 = vld [vmem:[%s4 + $0x90] sm:$0xf]
  %v116 = vld [vmem:[%s4 + $0x94] sm:$0xf]
  %v117 = vld [vmem:[%s4 + $0x98] sm:$0xf]
  %v118 = vld [vmem:[%s4 + $0x9c] sm:$0xf]
  %v119 = vld [vmem:[%s4 + $0xa0] sm:$0xf]
  %v120 = vld [vmem:[%s4 + $0xa4] sm:$0xf]
  %v121 = vld [vmem:[%s4 + $0xa8] sm:$0xf]
  %v122 = vld [vmem:[%s4 + $0xac] sm:$0xf]
  %v123 = vld [vmem:[%s4 + $0xb0] sm:$0xf]
  %v124 = vld [vmem:[%s4 + $0xb4] sm:$0xf]
  %v125 = vld [vmem:[%s4 + $0xb8] sm:$0xf]
  %v126 = vld [vmem:[%s4 + $0xbc] sm:$0xf]
  %v127 = vld [vmem:[%s4 + $0xc0] sm:$0xf]
  %v128 = vld [vmem:[%s4 + $0xc4] sm:$0xf]
  %v129 = vld [vmem:[%s4 + $0xc8] sm:$0xf]
  %v130 = vld [vmem:[%s4 + $0xcc] sm:$0xf]
  %v131 = vld [vmem:[%s4 + $0xd0] sm:$0xf]
  %v132 = vld [vmem:[%s4 + $0xd4] sm:$0xf]
  %v133 = vld [vmem:[%s4 + $0xd8] sm:$0xf]
  %v134 = vld [vmem:[%s4 + $0xdc] sm:$0xf]
  %v135 = vld [vmem:[%s4 + $0xe0] sm:$0xf]
  %v136 = vld [vmem:[%s4 + $0xe4] sm:$0xf]
  %v137 = vld [vmem:[%s4 + $0xe8] sm:$0xf]
  %v138 = vld [vmem:[%s4 + $0xec] sm:$0xf]
  %v139 = vld [vmem:[%s4 + $0xf0] sm:$0xf]
  %v140 = vld [vmem:[%s4 + $0xf4] sm:$0xf]
  %v141 = vld [vmem:[%s4 + $0xf8] sm:$0xf]
  %v142 = vld [vmem:[%s4 + $0xfc] sm:$0xf]
  %v143 = vld [vmem:[%s4 + $0x100] sm:$0xf]
  %v144 = vld [vmem:[%s4 + $0x104] sm:$0xf]
  %v145 = vld [vmem:[%s4 + $0x108] sm:$0xf]
  %v146 = vld [vmem:[%s4 + $0x10c] sm:$0xf]
  %v147 = vld [vmem:[%s4 + $0x110] sm:$0xf]
  %v148 = vld [vmem:[%s4 + $0x114] sm:$0xf]
  %v149 = vld [vmem:[%s4 + $0x118] sm:$0xf]
  %v150 = vld [vmem:[%s4 + $0x11c] sm:$0xf]
  %v151 = vld [vmem:[%s4 + $0x120] sm:$0xf]
  %v152 = vld [vmem:[%s4 + $0x124] sm:$0xf]
  %v153 = vld [vmem:[%s4 + $0x128] sm:$0xf]
  %v154 = vld [vmem:[%s4 + $0x12c] sm:$0xf]
  %v155 = vld [vmem:[%s4 + $0x130] sm:$0xf]
  %v156 = vld [vmem:[%s4 + $0x134] sm:$0xf]
  %v157 = vld [vmem:[%s4 + $0x138] sm:$0xf]
  %v158 = vld [vmem:[%s4 + $0x13c] sm:$0xf]
  %v159 = vld [vmem:[%s4 + $0x140] sm:$0xf]
  %v160 = vld [vmem:[%s4 + $0x144] sm:$0xf]
  %v161 = vld [vmem:[%s4 + $0x148] sm:$0xf]
  %v162 = vld [vmem:[%s4 + $0x14c] sm:$0xf]
  %v163 = vld [vmem:[%s4 + $0x150] sm:$0xf]
  %v164 = vld [vmem:[%s4 + $0x154] sm:$0xf]
  %v165 = vld [vmem:[%s4 + $0x158] sm:$0xf]
  %v166 = vld [vmem:[%s4 + $0x15c] sm:$0xf]
  %v167 = vld [vmem:[%s4 + $0x160] sm:$0xf]
  %v168 = vld [vmem:[%s4 + $0x164] sm:$0xf]
  %v169 = vld [vmem:[%s4 + $0x168] sm:$0xf]
  %v170 = vld [vmem:[%s4 + $0x16c] sm:$0xf]
  %v171 = vld [vmem:[%s4 + $0x170] sm:$0xf]
  %v172 = vld [vmem:[%s4 + $0x174] sm:$0xf]
  %v173 = vld [vmem:[%s4 + $0x178] sm:$0xf]
  %v174 = vld [vmem:[%s4 + $0x17c] sm:$0xf]
  %v175 = vld [vmem:[%s1] sm:$0xff]
  %v176 = vld [vmem:[%s1 + $0x8] sm:$0xff]
  %v183 = vunpack.c.l.b16 %v73
  %v184 = vunpack.c.h.b16 %v73
  %v185 = vunpack.c.l.b16 %v74
  %v186 = vunpack.c.h.b16 %v74
  %v187 = vunpack.c.l.b16 %v75
  %v188 = vunpack.c.h.b16 %v75
  %v189 = vunpack.c.l.b16 %v76
  %v190 = vunpack.c.h.b16 %v76
  %v191 = vunpack.c.l.b16 %v77
  %v192 = vunpack.c.h.b16 %v77
  %v193 = vunpack.c.l.b16 %v78
  %v194 = vunpack.c.h.b16 %v78
  %v195 = vpack.c.b16 %v189, %v183
  %v196 = vpack.c.b16 %v190, %v184
  %v197 = vpack.c.b16 %v191, %v185
  %v198 = vpack.c.b16 %v192, %v186
  %v199 = vpack.c.b16 %v193, %v187
  %v200 = vpack.c.b16 %v194, %v188
  %v303 = vunpack.c.l.b16 %v79
  %v304 = vunpack.c.l.b16 %v80
  %v305 = vunpack.c.l.b16 %v81
  %v306 = vunpack.c.l.b16 %v82
  %v307 = vunpack.c.l.b16 %v83
  %v308 = vunpack.c.l.b16 %v84
  %v309 = vunpack.c.l.b16 %v85
  %v310 = vunpack.c.l.b16 %v86
  %v311 = vunpack.c.l.b16 %v87
  %v312 = vunpack.c.l.b16 %v88
  %v313 = vunpack.c.l.b16 %v89
  %v314 = vunpack.c.l.b16 %v90
  %v315 = vunpack.c.l.b16 %v91
  %v316 = vunpack.c.l.b16 %v92
  %v317 = vunpack.c.l.b16 %v93
  %v318 = vunpack.c.l.b16 %v94
  %v319 = vunpack.c.l.b16 %v95
  %v320 = vunpack.c.l.b16 %v96
  %v321 = vunpack.c.l.b16 %v97
  %v322 = vunpack.c.l.b16 %v98
  %v323 = vunpack.c.l.b16 %v99
  %v324 = vunpack.c.l.b16 %v100
  %v325 = vunpack.c.l.b16 %v101
  %v326 = vunpack.c.l.b16 %v102
  %v327 = vunpack.c.l.b16 %v103
  %v328 = vunpack.c.l.b16 %v104
  %v329 = vunpack.c.l.b16 %v105
  %v330 = vunpack.c.l.b16 %v106
  %v331 = vunpack.c.l.b16 %v107
  %v332 = vunpack.c.l.b16 %v108
  %v333 = vunpack.c.l.b16 %v109
  %v334 = vunpack.c.l.b16 %v110
  %v335 = vunpack.c.l.b16 %v111
  %v336 = vunpack.c.l.b16 %v112
  %v337 = vunpack.c.l.b16 %v113
  %v338 = vunpack.c.l.b16 %v114
  %v339 = vunpack.c.l.b16 %v115
  %v340 = vunpack.c.l.b16 %v116
  %v341 = vunpack.c.l.b16 %v117
  %v342 = vunpack.c.l.b16 %v118
  %v343 = vunpack.c.l.b16 %v119
  %v344 = vunpack.c.l.b16 %v120
  %v345 = vunpack.c.l.b16 %v121
  %v346 = vunpack.c.l.b16 %v122
  %v347 = vunpack.c.l.b16 %v123
  %v348 = vunpack.c.l.b16 %v124
  %v349 = vunpack.c.l.b16 %v125
  %v350 = vunpack.c.l.b16 %v126
  %v351 = vunpack.c.l.b16 %v127
  %v352 = vunpack.c.l.b16 %v128
  %v353 = vunpack.c.l.b16 %v129
  %v354 = vunpack.c.l.b16 %v130
  %v355 = vunpack.c.l.b16 %v131
  %v356 = vunpack.c.l.b16 %v132
  %v357 = vunpack.c.l.b16 %v133
  %v358 = vunpack.c.l.b16 %v134
  %v359 = vunpack.c.l.b16 %v135
  %v360 = vunpack.c.l.b16 %v136
  %v361 = vunpack.c.l.b16 %v137
  %v362 = vunpack.c.l.b16 %v138
  %v363 = vunpack.c.l.b16 %v139
  %v364 = vunpack.c.l.b16 %v140
  %v365 = vunpack.c.l.b16 %v141
  %v366 = vunpack.c.l.b16 %v142
  %v367 = vunpack.c.l.b16 %v143
  %v368 = vunpack.c.l.b16 %v144
  %v369 = vunpack.c.l.b16 %v145
  %v370 = vunpack.c.l.b16 %v146
  %v371 = vunpack.c.l.b16 %v147
  %v372 = vunpack.c.l.b16 %v148
  %v373 = vunpack.c.l.b16 %v149
  %v374 = vunpack.c.l.b16 %v150
  %v375 = vunpack.c.l.b16 %v151
  %v376 = vunpack.c.l.b16 %v152
  %v377 = vunpack.c.l.b16 %v153
  %v378 = vunpack.c.l.b16 %v154
  %v379 = vunpack.c.l.b16 %v155
  %v380 = vunpack.c.l.b16 %v156
  %v381 = vunpack.c.l.b16 %v157
  %v382 = vunpack.c.l.b16 %v158
  %v383 = vunpack.c.l.b16 %v159
  %v384 = vunpack.c.l.b16 %v160
  %v385 = vunpack.c.l.b16 %v161
  %v386 = vunpack.c.l.b16 %v162
  %v387 = vunpack.c.l.b16 %v163
  %v388 = vunpack.c.l.b16 %v164
  %v389 = vunpack.c.l.b16 %v165
  %v390 = vunpack.c.l.b16 %v166
  %v391 = vunpack.c.l.b16 %v167
  %v392 = vunpack.c.l.b16 %v168
  %v393 = vunpack.c.l.b16 %v169
  %v394 = vunpack.c.l.b16 %v170
  %v395 = vunpack.c.l.b16 %v171
  %v396 = vunpack.c.l.b16 %v172
  %v397 = vunpack.c.l.b16 %v173
  %v398 = vunpack.c.l.b16 %v174
  %v399 = vpack.c.b16 %v304, %v303
  %v400 = vpack.c.b16 %v306, %v305
  %v401 = vpack.c.b16 %v308, %v307
  %v402 = vpack.c.b16 %v310, %v309
  %v403 = vpack.c.b16 %v312, %v311
  %v404 = vpack.c.b16 %v314, %v313
  %v405 = vpack.c.b16 %v316, %v315
  %v406 = vpack.c.b16 %v318, %v317
  %v407 = vpack.c.b16 %v320, %v319
  %v408 = vpack.c.b16 %v322, %v321
  %v409 = vpack.c.b16 %v324, %v323
  %v410 = vpack.c.b16 %v326, %v325
  %v411 = vpack.c.b16 %v328, %v327
  %v412 = vpack.c.b16 %v330, %v329
  %v413 = vpack.c.b16 %v332, %v331
  %v414 = vpack.c.b16 %v334, %v333
  %v415 = vpack.c.b16 %v336, %v335
  %v416 = vpack.c.b16 %v338, %v337
  %v417 = vpack.c.b16 %v340, %v339
  %v418 = vpack.c.b16 %v342, %v341
  %v419 = vpack.c.b16 %v344, %v343
  %v420 = vpack.c.b16 %v346, %v345
  %v421 = vpack.c.b16 %v348, %v347
  %v422 = vpack.c.b16 %v350, %v349
  %v423 = vpack.c.b16 %v352, %v351
  %v424 = vpack.c.b16 %v354, %v353
  %v425 = vpack.c.b16 %v356, %v355
  %v426 = vpack.c.b16 %v358, %v357
  %v427 = vpack.c.b16 %v360, %v359
  %v428 = vpack.c.b16 %v362, %v361
  %v429 = vpack.c.b16 %v364, %v363
  %v430 = vpack.c.b16 %v366, %v365
  %v431 = vpack.c.b16 %v368, %v367
  %v432 = vpack.c.b16 %v370, %v369
  %v433 = vpack.c.b16 %v372, %v371
  %v434 = vpack.c.b16 %v374, %v373
  %v435 = vpack.c.b16 %v376, %v375
  %v436 = vpack.c.b16 %v378, %v377
  %v437 = vpack.c.b16 %v380, %v379
  %v438 = vpack.c.b16 %v382, %v381
  %v439 = vpack.c.b16 %v384, %v383
  %v440 = vpack.c.b16 %v386, %v385
  %v441 = vpack.c.b16 %v388, %v387
  %v442 = vpack.c.b16 %v390, %v389
  %v443 = vpack.c.b16 %v392, %v391
  %v444 = vpack.c.b16 %v394, %v393
  %v445 = vpack.c.b16 %v396, %v395
  %v446 = vpack.c.b16 %v398, %v397
  %495 = vmatprep.subr.bf16.mxu0 0
  %496 = vmatpush1.bf16.msra.mxu0 %v399
  %497 = vmatprep.subr.bf16.mxu0 0
  %498 = vmatpush1.bf16.msra.mxu0 %v400
  %499 = vmatprep.subr.bf16.mxu0 0
  %500 = vmatpush1.bf16.msra.mxu0 %v401
  %501 = vmatprep.subr.bf16.mxu0 0
  %502 = vmatpush1.bf16.msra.mxu0 %v402
  %503 = vmatprep.subr.bf16.mxu0 0
  %504 = vmatpush1.bf16.msra.mxu0 %v403
  %505 = vmatprep.subr.bf16.mxu0 0
  %506 = vmatpush1.bf16.msra.mxu0 %v404
  %507 = vmatprep.subr.bf16.mxu0 0
  %508 = vmatpush1.bf16.msra.mxu0 %v405
  %509 = vmatprep.subr.bf16.mxu0 0
  %510 = vmatpush1.bf16.msra.mxu0 %v406
  %511 = vmatprep.subr.bf16.mxu0 0
  %512 = vmatpush1.bf16.msra.mxu0 %v407
  %513 = vmatprep.subr.bf16.mxu0 0
  %514 = vmatpush1.bf16.msra.mxu0 %v408
  %515 = vmatprep.subr.bf16.mxu0 0
  %516 = vmatpush1.bf16.msra.mxu0 %v409
  %517 = vmatprep.subr.bf16.mxu0 0
  %518 = vmatpush1.bf16.msra.mxu0 %v410
  %519 = vmatprep.subr.bf16.mxu0 0
  %520 = vmatpush1.bf16.msra.mxu0 %v411
  %521 = vmatprep.subr.bf16.mxu0 0
  %522 = vmatpush1.bf16.msra.mxu0 %v412
  %523 = vmatprep.subr.bf16.mxu0 0
  %524 = vmatpush1.bf16.msra.mxu0 %v413
  %525 = vmatprep.subr.bf16.mxu0 0
  %526 = vmatpush1.bf16.msra.mxu0 %v414
  %527 = vmatprep.mubr.bf16.mxu0 %v196
  %528 = vmatmul.mubr.bf16.gmra.mrb[0].mxu0 %v195
  %v529 = vpop.f32.mrb[0].mxu0
  %v530 = vadd.f32 %v175, %v529
  %v531 = vpop.f32.mrb[0].mxu0
  %v532 = vpop.f32.mrb[0].mxu0
  %v533 = vadd.f32 %v176, %v532
  %v534 = vpop.f32.mrb[0].mxu0
  %535 = vdwg.mxu0
  %536 = vmatprep.subr.bf16.mxu0 0
  %537 = vmatpush1.bf16.msra.mxu0 %v415
  %538 = vmatprep.subr.bf16.mxu0 0
  %539 = vmatpush1.bf16.msra.mxu0 %v416
  %540 = vmatprep.subr.bf16.mxu0 0
  %541 = vmatpush1.bf16.msra.mxu0 %v417
  %542 = vmatprep.subr.bf16.mxu0 0
  %543 = vmatpush1.bf16.msra.mxu0 %v418
  %544 = vmatprep.subr.bf16.mxu0 0
  %545 = vmatpush1.bf16.msra.mxu0 %v419
  %546 = vmatprep.subr.bf16.mxu0 0
  %547 = vmatpush1.bf16.msra.mxu0 %v420
  %548 = vmatprep.subr.bf16.mxu0 0
  %549 = vmatpush1.bf16.msra.mxu0 %v421
  %550 = vmatprep.subr.bf16.mxu0 0
  %551 = vmatpush1.bf16.msra.mxu0 %v422
  %552 = vmatprep.subr.bf16.mxu0 0
  %553 = vmatpush1.bf16.msra.mxu0 %v423
  %554 = vmatprep.subr.bf16.mxu0 0
  %555 = vmatpush1.bf16.msra.mxu0 %v424
  %556 = vmatprep.subr.bf16.mxu0 0
  %557 = vmatpush1.bf16.msra.mxu0 %v425
  %558 = vmatprep.subr.bf16.mxu0 0
  %559 = vmatpush1.bf16.msra.mxu0 %v426
  %560 = vmatprep.subr.bf16.mxu0 0
  %561 = vmatpush1.bf16.msra.mxu0 %v427
  %562 = vmatprep.subr.bf16.mxu0 0
  %563 = vmatpush1.bf16.msra.mxu0 %v428
  %564 = vmatprep.subr.bf16.mxu0 0
  %565 = vmatpush1.bf16.msra.mxu0 %v429
  %566 = vmatprep.subr.bf16.mxu0 0
  %567 = vmatpush1.bf16.msra.mxu0 %v430
  %568 = vmatprep.mubr.bf16.mxu0 %v198
  %569 = vmatmul.mubr.bf16.gmra.mrb[0].mxu0 %v197
  %v570 = vpop.f32.mrb[0].mxu0
  %v571 = vadd.f32 %v530, %v570
  %v572 = vpop.f32.mrb[0].mxu0
  %v573 = vpop.f32.mrb[0].mxu0
  %v574 = vadd.f32 %v533, %v573
  %v575 = vpop.f32.mrb[0].mxu0
  %576 = vdwg.mxu0
  %577 = vmatprep.subr.bf16.mxu0 0
  %578 = vmatpush1.bf16.msra.mxu0 %v431
  %579 = vmatprep.subr.bf16.mxu0 0
  %580 = vmatpush1.bf16.msra.mxu0 %v432
  %581 = vmatprep.subr.bf16.mxu0 0
  %582 = vmatpush1.bf16.msra.mxu0 %v433
  %583 = vmatprep.subr.bf16.mxu0 0
  %584 = vmatpush1.bf16.msra.mxu0 %v434
  %585 = vmatprep.subr.bf16.mxu0 0
  %586 = vmatpush1.bf16.msra.mxu0 %v435
  %587 = vmatprep.subr.bf16.mxu0 0
  %588 = vmatpush1.bf16.msra.mxu0 %v436
  %589 = vmatprep.subr.bf16.mxu0 0
  %590 = vmatpush1.bf16.msra.mxu0 %v437
  %591 = vmatprep.subr.bf16.mxu0 0
  %592 = vmatpush1.bf16.msra.mxu0 %v438
  %593 = vmatprep.subr.bf16.mxu0 0
  %594 = vmatpush1.bf16.msra.mxu0 %v439
  %595 = vmatprep.subr.bf16.mxu0 0
  %596 = vmatpush1.bf16.msra.mxu0 %v440
  %597 = vmatprep.subr.bf16.mxu0 0
  %598 = vmatpush1.bf16.msra.mxu0 %v441
  %599 = vmatprep.subr.bf16.mxu0 0
  %600 = vmatpush1.bf16.msra.mxu0 %v442
  %601 = vmatprep.subr.bf16.mxu0 0
  %602 = vmatpush1.bf16.msra.mxu0 %v443
  %603 = vmatprep.subr.bf16.mxu0 0
  %604 = vmatpush1.bf16.msra.mxu0 %v444
  %605 = vmatprep.subr.bf16.mxu0 0
  %606 = vmatpush1.bf16.msra.mxu0 %v445
  %607 = vmatprep.subr.bf16.mxu0 0
  %608 = vmatpush1.bf16.msra.mxu0 %v446
  %609 = vmatprep.mubr.bf16.mxu0 %v200
  %610 = vmatmul.mubr.bf16.gmra.mrb[0].mxu0 %v199
  %v611 = vpop.f32.mrb[0].mxu0
  %v612 = vadd.f32 %v571, %v611
  %v613 = vpop.f32.mrb[0].mxu0
  %v614 = vpop.f32.mrb[0].mxu0
  %v615 = vadd.f32 %v574, %v614
  %v616 = vpop.f32.mrb[0].mxu0
  %617 = vdwg.mxu0
  %v618 = vld [vmem:[%s5] sm:$0x1]
  %v619 = vld [vmem:[%s6] sm:$0x1]
  %620 = vadd.xlane.f32.xlu0 %v612
  %v621 = vpop.xlane.xlu0 %620
  %622 = vadd.xlane.f32.xlu0 %v615
  %v623 = vpop.xlane.xlu0 %622
  %v624 = vrcp.pop 128.0
  %v625 = vmul.f32 %v621, %v624
  %v626 = vmul.f32 %v623, %v624
  %v627 = vsub.f32 %v612, %v625
  %v628 = vsub.f32 %v615, %v626
  %v629 = vmul.f32 %v627, %v627
  %v630 = vmul.f32 %v628, %v628
  %631 = vadd.xlane.f32.xlu0 %v629
  %v632 = vpop.xlane.xlu0 %631
  %633 = vadd.xlane.f32.xlu0 %v630
  %v634 = vpop.xlane.xlu0 %633
  %v635 = vmul.f32 %v632, %v624
  %v636 = vmul.f32 %v634, %v624
  %v637 = vadd.f32 %v635, 1e-06
  %v638 = vadd.f32 %v636, 1e-06
  %v639 = vrsqrt.pop %v637
  %v640 = vrsqrt.pop %v638
  %v641 = vmul.f32 %v627, %v639
  %v642 = vmul.f32 %v628, %v640
  %v644 = vlaneseq
  %v645 = vshrl.u32 %v644, 7
  %v646 = vsub.s32 0, %v645
  %v647 = vrot.slane %v618, %v646
  %v649 = vmul.f32 %v641, %v647
  %v650 = vmul.f32 %v642, %v647
  %v652 = vlaneseq
  %v653 = vshrl.u32 %v652, 7
  %v654 = vsub.s32 0, %v653
  %v655 = vrot.slane %v619, %v654
  %v657 = vadd.f32 %v649, %v655
  %v658 = vadd.f32 %v650, %v655
  %v659 = vld [vmem:[%s7] sm:$0xff]
  %v660 = vld [vmem:[%s7 + $0x8] sm:$0xf]
  %v661 = vld [vmem:[%s7 + $0xc] sm:$0xff]
  %v662 = vld [vmem:[%s7 + $0x14] sm:$0xf]
  %v663 = vld [vmem:[%s7 + $0x18] sm:$0xff]
  %v664 = vld [vmem:[%s7 + $0x20] sm:$0xf]
  %v665 = vld [vmem:[%s7 + $0x24] sm:$0xff]
  %v666 = vld [vmem:[%s7 + $0x2c] sm:$0xf]
  %v667 = vld [vmem:[%s7 + $0x30] sm:$0xff]
  %v668 = vld [vmem:[%s7 + $0x38] sm:$0xf]
  %v669 = vld [vmem:[%s7 + $0x3c] sm:$0xff]
  %v670 = vld [vmem:[%s7 + $0x44] sm:$0xf]
  %v671 = vld [vmem:[%s7 + $0x48] sm:$0xff]
  %v672 = vld [vmem:[%s7 + $0x50] sm:$0xf]
  %v673 = vld [vmem:[%s7 + $0x54] sm:$0xff]
  %v674 = vld [vmem:[%s7 + $0x5c] sm:$0xf]
  %v675 = vld [vmem:[%s7 + $0x60] sm:$0xff]
  %v676 = vld [vmem:[%s7 + $0x68] sm:$0xf]
  %v677 = vld [vmem:[%s7 + $0x6c] sm:$0xff]
  %v678 = vld [vmem:[%s7 + $0x74] sm:$0xf]
  %v679 = vld [vmem:[%s7 + $0x78] sm:$0xff]
  %v680 = vld [vmem:[%s7 + $0x80] sm:$0xf]
  %v681 = vld [vmem:[%s7 + $0x84] sm:$0xff]
  %v682 = vld [vmem:[%s7 + $0x8c] sm:$0xf]
  %v683 = vld [vmem:[%s7 + $0x90] sm:$0xff]
  %v684 = vld [vmem:[%s7 + $0x98] sm:$0xf]
  %v685 = vld [vmem:[%s7 + $0x9c] sm:$0xff]
  %v686 = vld [vmem:[%s7 + $0xa4] sm:$0xf]
  %v687 = vld [vmem:[%s7 + $0xa8] sm:$0xff]
  %v688 = vld [vmem:[%s7 + $0xb0] sm:$0xf]
  %v689 = vld [vmem:[%s7 + $0xb4] sm:$0xff]
  %v690 = vld [vmem:[%s7 + $0xbc] sm:$0xf]
  %v691 = vpack.c.bf16 %v658, %v657
  %v692 = vld [vmem:[%s8] sm:$0x7]
  %v694 = vlaneseq
  %v695 = vshrl.u32 %v694, 7
  %v696 = vsub.s32 0, %v695
  %v697 = vrot.slane %v692, %v696
  %v698 = vlaneseq
  %v699 = vshrl.u32 %v698, 7
  %v700 = vsub.s32 1, %v699
  %v701 = vrot.slane %v692, %v700
  %v702 = vlaneseq
  %v703 = vshrl.u32 %v702, 7
  %v704 = vsub.s32 2, %v703
  %v705 = vrot.slane %v692, %v704
  %v741 = vunpack.c.l.b16 %v659
  %v742 = vunpack.c.h.b16 %v659
  %v743 = vunpack.c.l.b16 %v660
  %v744 = vunpack.c.l.b16 %v661
  %v745 = vunpack.c.h.b16 %v661
  %v746 = vunpack.c.l.b16 %v662
  %v747 = vunpack.c.l.b16 %v663
  %v748 = vunpack.c.h.b16 %v663
  %v749 = vunpack.c.l.b16 %v664
  %v750 = vunpack.c.l.b16 %v665
  %v751 = vunpack.c.h.b16 %v665
  %v752 = vunpack.c.l.b16 %v666
  %v753 = vunpack.c.l.b16 %v667
  %v754 = vunpack.c.h.b16 %v667
  %v755 = vunpack.c.l.b16 %v668
  %v756 = vunpack.c.l.b16 %v669
  %v757 = vunpack.c.h.b16 %v669
  %v758 = vunpack.c.l.b16 %v670
  %v759 = vunpack.c.l.b16 %v671
  %v760 = vunpack.c.h.b16 %v671
  %v761 = vunpack.c.l.b16 %v672
  %v762 = vunpack.c.l.b16 %v673
  %v763 = vunpack.c.h.b16 %v673
  %v764 = vunpack.c.l.b16 %v674
  %v765 = vunpack.c.l.b16 %v675
  %v766 = vunpack.c.h.b16 %v675
  %v767 = vunpack.c.l.b16 %v676
  %v768 = vunpack.c.l.b16 %v677
  %v769 = vunpack.c.h.b16 %v677
  %v770 = vunpack.c.l.b16 %v678
  %v771 = vunpack.c.l.b16 %v679
  %v772 = vunpack.c.h.b16 %v679
  %v773 = vunpack.c.l.b16 %v680
  %v774 = vunpack.c.l.b16 %v681
  %v775 = vunpack.c.h.b16 %v681
  %v776 = vunpack.c.l.b16 %v682
  %v777 = vunpack.c.l.b16 %v683
  %v778 = vunpack.c.h.b16 %v683
  %v779 = vunpack.c.l.b16 %v684
  %v780 = vunpack.c.l.b16 %v685
  %v781 = vunpack.c.h.b16 %v685
  %v782 = vunpack.c.l.b16 %v686
  %v783 = vunpack.c.l.b16 %v687
  %v784 = vunpack.c.h.b16 %v687
  %v785 = vunpack.c.l.b16 %v688
  %v786 = vunpack.c.l.b16 %v689
  %v787 = vunpack.c.h.b16 %v689
  %v788 = vunpack.c.l.b16 %v690
  %v789 = vpack.c.b16 %v744, %v741
  %v790 = vpack.c.b16 %v745, %v742
  %v791 = vpack.c.b16 %v746, %v743
  %v792 = vpack.c.b16 %v750, %v747
  %v793 = vpack.c.b16 %v751, %v748
  %v794 = vpack.c.b16 %v752, %v749
  %v795 = vpack.c.b16 %v756, %v753
  %v796 = vpack.c.b16 %v757, %v754
  %v797 = vpack.c.b16 %v758, %v755
  %v798 = vpack.c.b16 %v762, %v759
  %v799 = vpack.c.b16 %v763, %v760
  %v800 = vpack.c.b16 %v764, %v761
  %v801 = vpack.c.b16 %v768, %v765
  %v802 = vpack.c.b16 %v769, %v766
  %v803 = vpack.c.b16 %v770, %v767
  %v804 = vpack.c.b16 %v774, %v771
  %v805 = vpack.c.b16 %v775, %v772
  %v806 = vpack.c.b16 %v776, %v773
  %v807 = vpack.c.b16 %v780, %v777
  %v808 = vpack.c.b16 %v781, %v778
  %v809 = vpack.c.b16 %v782, %v779
  %v810 = vpack.c.b16 %v786, %v783
  %v811 = vpack.c.b16 %v787, %v784
  %v812 = vpack.c.b16 %v788, %v785
  %837 = vmatprep.subr.bf16.mxu0 %v790
  %838 = vmatpush1.bf16.msra.mxu0 %v789
  %839 = vmatprep.subr.bf16.mxu0 %v793
  %840 = vmatpush1.bf16.msra.mxu0 %v792
  %841 = vmatprep.subr.bf16.mxu0 %v796
  %842 = vmatpush1.bf16.msra.mxu0 %v795
  %843 = vmatprep.subr.bf16.mxu0 %v799
  %844 = vmatpush1.bf16.msra.mxu0 %v798
  %845 = vmatprep.subr.bf16.mxu0 %v802
  %846 = vmatpush1.bf16.msra.mxu0 %v801
  %847 = vmatprep.subr.bf16.mxu0 %v805
  %848 = vmatpush1.bf16.msra.mxu0 %v804
  %849 = vmatprep.subr.bf16.mxu0 %v808
  %850 = vmatpush1.bf16.msra.mxu0 %v807
  %851 = vmatprep.subr.bf16.mxu0 %v811
  %852 = vmatpush1.bf16.msra.mxu0 %v810
  %853 = vmatprep.subr.bf16.mxu0 0
  %854 = vmatpush1.bf16.msra.mxu0 0
  %855 = vmatprep.subr.bf16.mxu0 0
  %856 = vmatpush1.bf16.msra.mxu0 0
  %857 = vmatprep.subr.bf16.mxu0 0
  %858 = vmatpush1.bf16.msra.mxu0 0
  %859 = vmatprep.subr.bf16.mxu0 0
  %860 = vmatpush1.bf16.msra.mxu0 0
  %861 = vmatprep.subr.bf16.mxu0 0
  %862 = vmatpush1.bf16.msra.mxu0 0
  %863 = vmatprep.subr.bf16.mxu0 0
  %864 = vmatpush1.bf16.msra.mxu0 0
  %865 = vmatprep.subr.bf16.mxu0 0
  %866 = vmatpush1.bf16.msra.mxu0 0
  %867 = vmatprep.subr.bf16.mxu0 0
  %868 = vmatpush1.bf16.msra.mxu0 0
  %869 = vmatprep.mubr.bf16.mxu0 0
  %870 = vmatmul.mubr.bf16.gmra.mrb[0].mxu0 %v691
  %v871 = vpop.f32.mrb[0].mxu0
  %v872 = vadd.f32 %v697, %v871
  %v873 = vpop.f32.mrb[0].mxu0
  %v874 = vadd.f32 %v701, %v873
  %v875 = vpop.f32.mrb[0].mxu0
  %v876 = vadd.f32 %v697, %v875
  %v877 = vpop.f32.mrb[0].mxu0
  %v878 = vadd.f32 %v701, %v877
  %879 = vdwg.mxu0
  %880 = vmatprep.subr.bf16.mxu0 0
  %881 = vmatpush1.bf16.msra.mxu0 %v791
  %882 = vmatprep.subr.bf16.mxu0 0
  %883 = vmatpush1.bf16.msra.mxu0 %v794
  %884 = vmatprep.subr.bf16.mxu0 0
  %885 = vmatpush1.bf16.msra.mxu0 %v797
  %886 = vmatprep.subr.bf16.mxu0 0
  %887 = vmatpush1.bf16.msra.mxu0 %v800
  %888 = vmatprep.subr.bf16.mxu0 0
  %889 = vmatpush1.bf16.msra.mxu0 %v803
  %890 = vmatprep.subr.bf16.mxu0 0
  %891 = vmatpush1.bf16.msra.mxu0 %v806
  %892 = vmatprep.subr.bf16.mxu0 0
  %893 = vmatpush1.bf16.msra.mxu0 %v809
  %894 = vmatprep.subr.bf16.mxu0 0
  %895 = vmatpush1.bf16.msra.mxu0 %v812
  %896 = vmatprep.subr.bf16.mxu0 0
  %897 = vmatpush1.bf16.msra.mxu0 0
  %898 = vmatprep.subr.bf16.mxu0 0
  %899 = vmatpush1.bf16.msra.mxu0 0
  %900 = vmatprep.subr.bf16.mxu0 0
  %901 = vmatpush1.bf16.msra.mxu0 0
  %902 = vmatprep.subr.bf16.mxu0 0
  %903 = vmatpush1.bf16.msra.mxu0 0
  %904 = vmatprep.subr.bf16.mxu0 0
  %905 = vmatpush1.bf16.msra.mxu0 0
  %906 = vmatprep.subr.bf16.mxu0 0
  %907 = vmatpush1.bf16.msra.mxu0 0
  %908 = vmatprep.subr.bf16.mxu0 0
  %909 = vmatpush1.bf16.msra.mxu0 0
  %910 = vmatprep.subr.bf16.mxu0 0
  %911 = vmatpush1.bf16.msra.mxu0 0
  %912 = vmatprep.mubr.bf16.mxu0 0
  %913 = vmatmul.mubr.bf16.gmra.mrb[0].mxu0 %v691
  %v914 = vpop.f32.mrb[0].mxu0
  %v915 = vadd.f32 %v705, %v914
  %v916 = vpop.f32.mrb[0].mxu0
  %v917 = vpop.f32.mrb[0].mxu0
  %v918 = vadd.f32 %v705, %v917
  %v919 = vpop.f32.mrb[0].mxu0
  %920 = vdwg.mxu0
  %v921 = vpack.c.bf16 %v876, %v872
  %v922 = vpack.c.bf16 %v878, %v874
  %v923 = vpack.c.bf16 %v918, %v915
  %vm924 = vcmask 261120
  %v926 = vsel %vm924, %v921, 0
  %v929 = vsel %vm924, %v922, 0
  %931 = vmatprep.subr.bf16.mxu0 0
  %932 = vmatpush1.bf16.xpose.msra.mxu0 %v929
  %933 = vmatprep.subr.bf16.mxu0 0
  %934 = vmatpush1.bf16.xpose.msra.mxu0 0
  %935 = vmatprep.subr.bf16.mxu0 0
  %936 = vmatpush1.bf16.xpose.msra.mxu0 0
  %937 = vmatprep.subr.bf16.mxu0 0
  %938 = vmatpush1.bf16.xpose.msra.mxu0 0
  %939 = vmatprep.subr.bf16.mxu0 0
  %940 = vmatpush1.bf16.xpose.msra.mxu0 0
  %941 = vmatprep.subr.bf16.mxu0 0
  %942 = vmatpush1.bf16.xpose.msra.mxu0 0
  %943 = vmatprep.subr.bf16.mxu0 0
  %944 = vmatpush1.bf16.xpose.msra.mxu0 0
  %945 = vmatprep.subr.bf16.mxu0 0
  %946 = vmatpush1.bf16.xpose.msra.mxu0 0
  %947 = vmatprep.subr.bf16.mxu0 0
  %948 = vmatpush1.bf16.xpose.msra.mxu0 0
  %949 = vmatprep.subr.bf16.mxu0 0
  %950 = vmatpush1.bf16.xpose.msra.mxu0 0
  %951 = vmatprep.subr.bf16.mxu0 0
  %952 = vmatpush1.bf16.xpose.msra.mxu0 0
  %953 = vmatprep.subr.bf16.mxu0 0
  %954 = vmatpush1.bf16.xpose.msra.mxu0 0
  %955 = vmatprep.subr.bf16.mxu0 0
  %956 = vmatpush1.bf16.xpose.msra.mxu0 0
  %957 = vmatprep.subr.bf16.mxu0 0
  %958 = vmatpush1.bf16.xpose.msra.mxu0 0
  %959 = vmatprep.subr.bf16.mxu0 0
  %960 = vmatpush1.bf16.xpose.msra.mxu0 0
  %961 = vmatprep.subr.bf16.mxu0 0
  %962 = vmatpush1.bf16.xpose.msra.mxu0 0
  %963 = vmatprep.mubr.bf16.mxu0 0
  %964 = vmatmul.mubr.bf16.gmra.mrb[0].mxu0 %v926
  %v965 = vpop.f32.mrb[0].mxu0
  %v966 = vadd.f32 0.0, %v965
  %v967 = vpop.f32.mrb[0].mxu0
  %v968 = vpop.f32.mrb[0].mxu0
  %v969 = vadd.f32 0.0, %v968
  %v970 = vpop.f32.mrb[0].mxu0
  %971 = vdwg.mxu0
  %v972 = vmul.f32 %v966, 0.17677669
  %v973 = vmul.f32 %v969, 0.17677669
  %v974 = vadd.f32 %v972, %v71
  %v975 = vadd.f32 %v973, %v72
  %vm976 = vcmask 130048
  %v977 = vsel %vm976, %v974, -inf
  %978 = vmax.xlane.f32.xlu0 %v977
  %v979 = vpop.xlane.xlu0 %978
  %v980 = vsel %vm976, %v975, -inf
  %981 = vmax.xlane.f32.xlu0 %v980
  %v982 = vpop.xlane.xlu0 %981
  %v983 = vsub.f32 %v974, %v979
  %v984 = vsub.f32 %v975, %v982
  %v985 = vmul.f32 %v983, 1.442695
  %v986 = vpow.pop %v985
  %v987 = vmul.f32 %v984, 1.442695
  %v988 = vpow.pop %v987
  %v989 = vsel %vm976, %v986, 0.0
  %990 = vadd.xlane.f32.xlu0 %v989
  %v991 = vpop.xlane.xlu0 %990
  %v992 = vsel %vm976, %v988, 0.0
  %993 = vadd.xlane.f32.xlu0 %v992
  %v994 = vpop.xlane.xlu0 %993
  %v995 = vrcp.pop %v991
  %v996 = vrcp.pop %v994
  %v997 = vmul.f32 %v986, %v995
  %v998 = vmul.f32 %v988, %v996
  %v999 = vpack.c.bf16 %v998, %v997
  %v1001 = vsel %vm976, %v999, 0
  %1003 = vmatprep.subr.bf16.mxu0 0
  %1004 = vmatpush1.bf16.msra.mxu0 %v923
  %1005 = vmatprep.subr.bf16.mxu0 0
  %1006 = vmatpush1.bf16.msra.mxu0 0
  %1007 = vmatprep.subr.bf16.mxu0 0
  %1008 = vmatpush1.bf16.msra.mxu0 0
  %1009 = vmatprep.subr.bf16.mxu0 0
  %1010 = vmatpush1.bf16.msra.mxu0 0
  %1011 = vmatprep.subr.bf16.mxu0 0
  %1012 = vmatpush1.bf16.msra.mxu0 0
  %1013 = vmatprep.subr.bf16.mxu0 0
  %1014 = vmatpush1.bf16.msra.mxu0 0
  %1015 = vmatprep.subr.bf16.mxu0 0
  %1016 = vmatpush1.bf16.msra.mxu0 0
  %1017 = vmatprep.subr.bf16.mxu0 0
  %1018 = vmatpush1.bf16.msra.mxu0 0
  %1019 = vmatprep.subr.bf16.mxu0 0
  %1020 = vmatpush1.bf16.msra.mxu0 0
  %1021 = vmatprep.subr.bf16.mxu0 0
  %1022 = vmatpush1.bf16.msra.mxu0 0
  %1023 = vmatprep.subr.bf16.mxu0 0
  %1024 = vmatpush1.bf16.msra.mxu0 0
  %1025 = vmatprep.subr.bf16.mxu0 0
  %1026 = vmatpush1.bf16.msra.mxu0 0
  %1027 = vmatprep.subr.bf16.mxu0 0
  %1028 = vmatpush1.bf16.msra.mxu0 0
  %1029 = vmatprep.subr.bf16.mxu0 0
  %1030 = vmatpush1.bf16.msra.mxu0 0
  %1031 = vmatprep.subr.bf16.mxu0 0
  %1032 = vmatpush1.bf16.msra.mxu0 0
  %1033 = vmatprep.subr.bf16.mxu0 0
  %1034 = vmatpush1.bf16.msra.mxu0 0
  %1035 = vmatprep.mubr.bf16.mxu0 0
  %1036 = vmatmul.mubr.bf16.gmra.mrb[0].mxu0 %v1001
  %v1037 = vpop.f32.mrb[0].mxu0
  %v1038 = vadd.f32 0.0, %v1037
  %v1039 = vpop.f32.mrb[0].mxu0
  %v1040 = vpop.f32.mrb[0].mxu0
  %v1041 = vadd.f32 0.0, %v1040
  %v1042 = vpop.f32.mrb[0].mxu0
  %1043 = vdwg.mxu0
  %1045 = vrot.lane.b32.xlu0 %v921, 96
  %v1046 = vpop.permute.xlu0 %1045
  %1048 = vrot.lane.b32.xlu0 %v922, 96
  %v1049 = vpop.permute.xlu0 %1048
  %v1051 = vsel %vm924, %v1046, 0
  %v1054 = vsel %vm924, %v1049, 0
  %1056 = vmatprep.subr.bf16.mxu0 0
  %1057 = vmatpush1.bf16.xpose.msra.mxu0 %v1054
  %1058 = vmatprep.subr.bf16.mxu0 0
  %1059 = vmatpush1.bf16.xpose.msra.mxu0 0
  %1060 = vmatprep.subr.bf16.mxu0 0
  %1061 = vmatpush1.bf16.xpose.msra.mxu0 0
  %1062 = vmatprep.subr.bf16.mxu0 0
  %1063 = vmatpush1.bf16.xpose.msra.mxu0 0
  %1064 = vmatprep.subr.bf16.mxu0 0
  %1065 = vmatpush1.bf16.xpose.msra.mxu0 0
  %1066 = vmatprep.subr.bf16.mxu0 0
  %1067 = vmatpush1.bf16.xpose.msra.mxu0 0
  %1068 = vmatprep.subr.bf16.mxu0 0
  %1069 = vmatpush1.bf16.xpose.msra.mxu0 0
  %1070 = vmatprep.subr.bf16.mxu0 0
  %1071 = vmatpush1.bf16.xpose.msra.mxu0 0
  %1072 = vmatprep.subr.bf16.mxu0 0
  %1073 = vmatpush1.bf16.xpose.msra.mxu0 0
  %1074 = vmatprep.subr.bf16.mxu0 0
  %1075 = vmatpush1.bf16.xpose.msra.mxu0 0
  %1076 = vmatprep.subr.bf16.mxu0 0
  %1077 = vmatpush1.bf16.xpose.msra.mxu0 0
  %1078 = vmatprep.subr.bf16.mxu0 0
  %1079 = vmatpush1.bf16.xpose.msra.mxu0 0
  %1080 = vmatprep.subr.bf16.mxu0 0
  %1081 = vmatpush1.bf16.xpose.msra.mxu0 0
  %1082 = vmatprep.subr.bf16.mxu0 0
  %1083 = vmatpush1.bf16.xpose.msra.mxu0 0
  %1084 = vmatprep.subr.bf16.mxu0 0
  %1085 = vmatpush1.bf16.xpose.msra.mxu0 0
  %1086 = vmatprep.subr.bf16.mxu0 0
  %1087 = vmatpush1.bf16.xpose.msra.mxu0 0
  %1088 = vmatprep.mubr.bf16.mxu0 0
  %1089 = vmatmul.mubr.bf16.gmra.mrb[0].mxu0 %v1051
  %v1090 = vpop.f32.mrb[0].mxu0
  %v1091 = vadd.f32 0.0, %v1090
  %v1092 = vpop.f32.mrb[0].mxu0
  %v1093 = vpop.f32.mrb[0].mxu0
  %v1094 = vadd.f32 0.0, %v1093
  %v1095 = vpop.f32.mrb[0].mxu0
  %1096 = vdwg.mxu0
  %v1097 = vmul.f32 %v1091, 0.17677669
  %v1098 = vmul.f32 %v1094, 0.17677669
  %v1099 = vadd.f32 %v1097, %v71
  %v1100 = vadd.f32 %v1098, %v72
  %v1101 = vsel %vm976, %v1099, -inf
  %1102 = vmax.xlane.f32.xlu0 %v1101
  %v1103 = vpop.xlane.xlu0 %1102
  %v1104 = vsel %vm976, %v1100, -inf
  %1105 = vmax.xlane.f32.xlu0 %v1104
  %v1106 = vpop.xlane.xlu0 %1105
  %v1107 = vsub.f32 %v1099, %v1103
  %v1108 = vsub.f32 %v1100, %v1106
  %v1109 = vmul.f32 %v1107, 1.442695
  %v1110 = vpow.pop %v1109
  %v1111 = vmul.f32 %v1108, 1.442695
  %v1112 = vpow.pop %v1111
  %v1113 = vsel %vm976, %v1110, 0.0
  %1114 = vadd.xlane.f32.xlu0 %v1113
  %v1115 = vpop.xlane.xlu0 %1114
  %v1116 = vsel %vm976, %v1112, 0.0
  %1117 = vadd.xlane.f32.xlu0 %v1116
  %v1118 = vpop.xlane.xlu0 %1117
  %v1119 = vrcp.pop %v1115
  %v1120 = vrcp.pop %v1118
  %v1121 = vmul.f32 %v1110, %v1119
  %v1122 = vmul.f32 %v1112, %v1120
  %v1123 = vpack.c.bf16 %v1122, %v1121
  %1125 = vrot.lane.b32.xlu0 %v923, 96
  %v1126 = vpop.permute.xlu0 %1125
  %v1129 = vsel %vm976, %v1123, 0
  %1131 = vmatprep.subr.bf16.mxu0 0
  %1132 = vmatpush1.bf16.msra.mxu0 %v1126
  %1133 = vmatprep.subr.bf16.mxu0 0
  %1134 = vmatpush1.bf16.msra.mxu0 0
  %1135 = vmatprep.subr.bf16.mxu0 0
  %1136 = vmatpush1.bf16.msra.mxu0 0
  %1137 = vmatprep.subr.bf16.mxu0 0
  %1138 = vmatpush1.bf16.msra.mxu0 0
  %1139 = vmatprep.subr.bf16.mxu0 0
  %1140 = vmatpush1.bf16.msra.mxu0 0
  %1141 = vmatprep.subr.bf16.mxu0 0
  %1142 = vmatpush1.bf16.msra.mxu0 0
  %1143 = vmatprep.subr.bf16.mxu0 0
  %1144 = vmatpush1.bf16.msra.mxu0 0
  %1145 = vmatprep.subr.bf16.mxu0 0
  %1146 = vmatpush1.bf16.msra.mxu0 0
  %1147 = vmatprep.subr.bf16.mxu0 0
  %1148 = vmatpush1.bf16.msra.mxu0 0
  %1149 = vmatprep.subr.bf16.mxu0 0
  %1150 = vmatpush1.bf16.msra.mxu0 0
  %1151 = vmatprep.subr.bf16.mxu0 0
  %1152 = vmatpush1.bf16.msra.mxu0 0
  %1153 = vmatprep.subr.bf16.mxu0 0
  %1154 = vmatpush1.bf16.msra.mxu0 0
  %1155 = vmatprep.subr.bf16.mxu0 0
  %1156 = vmatpush1.bf16.msra.mxu0 0
  %1157 = vmatprep.subr.bf16.mxu0 0
  %1158 = vmatpush1.bf16.msra.mxu0 0
  %1159 = vmatprep.subr.bf16.mxu0 0
  %1160 = vmatpush1.bf16.msra.mxu0 0
  %1161 = vmatprep.subr.bf16.mxu0 0
  %1162 = vmatpush1.bf16.msra.mxu0 0
  %1163 = vmatprep.mubr.bf16.mxu0 0
  %1164 = vmatmul.mubr.bf16.gmra.mrb[0].mxu0 %v1129
  %v1165 = vpop.f32.mrb[0].mxu0
  %v1166 = vadd.f32 0.0, %v1165
  %v1167 = vpop.f32.mrb[0].mxu0
  %v1168 = vpop.f32.mrb[0].mxu0
  %v1169 = vadd.f32 0.0, %v1168
  %v1170 = vpop.f32.mrb[0].mxu0
  %1171 = vdwg.mxu0
  %1172 = vrot.lane.b32.xlu0 %v921, 64
  %v1173 = vpop.permute.xlu0 %1172
  %1174 = vrot.lane.b32.xlu0 %v922, 64
  %v1175 = vpop.permute.xlu0 %1174
  %v1177 = vsel %vm924, %v1173, 0
  %v1180 = vsel %vm924, %v1175, 0
  %1182 = vmatprep.subr.bf16.mxu0 0
  %1183 = vmatpush1.bf16.xpose.msra.mxu0 %v1180
  %1184 = vmatprep.subr.bf16.mxu0 0
  %1185 = vmatpush1.bf16.xpose.msra.mxu0 0
  %1186 = vmatprep.subr.bf16.mxu0 0
  %1187 = vmatpush1.bf16.xpose.msra.mxu0 0
  %1188 = vmatprep.subr.bf16.mxu0 0
  %1189 = vmatpush1.bf16.xpose.msra.mxu0 0
  %1190 = vmatprep.subr.bf16.mxu0 0
  %1191 = vmatpush1.bf16.xpose.msra.mxu0 0
  %1192 = vmatprep.subr.bf16.mxu0 0
  %1193 = vmatpush1.bf16.xpose.msra.mxu0 0
  %1194 = vmatprep.subr.bf16.mxu0 0
  %1195 = vmatpush1.bf16.xpose.msra.mxu0 0
  %1196 = vmatprep.subr.bf16.mxu0 0
  %1197 = vmatpush1.bf16.xpose.msra.mxu0 0
  %1198 = vmatprep.subr.bf16.mxu0 0
  %1199 = vmatpush1.bf16.xpose.msra.mxu0 0
  %1200 = vmatprep.subr.bf16.mxu0 0
  %1201 = vmatpush1.bf16.xpose.msra.mxu0 0
  %1202 = vmatprep.subr.bf16.mxu0 0
  %1203 = vmatpush1.bf16.xpose.msra.mxu0 0
  %1204 = vmatprep.subr.bf16.mxu0 0
  %1205 = vmatpush1.bf16.xpose.msra.mxu0 0
  %1206 = vmatprep.subr.bf16.mxu0 0
  %1207 = vmatpush1.bf16.xpose.msra.mxu0 0
  %1208 = vmatprep.subr.bf16.mxu0 0
  %1209 = vmatpush1.bf16.xpose.msra.mxu0 0
  %1210 = vmatprep.subr.bf16.mxu0 0
  %1211 = vmatpush1.bf16.xpose.msra.mxu0 0
  %1212 = vmatprep.subr.bf16.mxu0 0
  %1213 = vmatpush1.bf16.xpose.msra.mxu0 0
  %1214 = vmatprep.mubr.bf16.mxu0 0
  %1215 = vmatmul.mubr.bf16.gmra.mrb[0].mxu0 %v1177
  %v1216 = vpop.f32.mrb[0].mxu0
  %v1217 = vadd.f32 0.0, %v1216
  %v1218 = vpop.f32.mrb[0].mxu0
  %v1219 = vpop.f32.mrb[0].mxu0
  %v1220 = vadd.f32 0.0, %v1219
  %v1221 = vpop.f32.mrb[0].mxu0
  %1222 = vdwg.mxu0
  %v1223 = vmul.f32 %v1217, 0.17677669
  %v1224 = vmul.f32 %v1220, 0.17677669
  %v1225 = vadd.f32 %v1223, %v71
  %v1226 = vadd.f32 %v1224, %v72
  %v1227 = vsel %vm976, %v1225, -inf
  %1228 = vmax.xlane.f32.xlu0 %v1227
  %v1229 = vpop.xlane.xlu0 %1228
  %v1230 = vsel %vm976, %v1226, -inf
  %1231 = vmax.xlane.f32.xlu0 %v1230
  %v1232 = vpop.xlane.xlu0 %1231
  %v1233 = vsub.f32 %v1225, %v1229
  %v1234 = vsub.f32 %v1226, %v1232
  %v1235 = vmul.f32 %v1233, 1.442695
  %v1236 = vpow.pop %v1235
  %v1237 = vmul.f32 %v1234, 1.442695
  %v1238 = vpow.pop %v1237
  %v1239 = vsel %vm976, %v1236, 0.0
  %1240 = vadd.xlane.f32.xlu0 %v1239
  %v1241 = vpop.xlane.xlu0 %1240
  %v1242 = vsel %vm976, %v1238, 0.0
  %1243 = vadd.xlane.f32.xlu0 %v1242
  %v1244 = vpop.xlane.xlu0 %1243
  %v1245 = vrcp.pop %v1241
  %v1246 = vrcp.pop %v1244
  %v1247 = vmul.f32 %v1236, %v1245
  %v1248 = vmul.f32 %v1238, %v1246
  %v1249 = vpack.c.bf16 %v1248, %v1247
  %1250 = vrot.lane.b32.xlu0 %v923, 64
  %v1251 = vpop.permute.xlu0 %1250
  %v1254 = vsel %vm976, %v1249, 0
  %1256 = vmatprep.subr.bf16.mxu0 0
  %1257 = vmatpush1.bf16.msra.mxu0 %v1251
  %1258 = vmatprep.subr.bf16.mxu0 0
  %1259 = vmatpush1.bf16.msra.mxu0 0
  %1260 = vmatprep.subr.bf16.mxu0 0
  %1261 = vmatpush1.bf16.msra.mxu0 0
  %1262 = vmatprep.subr.bf16.mxu0 0
  %1263 = vmatpush1.bf16.msra.mxu0 0
  %1264 = vmatprep.subr.bf16.mxu0 0
  %1265 = vmatpush1.bf16.msra.mxu0 0
  %1266 = vmatprep.subr.bf16.mxu0 0
  %1267 = vmatpush1.bf16.msra.mxu0 0
  %1268 = vmatprep.subr.bf16.mxu0 0
  %1269 = vmatpush1.bf16.msra.mxu0 0
  %1270 = vmatprep.subr.bf16.mxu0 0
  %1271 = vmatpush1.bf16.msra.mxu0 0
  %1272 = vmatprep.subr.bf16.mxu0 0
  %1273 = vmatpush1.bf16.msra.mxu0 0
  %1274 = vmatprep.subr.bf16.mxu0 0
  %1275 = vmatpush1.bf16.msra.mxu0 0
  %1276 = vmatprep.subr.bf16.mxu0 0
  %1277 = vmatpush1.bf16.msra.mxu0 0
  %1278 = vmatprep.subr.bf16.mxu0 0
  %1279 = vmatpush1.bf16.msra.mxu0 0
  %1280 = vmatprep.subr.bf16.mxu0 0
  %1281 = vmatpush1.bf16.msra.mxu0 0
  %1282 = vmatprep.subr.bf16.mxu0 0
  %1283 = vmatpush1.bf16.msra.mxu0 0
  %1284 = vmatprep.subr.bf16.mxu0 0
  %1285 = vmatpush1.bf16.msra.mxu0 0
  %1286 = vmatprep.subr.bf16.mxu0 0
  %1287 = vmatpush1.bf16.msra.mxu0 0
  %1288 = vmatprep.mubr.bf16.mxu0 0
  %1289 = vmatmul.mubr.bf16.gmra.mrb[0].mxu0 %v1254
  %v1290 = vpop.f32.mrb[0].mxu0
  %v1291 = vadd.f32 0.0, %v1290
  %v1292 = vpop.f32.mrb[0].mxu0
  %v1293 = vpop.f32.mrb[0].mxu0
  %v1294 = vadd.f32 0.0, %v1293
  %v1295 = vpop.f32.mrb[0].mxu0
  %1296 = vdwg.mxu0
  %1297 = vrot.lane.b32.xlu0 %v921, 32
  %v1298 = vpop.permute.xlu0 %1297
  %1299 = vrot.lane.b32.xlu0 %v922, 32
  %v1300 = vpop.permute.xlu0 %1299
  %v1302 = vsel %vm924, %v1298, 0
  %v1305 = vsel %vm924, %v1300, 0
  %1307 = vmatprep.subr.bf16.mxu0 0
  %1308 = vmatpush1.bf16.xpose.msra.mxu0 %v1305
  %1309 = vmatprep.subr.bf16.mxu0 0
  %1310 = vmatpush1.bf16.xpose.msra.mxu0 0
  %1311 = vmatprep.subr.bf16.mxu0 0
  %1312 = vmatpush1.bf16.xpose.msra.mxu0 0
  %1313 = vmatprep.subr.bf16.mxu0 0
  %1314 = vmatpush1.bf16.xpose.msra.mxu0 0
  %1315 = vmatprep.subr.bf16.mxu0 0
  %1316 = vmatpush1.bf16.xpose.msra.mxu0 0
  %1317 = vmatprep.subr.bf16.mxu0 0
  %1318 = vmatpush1.bf16.xpose.msra.mxu0 0
  %1319 = vmatprep.subr.bf16.mxu0 0
  %1320 = vmatpush1.bf16.xpose.msra.mxu0 0
  %1321 = vmatprep.subr.bf16.mxu0 0
  %1322 = vmatpush1.bf16.xpose.msra.mxu0 0
  %1323 = vmatprep.subr.bf16.mxu0 0
  %1324 = vmatpush1.bf16.xpose.msra.mxu0 0
  %1325 = vmatprep.subr.bf16.mxu0 0
  %1326 = vmatpush1.bf16.xpose.msra.mxu0 0
  %1327 = vmatprep.subr.bf16.mxu0 0
  %1328 = vmatpush1.bf16.xpose.msra.mxu0 0
  %1329 = vmatprep.subr.bf16.mxu0 0
  %1330 = vmatpush1.bf16.xpose.msra.mxu0 0
  %1331 = vmatprep.subr.bf16.mxu0 0
  %1332 = vmatpush1.bf16.xpose.msra.mxu0 0
  %1333 = vmatprep.subr.bf16.mxu0 0
  %1334 = vmatpush1.bf16.xpose.msra.mxu0 0
  %1335 = vmatprep.subr.bf16.mxu0 0
  %1336 = vmatpush1.bf16.xpose.msra.mxu0 0
  %1337 = vmatprep.subr.bf16.mxu0 0
  %1338 = vmatpush1.bf16.xpose.msra.mxu0 0
  %1339 = vmatprep.mubr.bf16.mxu0 0
  %1340 = vmatmul.mubr.bf16.gmra.mrb[0].mxu0 %v1302
  %v1341 = vpop.f32.mrb[0].mxu0
  %v1342 = vadd.f32 0.0, %v1341
  %v1343 = vpop.f32.mrb[0].mxu0
  %v1344 = vpop.f32.mrb[0].mxu0
  %v1345 = vadd.f32 0.0, %v1344
  %v1346 = vpop.f32.mrb[0].mxu0
  %1347 = vdwg.mxu0
  %v1348 = vmul.f32 %v1342, 0.17677669
  %v1349 = vmul.f32 %v1345, 0.17677669
  %v1350 = vadd.f32 %v1348, %v71
  %v1351 = vadd.f32 %v1349, %v72
  %v1352 = vsel %vm976, %v1350, -inf
  %1353 = vmax.xlane.f32.xlu0 %v1352
  %v1354 = vpop.xlane.xlu0 %1353
  %v1355 = vsel %vm976, %v1351, -inf
  %1356 = vmax.xlane.f32.xlu0 %v1355
  %v1357 = vpop.xlane.xlu0 %1356
  %v1358 = vsub.f32 %v1350, %v1354
  %v1359 = vsub.f32 %v1351, %v1357
  %v1360 = vmul.f32 %v1358, 1.442695
  %v1361 = vpow.pop %v1360
  %v1362 = vmul.f32 %v1359, 1.442695
  %v1363 = vpow.pop %v1362
  %v1364 = vsel %vm976, %v1361, 0.0
  %1365 = vadd.xlane.f32.xlu0 %v1364
  %v1366 = vpop.xlane.xlu0 %1365
  %v1367 = vsel %vm976, %v1363, 0.0
  %1368 = vadd.xlane.f32.xlu0 %v1367
  %v1369 = vpop.xlane.xlu0 %1368
  %v1370 = vrcp.pop %v1366
  %v1371 = vrcp.pop %v1369
  %v1372 = vmul.f32 %v1361, %v1370
  %v1373 = vmul.f32 %v1363, %v1371
  %v1374 = vpack.c.bf16 %v1373, %v1372
  %1375 = vrot.lane.b32.xlu0 %v923, 32
  %v1376 = vpop.permute.xlu0 %1375
  %v1379 = vsel %vm976, %v1374, 0
  %1381 = vmatprep.subr.bf16.mxu0 0
  %1382 = vmatpush1.bf16.msra.mxu0 %v1376
  %1383 = vmatprep.subr.bf16.mxu0 0
  %1384 = vmatpush1.bf16.msra.mxu0 0
  %1385 = vmatprep.subr.bf16.mxu0 0
  %1386 = vmatpush1.bf16.msra.mxu0 0
  %1387 = vmatprep.subr.bf16.mxu0 0
  %1388 = vmatpush1.bf16.msra.mxu0 0
  %1389 = vmatprep.subr.bf16.mxu0 0
  %1390 = vmatpush1.bf16.msra.mxu0 0
  %1391 = vmatprep.subr.bf16.mxu0 0
  %1392 = vmatpush1.bf16.msra.mxu0 0
  %1393 = vmatprep.subr.bf16.mxu0 0
  %1394 = vmatpush1.bf16.msra.mxu0 0
  %1395 = vmatprep.subr.bf16.mxu0 0
  %1396 = vmatpush1.bf16.msra.mxu0 0
  %1397 = vmatprep.subr.bf16.mxu0 0
  %1398 = vmatpush1.bf16.msra.mxu0 0
  %1399 = vmatprep.subr.bf16.mxu0 0
  %1400 = vmatpush1.bf16.msra.mxu0 0
  %1401 = vmatprep.subr.bf16.mxu0 0
  %1402 = vmatpush1.bf16.msra.mxu0 0
  %1403 = vmatprep.subr.bf16.mxu0 0
  %1404 = vmatpush1.bf16.msra.mxu0 0
  %1405 = vmatprep.subr.bf16.mxu0 0
  %1406 = vmatpush1.bf16.msra.mxu0 0
  %1407 = vmatprep.subr.bf16.mxu0 0
  %1408 = vmatpush1.bf16.msra.mxu0 0
  %1409 = vmatprep.subr.bf16.mxu0 0
  %1410 = vmatpush1.bf16.msra.mxu0 0
  %1411 = vmatprep.subr.bf16.mxu0 0
  %1412 = vmatpush1.bf16.msra.mxu0 0
  %1413 = vmatprep.mubr.bf16.mxu0 0
  %1414 = vmatmul.mubr.bf16.gmra.mrb[0].mxu0 %v1379
  %v1415 = vpop.f32.mrb[0].mxu0
  %v1416 = vadd.f32 0.0, %v1415
  %v1417 = vpop.f32.mrb[0].mxu0
  %v1418 = vpop.f32.mrb[0].mxu0
  %v1419 = vadd.f32 0.0, %v1418
  %v1420 = vpop.f32.mrb[0].mxu0
  %1421 = vdwg.mxu0
  %1424 = vrot.lane.b32.xlu0 %v1166, 32
  %v1425 = vpop.permute.xlu0 %1424
  %1426 = vrot.lane.b32.xlu0 %v1169, 32
  %v1427 = vpop.permute.xlu0 %1426
  %1432 = vrot.lane.b32.xlu0 %v1291, 64
  %v1433 = vpop.permute.xlu0 %1432
  %1434 = vrot.lane.b32.xlu0 %v1294, 64
  %v1435 = vpop.permute.xlu0 %1434
  %1440 = vrot.lane.b32.xlu0 %v1416, 96
  %v1441 = vpop.permute.xlu0 %1440
  %1442 = vrot.lane.b32.xlu0 %v1419, 96
  %v1443 = vpop.permute.xlu0 %1442
  %v1446 = vsel %vm924, %v1038, %v1425
  %v1447 = vsel %vm924, %v1041, %v1427
  %vm1448 = vcmask 523264
  %v1449 = vsel %vm1448, %v1446, %v1433
  %v1450 = vsel %vm1448, %v1447, %v1435
  %vm1451 = vcmask 785408
  %v1452 = vsel %vm1451, %v1449, %v1441
  %v1453 = vsel %vm1451, %v1450, %v1443
  %v1454 = vld [vmem:[%s9] sm:$0xf]
  %v1455 = vld [vmem:[%s9 + $0x4] sm:$0xf]
  %v1456 = vld [vmem:[%s9 + $0x8] sm:$0xf]
  %v1457 = vld [vmem:[%s9 + $0xc] sm:$0xf]
  %v1458 = vld [vmem:[%s9 + $0x10] sm:$0xf]
  %v1459 = vld [vmem:[%s9 + $0x14] sm:$0xf]
  %v1460 = vld [vmem:[%s9 + $0x18] sm:$0xf]
  %v1461 = vld [vmem:[%s9 + $0x1c] sm:$0xf]
  %v1462 = vld [vmem:[%s9 + $0x20] sm:$0xf]
  %v1463 = vld [vmem:[%s9 + $0x24] sm:$0xf]
  %v1464 = vld [vmem:[%s9 + $0x28] sm:$0xf]
  %v1465 = vld [vmem:[%s9 + $0x2c] sm:$0xf]
  %v1466 = vld [vmem:[%s9 + $0x30] sm:$0xf]
  %v1467 = vld [vmem:[%s9 + $0x34] sm:$0xf]
  %v1468 = vld [vmem:[%s9 + $0x38] sm:$0xf]
  %v1469 = vld [vmem:[%s9 + $0x3c] sm:$0xf]
  %v1470 = vpack.c.bf16 %v1453, %v1452
  %v1487 = vunpack.c.l.b16 %v1454
  %v1488 = vunpack.c.l.b16 %v1455
  %v1489 = vunpack.c.l.b16 %v1456
  %v1490 = vunpack.c.l.b16 %v1457
  %v1491 = vunpack.c.l.b16 %v1458
  %v1492 = vunpack.c.l.b16 %v1459
  %v1493 = vunpack.c.l.b16 %v1460
  %v1494 = vunpack.c.l.b16 %v1461
  %v1495 = vunpack.c.l.b16 %v1462
  %v1496 = vunpack.c.l.b16 %v1463
  %v1497 = vunpack.c.l.b16 %v1464
  %v1498 = vunpack.c.l.b16 %v1465
  %v1499 = vunpack.c.l.b16 %v1466
  %v1500 = vunpack.c.l.b16 %v1467
  %v1501 = vunpack.c.l.b16 %v1468
  %v1502 = vunpack.c.l.b16 %v1469
  %v1503 = vpack.c.b16 %v1488, %v1487
  %v1504 = vpack.c.b16 %v1490, %v1489
  %v1505 = vpack.c.b16 %v1492, %v1491
  %v1506 = vpack.c.b16 %v1494, %v1493
  %v1507 = vpack.c.b16 %v1496, %v1495
  %v1508 = vpack.c.b16 %v1498, %v1497
  %v1509 = vpack.c.b16 %v1500, %v1499
  %v1510 = vpack.c.b16 %v1502, %v1501
  %1519 = vmatprep.subr.bf16.mxu0 0
  %1520 = vmatpush1.bf16.msra.mxu0 %v1503
  %1521 = vmatprep.subr.bf16.mxu0 0
  %1522 = vmatpush1.bf16.msra.mxu0 %v1504
  %1523 = vmatprep.subr.bf16.mxu0 0
  %1524 = vmatpush1.bf16.msra.mxu0 %v1505
  %1525 = vmatprep.subr.bf16.mxu0 0
  %1526 = vmatpush1.bf16.msra.mxu0 %v1506
  %1527 = vmatprep.subr.bf16.mxu0 0
  %1528 = vmatpush1.bf16.msra.mxu0 %v1507
  %1529 = vmatprep.subr.bf16.mxu0 0
  %1530 = vmatpush1.bf16.msra.mxu0 %v1508
  %1531 = vmatprep.subr.bf16.mxu0 0
  %1532 = vmatpush1.bf16.msra.mxu0 %v1509
  %1533 = vmatprep.subr.bf16.mxu0 0
  %1534 = vmatpush1.bf16.msra.mxu0 %v1510
  %1535 = vmatprep.subr.bf16.mxu0 0
  %1536 = vmatpush1.bf16.msra.mxu0 0
  %1537 = vmatprep.subr.bf16.mxu0 0
  %1538 = vmatpush1.bf16.msra.mxu0 0
  %1539 = vmatprep.subr.bf16.mxu0 0
  %1540 = vmatpush1.bf16.msra.mxu0 0
  %1541 = vmatprep.subr.bf16.mxu0 0
  %1542 = vmatpush1.bf16.msra.mxu0 0
  %1543 = vmatprep.subr.bf16.mxu0 0
  %1544 = vmatpush1.bf16.msra.mxu0 0
  %1545 = vmatprep.subr.bf16.mxu0 0
  %1546 = vmatpush1.bf16.msra.mxu0 0
  %1547 = vmatprep.subr.bf16.mxu0 0
  %1548 = vmatpush1.bf16.msra.mxu0 0
  %1549 = vmatprep.subr.bf16.mxu0 0
  %1550 = vmatpush1.bf16.msra.mxu0 0
  %1551 = vmatprep.mubr.bf16.mxu0 0
  %1552 = vmatmul.mubr.bf16.gmra.mrb[0].mxu0 %v1470
  %v1553 = vpop.f32.mrb[0].mxu0
  %v1554 = vadd.f32 0.0, %v1553
  %v1555 = vpop.f32.mrb[0].mxu0
  %v1556 = vpop.f32.mrb[0].mxu0
  %v1557 = vadd.f32 0.0, %v1556
  %v1558 = vpop.f32.mrb[0].mxu0
  %1559 = vdwg.mxu0
  %v1560 = vadd.f32 %v612, %v1554
  %v1561 = vadd.f32 %v615, %v1557
  %v1562 = vld [vmem:[%s10] sm:$0x1]
  %v1564 = vlaneseq
  %v1565 = vshrl.u32 %v1564, 7
  %v1566 = vsub.s32 0, %v1565
  %v1567 = vrot.slane %v1562, %v1566
  %v1569 = vadd.f32 %v1560, %v1567
  %v1570 = vadd.f32 %v1561, %v1567
  %v1571 = vld [vmem:[%s11] sm:$0x1]
  %v1572 = vld [vmem:[%s12] sm:$0x1]
  %1573 = vadd.xlane.f32.xlu0 %v1569
  %v1574 = vpop.xlane.xlu0 %1573
  %1575 = vadd.xlane.f32.xlu0 %v1570
  %v1576 = vpop.xlane.xlu0 %1575
  %v1577 = vmul.f32 %v1574, %v624
  %v1578 = vmul.f32 %v1576, %v624
  %v1579 = vsub.f32 %v1569, %v1577
  %v1580 = vsub.f32 %v1570, %v1578
  %v1581 = vmul.f32 %v1579, %v1579
  %v1582 = vmul.f32 %v1580, %v1580
  %1583 = vadd.xlane.f32.xlu0 %v1581
  %v1584 = vpop.xlane.xlu0 %1583
  %1585 = vadd.xlane.f32.xlu0 %v1582
  %v1586 = vpop.xlane.xlu0 %1585
  %v1587 = vmul.f32 %v1584, %v624
  %v1588 = vmul.f32 %v1586, %v624
  %v1589 = vadd.f32 %v1587, 1e-06
  %v1590 = vadd.f32 %v1588, 1e-06
  %v1591 = vrsqrt.pop %v1589
  %v1592 = vrsqrt.pop %v1590
  %v1593 = vmul.f32 %v1579, %v1591
  %v1594 = vmul.f32 %v1580, %v1592
  %v1596 = vlaneseq
  %v1597 = vshrl.u32 %v1596, 7
  %v1598 = vsub.s32 0, %v1597
  %v1599 = vrot.slane %v1571, %v1598
  %v1601 = vmul.f32 %v1593, %v1599
  %v1602 = vmul.f32 %v1594, %v1599
  %v1604 = vlaneseq
  %v1605 = vshrl.u32 %v1604, 7
  %v1606 = vsub.s32 0, %v1605
  %v1607 = vrot.slane %v1572, %v1606
  %v1609 = vadd.f32 %v1601, %v1607
  %v1610 = vadd.f32 %v1602, %v1607
  %v1611 = vld [vmem:[%s13] sm:$0xff]
  %v1612 = vld [vmem:[%s13 + $0x8] sm:$0xff]
  %v1613 = vld [vmem:[%s13 + $0x10] sm:$0xff]
  %v1614 = vld [vmem:[%s13 + $0x18] sm:$0xff]
  %v1615 = vld [vmem:[%s13 + $0x20] sm:$0xff]
  %v1616 = vld [vmem:[%s13 + $0x28] sm:$0xff]
  %v1617 = vld [vmem:[%s13 + $0x30] sm:$0xff]
  %v1618 = vld [vmem:[%s13 + $0x38] sm:$0xff]
  %v1619 = vld [vmem:[%s13 + $0x40] sm:$0xff]
  %v1620 = vld [vmem:[%s13 + $0x48] sm:$0xff]
  %v1621 = vld [vmem:[%s13 + $0x50] sm:$0xff]
  %v1622 = vld [vmem:[%s13 + $0x58] sm:$0xff]
  %v1623 = vld [vmem:[%s13 + $0x60] sm:$0xff]
  %v1624 = vld [vmem:[%s13 + $0x68] sm:$0xff]
  %v1625 = vld [vmem:[%s13 + $0x70] sm:$0xff]
  %v1626 = vld [vmem:[%s13 + $0x78] sm:$0xff]
  %v1627 = vld [vmem:[%s13 + $0x80] sm:$0xff]
  %v1628 = vld [vmem:[%s13 + $0x88] sm:$0xff]
  %v1629 = vld [vmem:[%s13 + $0x90] sm:$0xff]
  %v1630 = vld [vmem:[%s13 + $0x98] sm:$0xff]
  %v1631 = vld [vmem:[%s13 + $0xa0] sm:$0xff]
  %v1632 = vld [vmem:[%s13 + $0xa8] sm:$0xff]
  %v1633 = vld [vmem:[%s13 + $0xb0] sm:$0xff]
  %v1634 = vld [vmem:[%s13 + $0xb8] sm:$0xff]
  %v1635 = vld [vmem:[%s13 + $0xc0] sm:$0xff]
  %v1636 = vld [vmem:[%s13 + $0xc8] sm:$0xff]
  %v1637 = vld [vmem:[%s13 + $0xd0] sm:$0xff]
  %v1638 = vld [vmem:[%s13 + $0xd8] sm:$0xff]
  %v1639 = vld [vmem:[%s13 + $0xe0] sm:$0xff]
  %v1640 = vld [vmem:[%s13 + $0xe8] sm:$0xff]
  %v1641 = vld [vmem:[%s13 + $0xf0] sm:$0xff]
  %v1642 = vld [vmem:[%s13 + $0xf8] sm:$0xff]
  %v1643 = vpack.c.bf16 %v1610, %v1609
  %v1644 = vld [vmem:[%s14] sm:$0xf]
  %v1646 = vlaneseq
  %v1647 = vshrl.u32 %v1646, 7
  %v1648 = vsub.s32 0, %v1647
  %v1649 = vrot.slane %v1644, %v1648
  %v1650 = vlaneseq
  %v1651 = vshrl.u32 %v1650, 7
  %v1652 = vsub.s32 1, %v1651
  %v1653 = vrot.slane %v1644, %v1652
  %v1654 = vlaneseq
  %v1655 = vshrl.u32 %v1654, 7
  %v1656 = vsub.s32 2, %v1655
  %v1657 = vrot.slane %v1644, %v1656
  %v1658 = vlaneseq
  %v1659 = vshrl.u32 %v1658, 7
  %v1660 = vsub.s32 3, %v1659
  %v1661 = vrot.slane %v1644, %v1660
  %v1698 = vunpack.c.l.b16 %v1611
  %v1699 = vunpack.c.h.b16 %v1611
  %v1700 = vunpack.c.l.b16 %v1612
  %v1701 = vunpack.c.h.b16 %v1612
  %v1702 = vunpack.c.l.b16 %v1613
  %v1703 = vunpack.c.h.b16 %v1613
  %v1704 = vunpack.c.l.b16 %v1614
  %v1705 = vunpack.c.h.b16 %v1614
  %v1706 = vunpack.c.l.b16 %v1615
  %v1707 = vunpack.c.h.b16 %v1615
  %v1708 = vunpack.c.l.b16 %v1616
  %v1709 = vunpack.c.h.b16 %v1616
  %v1710 = vunpack.c.l.b16 %v1617
  %v1711 = vunpack.c.h.b16 %v1617
  %v1712 = vunpack.c.l.b16 %v1618
  %v1713 = vunpack.c.h.b16 %v1618
  %v1714 = vunpack.c.l.b16 %v1619
  %v1715 = vunpack.c.h.b16 %v1619
  %v1716 = vunpack.c.l.b16 %v1620
  %v1717 = vunpack.c.h.b16 %v1620
  %v1718 = vunpack.c.l.b16 %v1621
  %v1719 = vunpack.c.h.b16 %v1621
  %v1720 = vunpack.c.l.b16 %v1622
  %v1721 = vunpack.c.h.b16 %v1622
  %v1722 = vunpack.c.l.b16 %v1623
  %v1723 = vunpack.c.h.b16 %v1623
  %v1724 = vunpack.c.l.b16 %v1624
  %v1725 = vunpack.c.h.b16 %v1624
  %v1726 = vunpack.c.l.b16 %v1625
  %v1727 = vunpack.c.h.b16 %v1625
  %v1728 = vunpack.c.l.b16 %v1626
  %v1729 = vunpack.c.h.b16 %v1626
  %v1730 = vunpack.c.l.b16 %v1627
  %v1731 = vunpack.c.h.b16 %v1627
  %v1732 = vunpack.c.l.b16 %v1628
  %v1733 = vunpack.c.h.b16 %v1628
  %v1734 = vunpack.c.l.b16 %v1629
  %v1735 = vunpack.c.h.b16 %v1629
  %v1736 = vunpack.c.l.b16 %v1630
  %v1737 = vunpack.c.h.b16 %v1630
  %v1738 = vunpack.c.l.b16 %v1631
  %v1739 = vunpack.c.h.b16 %v1631
  %v1740 = vunpack.c.l.b16 %v1632
  %v1741 = vunpack.c.h.b16 %v1632
  %v1742 = vunpack.c.l.b16 %v1633
  %v1743 = vunpack.c.h.b16 %v1633
  %v1744 = vunpack.c.l.b16 %v1634
  %v1745 = vunpack.c.h.b16 %v1634
  %v1746 = vunpack.c.l.b16 %v1635
  %v1747 = vunpack.c.h.b16 %v1635
  %v1748 = vunpack.c.l.b16 %v1636
  %v1749 = vunpack.c.h.b16 %v1636
  %v1750 = vunpack.c.l.b16 %v1637
  %v1751 = vunpack.c.h.b16 %v1637
  %v1752 = vunpack.c.l.b16 %v1638
  %v1753 = vunpack.c.h.b16 %v1638
  %v1754 = vunpack.c.l.b16 %v1639
  %v1755 = vunpack.c.h.b16 %v1639
  %v1756 = vunpack.c.l.b16 %v1640
  %v1757 = vunpack.c.h.b16 %v1640
  %v1758 = vunpack.c.l.b16 %v1641
  %v1759 = vunpack.c.h.b16 %v1641
  %v1760 = vunpack.c.l.b16 %v1642
  %v1761 = vunpack.c.h.b16 %v1642
  %v1762 = vpack.c.b16 %v1702, %v1698
  %v1763 = vpack.c.b16 %v1703, %v1699
  %v1764 = vpack.c.b16 %v1704, %v1700
  %v1765 = vpack.c.b16 %v1705, %v1701
  %v1766 = vpack.c.b16 %v1710, %v1706
  %v1767 = vpack.c.b16 %v1711, %v1707
  %v1768 = vpack.c.b16 %v1712, %v1708
  %v1769 = vpack.c.b16 %v1713, %v1709
  %v1770 = vpack.c.b16 %v1718, %v1714
  %v1771 = vpack.c.b16 %v1719, %v1715
  %v1772 = vpack.c.b16 %v1720, %v1716
  %v1773 = vpack.c.b16 %v1721, %v1717
  %v1774 = vpack.c.b16 %v1726, %v1722
  %v1775 = vpack.c.b16 %v1727, %v1723
  %v1776 = vpack.c.b16 %v1728, %v1724
  %v1777 = vpack.c.b16 %v1729, %v1725
  %v1778 = vpack.c.b16 %v1734, %v1730
  %v1779 = vpack.c.b16 %v1735, %v1731
  %v1780 = vpack.c.b16 %v1736, %v1732
  %v1781 = vpack.c.b16 %v1737, %v1733
  %v1782 = vpack.c.b16 %v1742, %v1738
  %v1783 = vpack.c.b16 %v1743, %v1739
  %v1784 = vpack.c.b16 %v1744, %v1740
  %v1785 = vpack.c.b16 %v1745, %v1741
  %v1786 = vpack.c.b16 %v1750, %v1746
  %v1787 = vpack.c.b16 %v1751, %v1747
  %v1788 = vpack.c.b16 %v1752, %v1748
  %v1789 = vpack.c.b16 %v1753, %v1749
  %v1790 = vpack.c.b16 %v1758, %v1754
  %v1791 = vpack.c.b16 %v1759, %v1755
  %v1792 = vpack.c.b16 %v1760, %v1756
  %v1793 = vpack.c.b16 %v1761, %v1757
  %1826 = vmatprep.subr.bf16.mxu0 %v1763
  %1827 = vmatpush1.bf16.msra.mxu0 %v1762
  %1828 = vmatprep.subr.bf16.mxu0 %v1767
  %1829 = vmatpush1.bf16.msra.mxu0 %v1766
  %1830 = vmatprep.subr.bf16.mxu0 %v1771
  %1831 = vmatpush1.bf16.msra.mxu0 %v1770
  %1832 = vmatprep.subr.bf16.mxu0 %v1775
  %1833 = vmatpush1.bf16.msra.mxu0 %v1774
  %1834 = vmatprep.subr.bf16.mxu0 %v1779
  %1835 = vmatpush1.bf16.msra.mxu0 %v1778
  %1836 = vmatprep.subr.bf16.mxu0 %v1783
  %1837 = vmatpush1.bf16.msra.mxu0 %v1782
  %1838 = vmatprep.subr.bf16.mxu0 %v1787
  %1839 = vmatpush1.bf16.msra.mxu0 %v1786
  %1840 = vmatprep.subr.bf16.mxu0 %v1791
  %1841 = vmatpush1.bf16.msra.mxu0 %v1790
  %1842 = vmatprep.subr.bf16.mxu0 0
  %1843 = vmatpush1.bf16.msra.mxu0 0
  %1844 = vmatprep.subr.bf16.mxu0 0
  %1845 = vmatpush1.bf16.msra.mxu0 0
  %1846 = vmatprep.subr.bf16.mxu0 0
  %1847 = vmatpush1.bf16.msra.mxu0 0
  %1848 = vmatprep.subr.bf16.mxu0 0
  %1849 = vmatpush1.bf16.msra.mxu0 0
  %1850 = vmatprep.subr.bf16.mxu0 0
  %1851 = vmatpush1.bf16.msra.mxu0 0
  %1852 = vmatprep.subr.bf16.mxu0 0
  %1853 = vmatpush1.bf16.msra.mxu0 0
  %1854 = vmatprep.subr.bf16.mxu0 0
  %1855 = vmatpush1.bf16.msra.mxu0 0
  %1856 = vmatprep.subr.bf16.mxu0 0
  %1857 = vmatpush1.bf16.msra.mxu0 0
  %1858 = vmatprep.mubr.bf16.mxu0 0
  %1859 = vmatmul.mubr.bf16.gmra.mrb[0].mxu0 %v1643
  %v1860 = vpop.f32.mrb[0].mxu0
  %v1861 = vadd.f32 %v1649, %v1860
  %v1862 = vpop.f32.mrb[0].mxu0
  %v1863 = vadd.f32 %v1653, %v1862
  %v1864 = vpop.f32.mrb[0].mxu0
  %v1865 = vadd.f32 %v1649, %v1864
  %v1866 = vpop.f32.mrb[0].mxu0
  %v1867 = vadd.f32 %v1653, %v1866
  %1868 = vdwg.mxu0
  %1869 = vmatprep.subr.bf16.mxu0 %v1765
  %1870 = vmatpush1.bf16.msra.mxu0 %v1764
  %1871 = vmatprep.subr.bf16.mxu0 %v1769
  %1872 = vmatpush1.bf16.msra.mxu0 %v1768
  %1873 = vmatprep.subr.bf16.mxu0 %v1773
  %1874 = vmatpush1.bf16.msra.mxu0 %v1772
  %1875 = vmatprep.subr.bf16.mxu0 %v1777
  %1876 = vmatpush1.bf16.msra.mxu0 %v1776
  %1877 = vmatprep.subr.bf16.mxu0 %v1781
  %1878 = vmatpush1.bf16.msra.mxu0 %v1780
  %1879 = vmatprep.subr.bf16.mxu0 %v1785
  %1880 = vmatpush1.bf16.msra.mxu0 %v1784
  %1881 = vmatprep.subr.bf16.mxu0 %v1789
  %1882 = vmatpush1.bf16.msra.mxu0 %v1788
  %1883 = vmatprep.subr.bf16.mxu0 %v1793
  %1884 = vmatpush1.bf16.msra.mxu0 %v1792
  %1885 = vmatprep.subr.bf16.mxu0 0
  %1886 = vmatpush1.bf16.msra.mxu0 0
  %1887 = vmatprep.subr.bf16.mxu0 0
  %1888 = vmatpush1.bf16.msra.mxu0 0
  %1889 = vmatprep.subr.bf16.mxu0 0
  %1890 = vmatpush1.bf16.msra.mxu0 0
  %1891 = vmatprep.subr.bf16.mxu0 0
  %1892 = vmatpush1.bf16.msra.mxu0 0
  %1893 = vmatprep.subr.bf16.mxu0 0
  %1894 = vmatpush1.bf16.msra.mxu0 0
  %1895 = vmatprep.subr.bf16.mxu0 0
  %1896 = vmatpush1.bf16.msra.mxu0 0
  %1897 = vmatprep.subr.bf16.mxu0 0
  %1898 = vmatpush1.bf16.msra.mxu0 0
  %1899 = vmatprep.subr.bf16.mxu0 0
  %1900 = vmatpush1.bf16.msra.mxu0 0
  %1901 = vmatprep.mubr.bf16.mxu0 0
  %1902 = vmatmul.mubr.bf16.gmra.mrb[0].mxu0 %v1643
  %v1903 = vpop.f32.mrb[0].mxu0
  %v1904 = vadd.f32 %v1657, %v1903
  %v1905 = vpop.f32.mrb[0].mxu0
  %v1906 = vadd.f32 %v1661, %v1905
  %v1907 = vpop.f32.mrb[0].mxu0
  %v1908 = vadd.f32 %v1657, %v1907
  %v1909 = vpop.f32.mrb[0].mxu0
  %v1910 = vadd.f32 %v1661, %v1909
  %1911 = vdwg.mxu0
  %v1912 = vmul.f32 %v1861, %v1861
  %v1913 = vmul.f32 %v1863, %v1863
  %v1914 = vmul.f32 %v1904, %v1904
  %v1915 = vmul.f32 %v1906, %v1906
  %v1916 = vmul.f32 %v1865, %v1865
  %v1917 = vmul.f32 %v1867, %v1867
  %v1918 = vmul.f32 %v1908, %v1908
  %v1919 = vmul.f32 %v1910, %v1910
  %v1920 = vmul.f32 %v1861, %v1912
  %v1921 = vmul.f32 %v1863, %v1913
  %v1922 = vmul.f32 %v1904, %v1914
  %v1923 = vmul.f32 %v1906, %v1915
  %v1924 = vmul.f32 %v1865, %v1916
  %v1925 = vmul.f32 %v1867, %v1917
  %v1926 = vmul.f32 %v1908, %v1918
  %v1927 = vmul.f32 %v1910, %v1919
  %v1928 = vmul.f32 %v1920, 0.044715
  %v1929 = vmul.f32 %v1921, 0.044715
  %v1930 = vmul.f32 %v1922, 0.044715
  %v1931 = vmul.f32 %v1923, 0.044715
  %v1932 = vmul.f32 %v1924, 0.044715
  %v1933 = vmul.f32 %v1925, 0.044715
  %v1934 = vmul.f32 %v1926, 0.044715
  %v1935 = vmul.f32 %v1927, 0.044715
  %v1936 = vadd.f32 %v1861, %v1928
  %v1937 = vadd.f32 %v1863, %v1929
  %v1938 = vadd.f32 %v1904, %v1930
  %v1939 = vadd.f32 %v1906, %v1931
  %v1940 = vadd.f32 %v1865, %v1932
  %v1941 = vadd.f32 %v1867, %v1933
  %v1942 = vadd.f32 %v1908, %v1934
  %v1943 = vadd.f32 %v1910, %v1935
  %v1944 = vmul.f32 %v1936, 0.7978846
  %v1945 = vmul.f32 %v1937, 0.7978846
  %v1946 = vmul.f32 %v1938, 0.7978846
  %v1947 = vmul.f32 %v1939, 0.7978846
  %v1948 = vmul.f32 %v1940, 0.7978846
  %v1949 = vmul.f32 %v1941, 0.7978846
  %v1950 = vmul.f32 %v1942, 0.7978846
  %v1951 = vmul.f32 %v1943, 0.7978846
  %v1952 = vtanh.pop %v1944
  %v1953 = vtanh.pop %v1945
  %v1954 = vtanh.pop %v1946
  %v1955 = vtanh.pop %v1947
  %v1956 = vtanh.pop %v1948
  %v1957 = vtanh.pop %v1949
  %v1958 = vtanh.pop %v1950
  %v1959 = vtanh.pop %v1951
  %v1960 = vadd.f32 %v1952, 1.0
  %v1961 = vadd.f32 %v1953, 1.0
  %v1962 = vadd.f32 %v1954, 1.0
  %v1963 = vadd.f32 %v1955, 1.0
  %v1964 = vadd.f32 %v1956, 1.0
  %v1965 = vadd.f32 %v1957, 1.0
  %v1966 = vadd.f32 %v1958, 1.0
  %v1967 = vadd.f32 %v1959, 1.0
  %v1968 = vmul.f32 %v1960, 0.5
  %v1969 = vmul.f32 %v1961, 0.5
  %v1970 = vmul.f32 %v1962, 0.5
  %v1971 = vmul.f32 %v1963, 0.5
  %v1972 = vmul.f32 %v1964, 0.5
  %v1973 = vmul.f32 %v1965, 0.5
  %v1974 = vmul.f32 %v1966, 0.5
  %v1975 = vmul.f32 %v1967, 0.5
  %v1976 = vmul.f32 %v1861, %v1968
  %v1977 = vmul.f32 %v1863, %v1969
  %v1978 = vmul.f32 %v1904, %v1970
  %v1979 = vmul.f32 %v1906, %v1971
  %v1980 = vmul.f32 %v1865, %v1972
  %v1981 = vmul.f32 %v1867, %v1973
  %v1982 = vmul.f32 %v1908, %v1974
  %v1983 = vmul.f32 %v1910, %v1975
  %v1984 = vld [vmem:[%s15] sm:$0xf]
  %v1985 = vld [vmem:[%s15 + $0x4] sm:$0xf]
  %v1986 = vld [vmem:[%s15 + $0x8] sm:$0xf]
  %v1987 = vld [vmem:[%s15 + $0xc] sm:$0xf]
  %v1988 = vld [vmem:[%s15 + $0x10] sm:$0xf]
  %v1989 = vld [vmem:[%s15 + $0x14] sm:$0xf]
  %v1990 = vld [vmem:[%s15 + $0x18] sm:$0xf]
  %v1991 = vld [vmem:[%s15 + $0x1c] sm:$0xf]
  %v1992 = vld [vmem:[%s15 + $0x20] sm:$0xf]
  %v1993 = vld [vmem:[%s15 + $0x24] sm:$0xf]
  %v1994 = vld [vmem:[%s15 + $0x28] sm:$0xf]
  %v1995 = vld [vmem:[%s15 + $0x2c] sm:$0xf]
  %v1996 = vld [vmem:[%s15 + $0x30] sm:$0xf]
  %v1997 = vld [vmem:[%s15 + $0x34] sm:$0xf]
  %v1998 = vld [vmem:[%s15 + $0x38] sm:$0xf]
  %v1999 = vld [vmem:[%s15 + $0x3c] sm:$0xf]
  %v2000 = vld [vmem:[%s15 + $0x40] sm:$0xf]
  %v2001 = vld [vmem:[%s15 + $0x44] sm:$0xf]
  %v2002 = vld [vmem:[%s15 + $0x48] sm:$0xf]
  %v2003 = vld [vmem:[%s15 + $0x4c] sm:$0xf]
  %v2004 = vld [vmem:[%s15 + $0x50] sm:$0xf]
  %v2005 = vld [vmem:[%s15 + $0x54] sm:$0xf]
  %v2006 = vld [vmem:[%s15 + $0x58] sm:$0xf]
  %v2007 = vld [vmem:[%s15 + $0x5c] sm:$0xf]
  %v2008 = vld [vmem:[%s15 + $0x60] sm:$0xf]
  %v2009 = vld [vmem:[%s15 + $0x64] sm:$0xf]
  %v2010 = vld [vmem:[%s15 + $0x68] sm:$0xf]
  %v2011 = vld [vmem:[%s15 + $0x6c] sm:$0xf]
  %v2012 = vld [vmem:[%s15 + $0x70] sm:$0xf]
  %v2013 = vld [vmem:[%s15 + $0x74] sm:$0xf]
  %v2014 = vld [vmem:[%s15 + $0x78] sm:$0xf]
  %v2015 = vld [vmem:[%s15 + $0x7c] sm:$0xf]
  %v2016 = vld [vmem:[%s15 + $0x80] sm:$0xf]
  %v2017 = vld [vmem:[%s15 + $0x84] sm:$0xf]
  %v2018 = vld [vmem:[%s15 + $0x88] sm:$0xf]
  %v2019 = vld [vmem:[%s15 + $0x8c] sm:$0xf]
  %v2020 = vld [vmem:[%s15 + $0x90] sm:$0xf]
  %v2021 = vld [vmem:[%s15 + $0x94] sm:$0xf]
  %v2022 = vld [vmem:[%s15 + $0x98] sm:$0xf]
  %v2023 = vld [vmem:[%s15 + $0x9c] sm:$0xf]
  %v2024 = vld [vmem:[%s15 + $0xa0] sm:$0xf]
  %v2025 = vld [vmem:[%s15 + $0xa4] sm:$0xf]
  %v2026 = vld [vmem:[%s15 + $0xa8] sm:$0xf]
  %v2027 = vld [vmem:[%s15 + $0xac] sm:$0xf]
  %v2028 = vld [vmem:[%s15 + $0xb0] sm:$0xf]
  %v2029 = vld [vmem:[%s15 + $0xb4] sm:$0xf]
  %v2030 = vld [vmem:[%s15 + $0xb8] sm:$0xf]
  %v2031 = vld [vmem:[%s15 + $0xbc] sm:$0xf]
  %v2032 = vld [vmem:[%s15 + $0xc0] sm:$0xf]
  %v2033 = vld [vmem:[%s15 + $0xc4] sm:$0xf]
  %v2034 = vld [vmem:[%s15 + $0xc8] sm:$0xf]
  %v2035 = vld [vmem:[%s15 + $0xcc] sm:$0xf]
  %v2036 = vld [vmem:[%s15 + $0xd0] sm:$0xf]
  %v2037 = vld [vmem:[%s15 + $0xd4] sm:$0xf]
  %v2038 = vld [vmem:[%s15 + $0xd8] sm:$0xf]
  %v2039 = vld [vmem:[%s15 + $0xdc] sm:$0xf]
  %v2040 = vld [vmem:[%s15 + $0xe0] sm:$0xf]
  %v2041 = vld [vmem:[%s15 + $0xe4] sm:$0xf]
  %v2042 = vld [vmem:[%s15 + $0xe8] sm:$0xf]
  %v2043 = vld [vmem:[%s15 + $0xec] sm:$0xf]
  %v2044 = vld [vmem:[%s15 + $0xf0] sm:$0xf]
  %v2045 = vld [vmem:[%s15 + $0xf4] sm:$0xf]
  %v2046 = vld [vmem:[%s15 + $0xf8] sm:$0xf]
  %v2047 = vld [vmem:[%s15 + $0xfc] sm:$0xf]
  %v2048 = vpack.c.bf16 %v1980, %v1976
  %v2049 = vpack.c.bf16 %v1981, %v1977
  %v2050 = vpack.c.bf16 %v1982, %v1978
  %v2051 = vpack.c.bf16 %v1983, %v1979
  %v2116 = vunpack.c.l.b16 %v1984
  %v2117 = vunpack.c.l.b16 %v1985
  %v2118 = vunpack.c.l.b16 %v1986
  %v2119 = vunpack.c.l.b16 %v1987
  %v2120 = vunpack.c.l.b16 %v1988
  %v2121 = vunpack.c.l.b16 %v1989
  %v2122 = vunpack.c.l.b16 %v1990
  %v2123 = vunpack.c.l.b16 %v1991
  %v2124 = vunpack.c.l.b16 %v1992
  %v2125 = vunpack.c.l.b16 %v1993
  %v2126 = vunpack.c.l.b16 %v1994
  %v2127 = vunpack.c.l.b16 %v1995
  %v2128 = vunpack.c.l.b16 %v1996
  %v2129 = vunpack.c.l.b16 %v1997
  %v2130 = vunpack.c.l.b16 %v1998
  %v2131 = vunpack.c.l.b16 %v1999
  %v2132 = vunpack.c.l.b16 %v2000
  %v2133 = vunpack.c.l.b16 %v2001
  %v2134 = vunpack.c.l.b16 %v2002
  %v2135 = vunpack.c.l.b16 %v2003
  %v2136 = vunpack.c.l.b16 %v2004
  %v2137 = vunpack.c.l.b16 %v2005
  %v2138 = vunpack.c.l.b16 %v2006
  %v2139 = vunpack.c.l.b16 %v2007
  %v2140 = vunpack.c.l.b16 %v2008
  %v2141 = vunpack.c.l.b16 %v2009
  %v2142 = vunpack.c.l.b16 %v2010
  %v2143 = vunpack.c.l.b16 %v2011
  %v2144 = vunpack.c.l.b16 %v2012
  %v2145 = vunpack.c.l.b16 %v2013
  %v2146 = vunpack.c.l.b16 %v2014
  %v2147 = vunpack.c.l.b16 %v2015
  %v2148 = vunpack.c.l.b16 %v2016
  %v2149 = vunpack.c.l.b16 %v2017
  %v2150 = vunpack.c.l.b16 %v2018
  %v2151 = vunpack.c.l.b16 %v2019
  %v2152 = vunpack.c.l.b16 %v2020
  %v2153 = vunpack.c.l.b16 %v2021
  %v2154 = vunpack.c.l.b16 %v2022
  %v2155 = vunpack.c.l.b16 %v2023
  %v2156 = vunpack.c.l.b16 %v2024
  %v2157 = vunpack.c.l.b16 %v2025
  %v2158 = vunpack.c.l.b16 %v2026
  %v2159 = vunpack.c.l.b16 %v2027
  %v2160 = vunpack.c.l.b16 %v2028
  %v2161 = vunpack.c.l.b16 %v2029
  %v2162 = vunpack.c.l.b16 %v2030
  %v2163 = vunpack.c.l.b16 %v2031
  %v2164 = vunpack.c.l.b16 %v2032
  %v2165 = vunpack.c.l.b16 %v2033
  %v2166 = vunpack.c.l.b16 %v2034
  %v2167 = vunpack.c.l.b16 %v2035
  %v2168 = vunpack.c.l.b16 %v2036
  %v2169 = vunpack.c.l.b16 %v2037
  %v2170 = vunpack.c.l.b16 %v2038
  %v2171 = vunpack.c.l.b16 %v2039
  %v2172 = vunpack.c.l.b16 %v2040
  %v2173 = vunpack.c.l.b16 %v2041
  %v2174 = vunpack.c.l.b16 %v2042
  %v2175 = vunpack.c.l.b16 %v2043
  %v2176 = vunpack.c.l.b16 %v2044
  %v2177 = vunpack.c.l.b16 %v2045
  %v2178 = vunpack.c.l.b16 %v2046
  %v2179 = vunpack.c.l.b16 %v2047
  %v2180 = vpack.c.b16 %v2117, %v2116
  %v2181 = vpack.c.b16 %v2119, %v2118
  %v2182 = vpack.c.b16 %v2121, %v2120
  %v2183 = vpack.c.b16 %v2123, %v2122
  %v2184 = vpack.c.b16 %v2125, %v2124
  %v2185 = vpack.c.b16 %v2127, %v2126
  %v2186 = vpack.c.b16 %v2129, %v2128
  %v2187 = vpack.c.b16 %v2131, %v2130
  %v2188 = vpack.c.b16 %v2133, %v2132
  %v2189 = vpack.c.b16 %v2135, %v2134
  %v2190 = vpack.c.b16 %v2137, %v2136
  %v2191 = vpack.c.b16 %v2139, %v2138
  %v2192 = vpack.c.b16 %v2141, %v2140
  %v2193 = vpack.c.b16 %v2143, %v2142
  %v2194 = vpack.c.b16 %v2145, %v2144
  %v2195 = vpack.c.b16 %v2147, %v2146
  %v2196 = vpack.c.b16 %v2149, %v2148
  %v2197 = vpack.c.b16 %v2151, %v2150
  %v2198 = vpack.c.b16 %v2153, %v2152
  %v2199 = vpack.c.b16 %v2155, %v2154
  %v2200 = vpack.c.b16 %v2157, %v2156
  %v2201 = vpack.c.b16 %v2159, %v2158
  %v2202 = vpack.c.b16 %v2161, %v2160
  %v2203 = vpack.c.b16 %v2163, %v2162
  %v2204 = vpack.c.b16 %v2165, %v2164
  %v2205 = vpack.c.b16 %v2167, %v2166
  %v2206 = vpack.c.b16 %v2169, %v2168
  %v2207 = vpack.c.b16 %v2171, %v2170
  %v2208 = vpack.c.b16 %v2173, %v2172
  %v2209 = vpack.c.b16 %v2175, %v2174
  %v2210 = vpack.c.b16 %v2177, %v2176
  %v2211 = vpack.c.b16 %v2179, %v2178
  %2244 = vmatprep.subr.bf16.mxu0 0
  %2245 = vmatpush1.bf16.msra.mxu0 %v2180
  %2246 = vmatprep.subr.bf16.mxu0 0
  %2247 = vmatpush1.bf16.msra.mxu0 %v2181
  %2248 = vmatprep.subr.bf16.mxu0 0
  %2249 = vmatpush1.bf16.msra.mxu0 %v2182
  %2250 = vmatprep.subr.bf16.mxu0 0
  %2251 = vmatpush1.bf16.msra.mxu0 %v2183
  %2252 = vmatprep.subr.bf16.mxu0 0
  %2253 = vmatpush1.bf16.msra.mxu0 %v2184
  %2254 = vmatprep.subr.bf16.mxu0 0
  %2255 = vmatpush1.bf16.msra.mxu0 %v2185
  %2256 = vmatprep.subr.bf16.mxu0 0
  %2257 = vmatpush1.bf16.msra.mxu0 %v2186
  %2258 = vmatprep.subr.bf16.mxu0 0
  %2259 = vmatpush1.bf16.msra.mxu0 %v2187
  %2260 = vmatprep.subr.bf16.mxu0 0
  %2261 = vmatpush1.bf16.msra.mxu0 %v2188
  %2262 = vmatprep.subr.bf16.mxu0 0
  %2263 = vmatpush1.bf16.msra.mxu0 %v2189
  %2264 = vmatprep.subr.bf16.mxu0 0
  %2265 = vmatpush1.bf16.msra.mxu0 %v2190
  %2266 = vmatprep.subr.bf16.mxu0 0
  %2267 = vmatpush1.bf16.msra.mxu0 %v2191
  %2268 = vmatprep.subr.bf16.mxu0 0
  %2269 = vmatpush1.bf16.msra.mxu0 %v2192
  %2270 = vmatprep.subr.bf16.mxu0 0
  %2271 = vmatpush1.bf16.msra.mxu0 %v2193
  %2272 = vmatprep.subr.bf16.mxu0 0
  %2273 = vmatpush1.bf16.msra.mxu0 %v2194
  %2274 = vmatprep.subr.bf16.mxu0 0
  %2275 = vmatpush1.bf16.msra.mxu0 %v2195
  %2276 = vmatprep.mubr.bf16.mxu0 %v2049
  %2277 = vmatmul.mubr.bf16.gmra.mrb[0].mxu0 %v2048
  %v2278 = vpop.f32.mrb[0].mxu0
  %v2279 = vadd.f32 0.0, %v2278
  %v2280 = vpop.f32.mrb[0].mxu0
  %v2281 = vpop.f32.mrb[0].mxu0
  %v2282 = vadd.f32 0.0, %v2281
  %v2283 = vpop.f32.mrb[0].mxu0
  %2284 = vdwg.mxu0
  %2285 = vmatprep.subr.bf16.mxu0 0
  %2286 = vmatpush1.bf16.msra.mxu0 %v2196
  %2287 = vmatprep.subr.bf16.mxu0 0
  %2288 = vmatpush1.bf16.msra.mxu0 %v2197
  %2289 = vmatprep.subr.bf16.mxu0 0
  %2290 = vmatpush1.bf16.msra.mxu0 %v2198
  %2291 = vmatprep.subr.bf16.mxu0 0
  %2292 = vmatpush1.bf16.msra.mxu0 %v2199
  %2293 = vmatprep.subr.bf16.mxu0 0
  %2294 = vmatpush1.bf16.msra.mxu0 %v2200
  %2295 = vmatprep.subr.bf16.mxu0 0
  %2296 = vmatpush1.bf16.msra.mxu0 %v2201
  %2297 = vmatprep.subr.bf16.mxu0 0
  %2298 = vmatpush1.bf16.msra.mxu0 %v2202
  %2299 = vmatprep.subr.bf16.mxu0 0
  %2300 = vmatpush1.bf16.msra.mxu0 %v2203
  %2301 = vmatprep.subr.bf16.mxu0 0
  %2302 = vmatpush1.bf16.msra.mxu0 %v2204
  %2303 = vmatprep.subr.bf16.mxu0 0
  %2304 = vmatpush1.bf16.msra.mxu0 %v2205
  %2305 = vmatprep.subr.bf16.mxu0 0
  %2306 = vmatpush1.bf16.msra.mxu0 %v2206
  %2307 = vmatprep.subr.bf16.mxu0 0
  %2308 = vmatpush1.bf16.msra.mxu0 %v2207
  %2309 = vmatprep.subr.bf16.mxu0 0
  %2310 = vmatpush1.bf16.msra.mxu0 %v2208
  %2311 = vmatprep.subr.bf16.mxu0 0
  %2312 = vmatpush1.bf16.msra.mxu0 %v2209
  %2313 = vmatprep.subr.bf16.mxu0 0
  %2314 = vmatpush1.bf16.msra.mxu0 %v2210
  %2315 = vmatprep.subr.bf16.mxu0 0
  %2316 = vmatpush1.bf16.msra.mxu0 %v2211
  %2317 = vmatprep.mubr.bf16.mxu0 %v2051
  %2318 = vmatmul.mubr.bf16.gmra.mrb[0].mxu0 %v2050
  %v2319 = vpop.f32.mrb[0].mxu0
  %v2320 = vadd.f32 %v2279, %v2319
  %v2321 = vpop.f32.mrb[0].mxu0
  %v2322 = vpop.f32.mrb[0].mxu0
  %v2323 = vadd.f32 %v2282, %v2322
  %v2324 = vpop.f32.mrb[0].mxu0
  %2325 = vdwg.mxu0
  %v2326 = vadd.f32 %v1569, %v2320
  %v2327 = vadd.f32 %v1570, %v2323
  %v2328 = vld [vmem:[%s16] sm:$0x1]
  %v2330 = vlaneseq
  %v2331 = vshrl.u32 %v2330, 7
  %v2332 = vsub.s32 0, %v2331
  %v2333 = vrot.slane %v2328, %v2332
  %v2335 = vadd.f32 %v2326, %v2333
  %v2336 = vadd.f32 %v2327, %v2333
  %s2337 = scalar_lea.vmem %s5, 1
  %v2338 = vld [vmem:[%s2337] sm:$0x1]
  %s2339 = scalar_lea.vmem %s6, 1
  %v2340 = vld [vmem:[%s2339] sm:$0x1]
  %2341 = vadd.xlane.f32.xlu0 %v2335
  %v2342 = vpop.xlane.xlu0 %2341
  %2343 = vadd.xlane.f32.xlu0 %v2336
  %v2344 = vpop.xlane.xlu0 %2343
  %v2345 = vmul.f32 %v2342, %v624
  %v2346 = vmul.f32 %v2344, %v624
  %v2347 = vsub.f32 %v2335, %v2345
  %v2348 = vsub.f32 %v2336, %v2346
  %v2349 = vmul.f32 %v2347, %v2347
  %v2350 = vmul.f32 %v2348, %v2348
  %2351 = vadd.xlane.f32.xlu0 %v2349
  %v2352 = vpop.xlane.xlu0 %2351
  %2353 = vadd.xlane.f32.xlu0 %v2350
  %v2354 = vpop.xlane.xlu0 %2353
  %v2355 = vmul.f32 %v2352, %v624
  %v2356 = vmul.f32 %v2354, %v624
  %v2357 = vadd.f32 %v2355, 1e-06
  %v2358 = vadd.f32 %v2356, 1e-06
  %v2359 = vrsqrt.pop %v2357
  %v2360 = vrsqrt.pop %v2358
  %v2361 = vmul.f32 %v2347, %v2359
  %v2362 = vmul.f32 %v2348, %v2360
  %v2364 = vlaneseq
  %v2365 = vshrl.u32 %v2364, 7
  %v2366 = vsub.s32 0, %v2365
  %v2367 = vrot.slane %v2338, %v2366
  %v2369 = vmul.f32 %v2361, %v2367
  %v2370 = vmul.f32 %v2362, %v2367
  %v2372 = vlaneseq
  %v2373 = vshrl.u32 %v2372, 7
  %v2374 = vsub.s32 0, %v2373
  %v2375 = vrot.slane %v2340, %v2374
  %v2377 = vadd.f32 %v2369, %v2375
  %v2378 = vadd.f32 %v2370, %v2375
  %s2379 = scalar_lea.vmem %s7, 192
  %v2380 = vld [vmem:[%s2379] sm:$0xff]
  %v2381 = vld [vmem:[%s2379 + $0x8] sm:$0xf]
  %v2382 = vld [vmem:[%s2379 + $0xc] sm:$0xff]
  %v2383 = vld [vmem:[%s2379 + $0x14] sm:$0xf]
  %v2384 = vld [vmem:[%s2379 + $0x18] sm:$0xff]
  %v2385 = vld [vmem:[%s2379 + $0x20] sm:$0xf]
  %v2386 = vld [vmem:[%s2379 + $0x24] sm:$0xff]
  %v2387 = vld [vmem:[%s2379 + $0x2c] sm:$0xf]
  %v2388 = vld [vmem:[%s2379 + $0x30] sm:$0xff]
  %v2389 = vld [vmem:[%s2379 + $0x38] sm:$0xf]
  %v2390 = vld [vmem:[%s2379 + $0x3c] sm:$0xff]
  %v2391 = vld [vmem:[%s2379 + $0x44] sm:$0xf]
  %v2392 = vld [vmem:[%s2379 + $0x48] sm:$0xff]
  %v2393 = vld [vmem:[%s2379 + $0x50] sm:$0xf]
  %v2394 = vld [vmem:[%s2379 + $0x54] sm:$0xff]
  %v2395 = vld [vmem:[%s2379 + $0x5c] sm:$0xf]
  %v2396 = vld [vmem:[%s2379 + $0x60] sm:$0xff]
  %v2397 = vld [vmem:[%s2379 + $0x68] sm:$0xf]
  %v2398 = vld [vmem:[%s2379 + $0x6c] sm:$0xff]
  %v2399 = vld [vmem:[%s2379 + $0x74] sm:$0xf]
  %v2400 = vld [vmem:[%s2379 + $0x78] sm:$0xff]
  %v2401 = vld [vmem:[%s2379 + $0x80] sm:$0xf]
  %v2402 = vld [vmem:[%s2379 + $0x84] sm:$0xff]
  %v2403 = vld [vmem:[%s2379 + $0x8c] sm:$0xf]
  %v2404 = vld [vmem:[%s2379 + $0x90] sm:$0xff]
  %v2405 = vld [vmem:[%s2379 + $0x98] sm:$0xf]
  %v2406 = vld [vmem:[%s2379 + $0x9c] sm:$0xff]
  %v2407 = vld [vmem:[%s2379 + $0xa4] sm:$0xf]
  %v2408 = vld [vmem:[%s2379 + $0xa8] sm:$0xff]
  %v2409 = vld [vmem:[%s2379 + $0xb0] sm:$0xf]
  %v2410 = vld [vmem:[%s2379 + $0xb4] sm:$0xff]
  %v2411 = vld [vmem:[%s2379 + $0xbc] sm:$0xf]
  %v2412 = vpack.c.bf16 %v2378, %v2377
  %s2413 = scalar_lea.vmem %s8, 3
  %v2414 = vld [vmem:[%s2413] sm:$0x7]
  %v2416 = vlaneseq
  %v2417 = vshrl.u32 %v2416, 7
  %v2418 = vsub.s32 0, %v2417
  %v2419 = vrot.slane %v2414, %v2418
  %v2420 = vlaneseq
  %v2421 = vshrl.u32 %v2420, 7
  %v2422 = vsub.s32 1, %v2421
  %v2423 = vrot.slane %v2414, %v2422
  %v2424 = vlaneseq
  %v2425 = vshrl.u32 %v2424, 7
  %v2426 = vsub.s32 2, %v2425
  %v2427 = vrot.slane %v2414, %v2426
  %v2463 = vunpack.c.l.b16 %v2380
  %v2464 = vunpack.c.h.b16 %v2380
  %v2465 = vunpack.c.l.b16 %v2381
  %v2466 = vunpack.c.l.b16 %v2382
  %v2467 = vunpack.c.h.b16 %v2382
  %v2468 = vunpack.c.l.b16 %v2383
  %v2469 = vunpack.c.l.b16 %v2384
  %v2470 = vunpack.c.h.b16 %v2384
  %v2471 = vunpack.c.l.b16 %v2385
  %v2472 = vunpack.c.l.b16 %v2386
  %v2473 = vunpack.c.h.b16 %v2386
  %v2474 = vunpack.c.l.b16 %v2387
  %v2475 = vunpack.c.l.b16 %v2388
  %v2476 = vunpack.c.h.b16 %v2388
  %v2477 = vunpack.c.l.b16 %v2389
  %v2478 = vunpack.c.l.b16 %v2390
  %v2479 = vunpack.c.h.b16 %v2390
  %v2480 = vunpack.c.l.b16 %v2391
  %v2481 = vunpack.c.l.b16 %v2392
  %v2482 = vunpack.c.h.b16 %v2392
  %v2483 = vunpack.c.l.b16 %v2393
  %v2484 = vunpack.c.l.b16 %v2394
  %v2485 = vunpack.c.h.b16 %v2394
  %v2486 = vunpack.c.l.b16 %v2395
  %v2487 = vunpack.c.l.b16 %v2396
  %v2488 = vunpack.c.h.b16 %v2396
  %v2489 = vunpack.c.l.b16 %v2397
  %v2490 = vunpack.c.l.b16 %v2398
  %v2491 = vunpack.c.h.b16 %v2398
  %v2492 = vunpack.c.l.b16 %v2399
  %v2493 = vunpack.c.l.b16 %v2400
  %v2494 = vunpack.c.h.b16 %v2400
  %v2495 = vunpack.c.l.b16 %v2401
  %v2496 = vunpack.c.l.b16 %v2402
  %v2497 = vunpack.c.h.b16 %v2402
  %v2498 = vunpack.c.l.b16 %v2403
  %v2499 = vunpack.c.l.b16 %v2404
  %v2500 = vunpack.c.h.b16 %v2404
  %v2501 = vunpack.c.l.b16 %v2405
  %v2502 = vunpack.c.l.b16 %v2406
  %v2503 = vunpack.c.h.b16 %v2406
  %v2504 = vunpack.c.l.b16 %v2407
  %v2505 = vunpack.c.l.b16 %v2408
  %v2506 = vunpack.c.h.b16 %v2408
  %v2507 = vunpack.c.l.b16 %v2409
  %v2508 = vunpack.c.l.b16 %v2410
  %v2509 = vunpack.c.h.b16 %v2410
  %v2510 = vunpack.c.l.b16 %v2411
  %v2511 = vpack.c.b16 %v2466, %v2463
  %v2512 = vpack.c.b16 %v2467, %v2464
  %v2513 = vpack.c.b16 %v2468, %v2465
  %v2514 = vpack.c.b16 %v2472, %v2469
  %v2515 = vpack.c.b16 %v2473, %v2470
  %v2516 = vpack.c.b16 %v2474, %v2471
  %v2517 = vpack.c.b16 %v2478, %v2475
  %v2518 = vpack.c.b16 %v2479, %v2476
  %v2519 = vpack.c.b16 %v2480, %v2477
  %v2520 = vpack.c.b16 %v2484, %v2481
  %v2521 = vpack.c.b16 %v2485, %v2482
  %v2522 = vpack.c.b16 %v2486, %v2483
  %v2523 = vpack.c.b16 %v2490, %v2487
  %v2524 = vpack.c.b16 %v2491, %v2488
  %v2525 = vpack.c.b16 %v2492, %v2489
  %v2526 = vpack.c.b16 %v2496, %v2493
  %v2527 = vpack.c.b16 %v2497, %v2494
  %v2528 = vpack.c.b16 %v2498, %v2495
  %v2529 = vpack.c.b16 %v2502, %v2499
  %v2530 = vpack.c.b16 %v2503, %v2500
  %v2531 = vpack.c.b16 %v2504, %v2501
  %v2532 = vpack.c.b16 %v2508, %v2505
  %v2533 = vpack.c.b16 %v2509, %v2506
  %v2534 = vpack.c.b16 %v2510, %v2507
  %2559 = vmatprep.subr.bf16.mxu0 %v2512
  %2560 = vmatpush1.bf16.msra.mxu0 %v2511
  %2561 = vmatprep.subr.bf16.mxu0 %v2515
  %2562 = vmatpush1.bf16.msra.mxu0 %v2514
  %2563 = vmatprep.subr.bf16.mxu0 %v2518
  %2564 = vmatpush1.bf16.msra.mxu0 %v2517
  %2565 = vmatprep.subr.bf16.mxu0 %v2521
  %2566 = vmatpush1.bf16.msra.mxu0 %v2520
  %2567 = vmatprep.subr.bf16.mxu0 %v2524
  %2568 = vmatpush1.bf16.msra.mxu0 %v2523
  %2569 = vmatprep.subr.bf16.mxu0 %v2527
  %2570 = vmatpush1.bf16.msra.mxu0 %v2526
  %2571 = vmatprep.subr.bf16.mxu0 %v2530
  %2572 = vmatpush1.bf16.msra.mxu0 %v2529
  %2573 = vmatprep.subr.bf16.mxu0 %v2533
  %2574 = vmatpush1.bf16.msra.mxu0 %v2532
  %2575 = vmatprep.subr.bf16.mxu0 0
  %2576 = vmatpush1.bf16.msra.mxu0 0
  %2577 = vmatprep.subr.bf16.mxu0 0
  %2578 = vmatpush1.bf16.msra.mxu0 0
  %2579 = vmatprep.subr.bf16.mxu0 0
  %2580 = vmatpush1.bf16.msra.mxu0 0
  %2581 = vmatprep.subr.bf16.mxu0 0
  %2582 = vmatpush1.bf16.msra.mxu0 0
  %2583 = vmatprep.subr.bf16.mxu0 0
  %2584 = vmatpush1.bf16.msra.mxu0 0
  %2585 = vmatprep.subr.bf16.mxu0 0
  %2586 = vmatpush1.bf16.msra.mxu0 0
  %2587 = vmatprep.subr.bf16.mxu0 0
  %2588 = vmatpush1.bf16.msra.mxu0 0
  %2589 = vmatprep.subr.bf16.mxu0 0
  %2590 = vmatpush1.bf16.msra.mxu0 0
  %2591 = vmatprep.mubr.bf16.mxu0 0
  %2592 = vmatmul.mubr.bf16.gmra.mrb[0].mxu0 %v2412
  %v2593 = vpop.f32.mrb[0].mxu0
  %v2594 = vadd.f32 %v2419, %v2593
  %v2595 = vpop.f32.mrb[0].mxu0
  %v2596 = vadd.f32 %v2423, %v2595
  %v2597 = vpop.f32.mrb[0].mxu0
  %v2598 = vadd.f32 %v2419, %v2597
  %v2599 = vpop.f32.mrb[0].mxu0
  %v2600 = vadd.f32 %v2423, %v2599
  %2601 = vdwg.mxu0
  %2602 = vmatprep.subr.bf16.mxu0 0
  %2603 = vmatpush1.bf16.msra.mxu0 %v2513
  %2604 = vmatprep.subr.bf16.mxu0 0
  %2605 = vmatpush1.bf16.msra.mxu0 %v2516
  %2606 = vmatprep.subr.bf16.mxu0 0
  %2607 = vmatpush1.bf16.msra.mxu0 %v2519
  %2608 = vmatprep.subr.bf16.mxu0 0
  %2609 = vmatpush1.bf16.msra.mxu0 %v2522
  %2610 = vmatprep.subr.bf16.mxu0 0
  %2611 = vmatpush1.bf16.msra.mxu0 %v2525
  %2612 = vmatprep.subr.bf16.mxu0 0
  %2613 = vmatpush1.bf16.msra.mxu0 %v2528
  %2614 = vmatprep.subr.bf16.mxu0 0
  %2615 = vmatpush1.bf16.msra.mxu0 %v2531
  %2616 = vmatprep.subr.bf16.mxu0 0
  %2617 = vmatpush1.bf16.msra.mxu0 %v2534
  %2618 = vmatprep.subr.bf16.mxu0 0
  %2619 = vmatpush1.bf16.msra.mxu0 0
  %2620 = vmatprep.subr.bf16.mxu0 0
  %2621 = vmatpush1.bf16.msra.mxu0 0
  %2622 = vmatprep.subr.bf16.mxu0 0
  %2623 = vmatpush1.bf16.msra.mxu0 0
  %2624 = vmatprep.subr.bf16.mxu0 0
  %2625 = vmatpush1.bf16.msra.mxu0 0
  %2626 = vmatprep.subr.bf16.mxu0 0
  %2627 = vmatpush1.bf16.msra.mxu0 0
  %2628 = vmatprep.subr.bf16.mxu0 0
  %2629 = vmatpush1.bf16.msra.mxu0 0
  %2630 = vmatprep.subr.bf16.mxu0 0
  %2631 = vmatpush1.bf16.msra.mxu0 0
  %2632 = vmatprep.subr.bf16.mxu0 0
  %2633 = vmatpush1.bf16.msra.mxu0 0
  %2634 = vmatprep.mubr.bf16.mxu0 0
  %2635 = vmatmul.mubr.bf16.gmra.mrb[0].mxu0 %v2412
  %v2636 = vpop.f32.mrb[0].mxu0
  %v2637 = vadd.f32 %v2427, %v2636
  %v2638 = vpop.f32.mrb[0].mxu0
  %v2639 = vpop.f32.mrb[0].mxu0
  %v2640 = vadd.f32 %v2427, %v2639
  %v2641 = vpop.f32.mrb[0].mxu0
  %2642 = vdwg.mxu0
  %v2643 = vpack.c.bf16 %v2598, %v2594
  %v2644 = vpack.c.bf16 %v2600, %v2596
  %v2645 = vpack.c.bf16 %v2640, %v2637
  %v2647 = vsel %vm924, %v2643, 0
  %v2650 = vsel %vm924, %v2644, 0
  %2652 = vmatprep.subr.bf16.mxu0 0
  %2653 = vmatpush1.bf16.xpose.msra.mxu0 %v2650
  %2654 = vmatprep.subr.bf16.mxu0 0
  %2655 = vmatpush1.bf16.xpose.msra.mxu0 0
  %2656 = vmatprep.subr.bf16.mxu0 0
  %2657 = vmatpush1.bf16.xpose.msra.mxu0 0
  %2658 = vmatprep.subr.bf16.mxu0 0
  %2659 = vmatpush1.bf16.xpose.msra.mxu0 0
  %2660 = vmatprep.subr.bf16.mxu0 0
  %2661 = vmatpush1.bf16.xpose.msra.mxu0 0
  %2662 = vmatprep.subr.bf16.mxu0 0
  %2663 = vmatpush1.bf16.xpose.msra.mxu0 0
  %2664 = vmatprep.subr.bf16.mxu0 0
  %2665 = vmatpush1.bf16.xpose.msra.mxu0 0
  %2666 = vmatprep.subr.bf16.mxu0 0
  %2667 = vmatpush1.bf16.xpose.msra.mxu0 0
  %2668 = vmatprep.subr.bf16.mxu0 0
  %2669 = vmatpush1.bf16.xpose.msra.mxu0 0
  %2670 = vmatprep.subr.bf16.mxu0 0
  %2671 = vmatpush1.bf16.xpose.msra.mxu0 0
  %2672 = vmatprep.subr.bf16.mxu0 0
  %2673 = vmatpush1.bf16.xpose.msra.mxu0 0
  %2674 = vmatprep.subr.bf16.mxu0 0
  %2675 = vmatpush1.bf16.xpose.msra.mxu0 0
  %2676 = vmatprep.subr.bf16.mxu0 0
  %2677 = vmatpush1.bf16.xpose.msra.mxu0 0
  %2678 = vmatprep.subr.bf16.mxu0 0
  %2679 = vmatpush1.bf16.xpose.msra.mxu0 0
  %2680 = vmatprep.subr.bf16.mxu0 0
  %2681 = vmatpush1.bf16.xpose.msra.mxu0 0
  %2682 = vmatprep.subr.bf16.mxu0 0
  %2683 = vmatpush1.bf16.xpose.msra.mxu0 0
  %2684 = vmatprep.mubr.bf16.mxu0 0
  %2685 = vmatmul.mubr.bf16.gmra.mrb[0].mxu0 %v2647
  %v2686 = vpop.f32.mrb[0].mxu0
  %v2687 = vadd.f32 0.0, %v2686
  %v2688 = vpop.f32.mrb[0].mxu0
  %v2689 = vpop.f32.mrb[0].mxu0
  %v2690 = vadd.f32 0.0, %v2689
  %v2691 = vpop.f32.mrb[0].mxu0
  %2692 = vdwg.mxu0
  %v2693 = vmul.f32 %v2687, 0.17677669
  %v2694 = vmul.f32 %v2690, 0.17677669
  %v2695 = vadd.f32 %v2693, %v71
  %v2696 = vadd.f32 %v2694, %v72
  %v2697 = vsel %vm976, %v2695, -inf
  %2698 = vmax.xlane.f32.xlu0 %v2697
  %v2699 = vpop.xlane.xlu0 %2698
  %v2700 = vsel %vm976, %v2696, -inf
  %2701 = vmax.xlane.f32.xlu0 %v2700
  %v2702 = vpop.xlane.xlu0 %2701
  %v2703 = vsub.f32 %v2695, %v2699
  %v2704 = vsub.f32 %v2696, %v2702
  %v2705 = vmul.f32 %v2703, 1.442695
  %v2706 = vpow.pop %v2705
  %v2707 = vmul.f32 %v2704, 1.442695
  %v2708 = vpow.pop %v2707
  %v2709 = vsel %vm976, %v2706, 0.0
  %2710 = vadd.xlane.f32.xlu0 %v2709
  %v2711 = vpop.xlane.xlu0 %2710
  %v2712 = vsel %vm976, %v2708, 0.0
  %2713 = vadd.xlane.f32.xlu0 %v2712
  %v2714 = vpop.xlane.xlu0 %2713
  %v2715 = vrcp.pop %v2711
  %v2716 = vrcp.pop %v2714
  %v2717 = vmul.f32 %v2706, %v2715
  %v2718 = vmul.f32 %v2708, %v2716
  %v2719 = vpack.c.bf16 %v2718, %v2717
  %v2721 = vsel %vm976, %v2719, 0
  %2723 = vmatprep.subr.bf16.mxu0 0
  %2724 = vmatpush1.bf16.msra.mxu0 %v2645
  %2725 = vmatprep.subr.bf16.mxu0 0
  %2726 = vmatpush1.bf16.msra.mxu0 0
  %2727 = vmatprep.subr.bf16.mxu0 0
  %2728 = vmatpush1.bf16.msra.mxu0 0
  %2729 = vmatprep.subr.bf16.mxu0 0
  %2730 = vmatpush1.bf16.msra.mxu0 0
  %2731 = vmatprep.subr.bf16.mxu0 0
  %2732 = vmatpush1.bf16.msra.mxu0 0
  %2733 = vmatprep.subr.bf16.mxu0 0
  %2734 = vmatpush1.bf16.msra.mxu0 0
  %2735 = vmatprep.subr.bf16.mxu0 0
  %2736 = vmatpush1.bf16.msra.mxu0 0
  %2737 = vmatprep.subr.bf16.mxu0 0
  %2738 = vmatpush1.bf16.msra.mxu0 0
  %2739 = vmatprep.subr.bf16.mxu0 0
  %2740 = vmatpush1.bf16.msra.mxu0 0
  %2741 = vmatprep.subr.bf16.mxu0 0
  %2742 = vmatpush1.bf16.msra.mxu0 0
  %2743 = vmatprep.subr.bf16.mxu0 0
  %2744 = vmatpush1.bf16.msra.mxu0 0
  %2745 = vmatprep.subr.bf16.mxu0 0
  %2746 = vmatpush1.bf16.msra.mxu0 0
  %2747 = vmatprep.subr.bf16.mxu0 0
  %2748 = vmatpush1.bf16.msra.mxu0 0
  %2749 = vmatprep.subr.bf16.mxu0 0
  %2750 = vmatpush1.bf16.msra.mxu0 0
  %2751 = vmatprep.subr.bf16.mxu0 0
  %2752 = vmatpush1.bf16.msra.mxu0 0
  %2753 = vmatprep.subr.bf16.mxu0 0
  %2754 = vmatpush1.bf16.msra.mxu0 0
  %2755 = vmatprep.mubr.bf16.mxu0 0
  %2756 = vmatmul.mubr.bf16.gmra.mrb[0].mxu0 %v2721
  %v2757 = vpop.f32.mrb[0].mxu0
  %v2758 = vadd.f32 0.0, %v2757
  %v2759 = vpop.f32.mrb[0].mxu0
  %v2760 = vpop.f32.mrb[0].mxu0
  %v2761 = vadd.f32 0.0, %v2760
  %v2762 = vpop.f32.mrb[0].mxu0
  %2763 = vdwg.mxu0
  %2765 = vrot.lane.b32.xlu0 %v2643, 96
  %v2766 = vpop.permute.xlu0 %2765
  %2768 = vrot.lane.b32.xlu0 %v2644, 96
  %v2769 = vpop.permute.xlu0 %2768
  %v2771 = vsel %vm924, %v2766, 0
  %v2774 = vsel %vm924, %v2769, 0
  %2776 = vmatprep.subr.bf16.mxu0 0
  %2777 = vmatpush1.bf16.xpose.msra.mxu0 %v2774
  %2778 = vmatprep.subr.bf16.mxu0 0
  %2779 = vmatpush1.bf16.xpose.msra.mxu0 0
  %2780 = vmatprep.subr.bf16.mxu0 0
  %2781 = vmatpush1.bf16.xpose.msra.mxu0 0
  %2782 = vmatprep.subr.bf16.mxu0 0
  %2783 = vmatpush1.bf16.xpose.msra.mxu0 0
  %2784 = vmatprep.subr.bf16.mxu0 0
  %2785 = vmatpush1.bf16.xpose.msra.mxu0 0
  %2786 = vmatprep.subr.bf16.mxu0 0
  %2787 = vmatpush1.bf16.xpose.msra.mxu0 0
  %2788 = vmatprep.subr.bf16.mxu0 0
  %2789 = vmatpush1.bf16.xpose.msra.mxu0 0
  %2790 = vmatprep.subr.bf16.mxu0 0
  %2791 = vmatpush1.bf16.xpose.msra.mxu0 0
  %2792 = vmatprep.subr.bf16.mxu0 0
  %2793 = vmatpush1.bf16.xpose.msra.mxu0 0
  %2794 = vmatprep.subr.bf16.mxu0 0
  %2795 = vmatpush1.bf16.xpose.msra.mxu0 0
  %2796 = vmatprep.subr.bf16.mxu0 0
  %2797 = vmatpush1.bf16.xpose.msra.mxu0 0
  %2798 = vmatprep.subr.bf16.mxu0 0
  %2799 = vmatpush1.bf16.xpose.msra.mxu0 0
  %2800 = vmatprep.subr.bf16.mxu0 0
  %2801 = vmatpush1.bf16.xpose.msra.mxu0 0
  %2802 = vmatprep.subr.bf16.mxu0 0
  %2803 = vmatpush1.bf16.xpose.msra.mxu0 0
  %2804 = vmatprep.subr.bf16.mxu0 0
  %2805 = vmatpush1.bf16.xpose.msra.mxu0 0
  %2806 = vmatprep.subr.bf16.mxu0 0
  %2807 = vmatpush1.bf16.xpose.msra.mxu0 0
  %2808 = vmatprep.mubr.bf16.mxu0 0
  %2809 = vmatmul.mubr.bf16.gmra.mrb[0].mxu0 %v2771
  %v2810 = vpop.f32.mrb[0].mxu0
  %v2811 = vadd.f32 0.0, %v2810
  %v2812 = vpop.f32.mrb[0].mxu0
  %v2813 = vpop.f32.mrb[0].mxu0
  %v2814 = vadd.f32 0.0, %v2813
  %v2815 = vpop.f32.mrb[0].mxu0
  %2816 = vdwg.mxu0
  %v2817 = vmul.f32 %v2811, 0.17677669
  %v2818 = vmul.f32 %v2814, 0.17677669
  %v2819 = vadd.f32 %v2817, %v71
  %v2820 = vadd.f32 %v2818, %v72
  %v2821 = vsel %vm976, %v2819, -inf
  %2822 = vmax.xlane.f32.xlu0 %v2821
  %v2823 = vpop.xlane.xlu0 %2822
  %v2824 = vsel %vm976, %v2820, -inf
  %2825 = vmax.xlane.f32.xlu0 %v2824
  %v2826 = vpop.xlane.xlu0 %2825
  %v2827 = vsub.f32 %v2819, %v2823
  %v2828 = vsub.f32 %v2820, %v2826
  %v2829 = vmul.f32 %v2827, 1.442695
  %v2830 = vpow.pop %v2829
  %v2831 = vmul.f32 %v2828, 1.442695
  %v2832 = vpow.pop %v2831
  %v2833 = vsel %vm976, %v2830, 0.0
  %2834 = vadd.xlane.f32.xlu0 %v2833
  %v2835 = vpop.xlane.xlu0 %2834
  %v2836 = vsel %vm976, %v2832, 0.0
  %2837 = vadd.xlane.f32.xlu0 %v2836
  %v2838 = vpop.xlane.xlu0 %2837
  %v2839 = vrcp.pop %v2835
  %v2840 = vrcp.pop %v2838
  %v2841 = vmul.f32 %v2830, %v2839
  %v2842 = vmul.f32 %v2832, %v2840
  %v2843 = vpack.c.bf16 %v2842, %v2841
  %2845 = vrot.lane.b32.xlu0 %v2645, 96
  %v2846 = vpop.permute.xlu0 %2845
  %v2849 = vsel %vm976, %v2843, 0
  %2851 = vmatprep.subr.bf16.mxu0 0
  %2852 = vmatpush1.bf16.msra.mxu0 %v2846
  %2853 = vmatprep.subr.bf16.mxu0 0
  %2854 = vmatpush1.bf16.msra.mxu0 0
  %2855 = vmatprep.subr.bf16.mxu0 0
  %2856 = vmatpush1.bf16.msra.mxu0 0
  %2857 = vmatprep.subr.bf16.mxu0 0
  %2858 = vmatpush1.bf16.msra.mxu0 0
  %2859 = vmatprep.subr.bf16.mxu0 0
  %2860 = vmatpush1.bf16.msra.mxu0 0
  %2861 = vmatprep.subr.bf16.mxu0 0
  %2862 = vmatpush1.bf16.msra.mxu0 0
  %2863 = vmatprep.subr.bf16.mxu0 0
  %2864 = vmatpush1.bf16.msra.mxu0 0
  %2865 = vmatprep.subr.bf16.mxu0 0
  %2866 = vmatpush1.bf16.msra.mxu0 0
  %2867 = vmatprep.subr.bf16.mxu0 0
  %2868 = vmatpush1.bf16.msra.mxu0 0
  %2869 = vmatprep.subr.bf16.mxu0 0
  %2870 = vmatpush1.bf16.msra.mxu0 0
  %2871 = vmatprep.subr.bf16.mxu0 0
  %2872 = vmatpush1.bf16.msra.mxu0 0
  %2873 = vmatprep.subr.bf16.mxu0 0
  %2874 = vmatpush1.bf16.msra.mxu0 0
  %2875 = vmatprep.subr.bf16.mxu0 0
  %2876 = vmatpush1.bf16.msra.mxu0 0
  %2877 = vmatprep.subr.bf16.mxu0 0
  %2878 = vmatpush1.bf16.msra.mxu0 0
  %2879 = vmatprep.subr.bf16.mxu0 0
  %2880 = vmatpush1.bf16.msra.mxu0 0
  %2881 = vmatprep.subr.bf16.mxu0 0
  %2882 = vmatpush1.bf16.msra.mxu0 0
  %2883 = vmatprep.mubr.bf16.mxu0 0
  %2884 = vmatmul.mubr.bf16.gmra.mrb[0].mxu0 %v2849
  %v2885 = vpop.f32.mrb[0].mxu0
  %v2886 = vadd.f32 0.0, %v2885
  %v2887 = vpop.f32.mrb[0].mxu0
  %v2888 = vpop.f32.mrb[0].mxu0
  %v2889 = vadd.f32 0.0, %v2888
  %v2890 = vpop.f32.mrb[0].mxu0
  %2891 = vdwg.mxu0
  %2892 = vrot.lane.b32.xlu0 %v2643, 64
  %v2893 = vpop.permute.xlu0 %2892
  %2894 = vrot.lane.b32.xlu0 %v2644, 64
  %v2895 = vpop.permute.xlu0 %2894
  %v2897 = vsel %vm924, %v2893, 0
  %v2900 = vsel %vm924, %v2895, 0
  %2902 = vmatprep.subr.bf16.mxu0 0
  %2903 = vmatpush1.bf16.xpose.msra.mxu0 %v2900
  %2904 = vmatprep.subr.bf16.mxu0 0
  %2905 = vmatpush1.bf16.xpose.msra.mxu0 0
  %2906 = vmatprep.subr.bf16.mxu0 0
  %2907 = vmatpush1.bf16.xpose.msra.mxu0 0
  %2908 = vmatprep.subr.bf16.mxu0 0
  %2909 = vmatpush1.bf16.xpose.msra.mxu0 0
  %2910 = vmatprep.subr.bf16.mxu0 0
  %2911 = vmatpush1.bf16.xpose.msra.mxu0 0
  %2912 = vmatprep.subr.bf16.mxu0 0
  %2913 = vmatpush1.bf16.xpose.msra.mxu0 0
  %2914 = vmatprep.subr.bf16.mxu0 0
  %2915 = vmatpush1.bf16.xpose.msra.mxu0 0
  %2916 = vmatprep.subr.bf16.mxu0 0
  %2917 = vmatpush1.bf16.xpose.msra.mxu0 0
  %2918 = vmatprep.subr.bf16.mxu0 0
  %2919 = vmatpush1.bf16.xpose.msra.mxu0 0
  %2920 = vmatprep.subr.bf16.mxu0 0
  %2921 = vmatpush1.bf16.xpose.msra.mxu0 0
  %2922 = vmatprep.subr.bf16.mxu0 0
  %2923 = vmatpush1.bf16.xpose.msra.mxu0 0
  %2924 = vmatprep.subr.bf16.mxu0 0
  %2925 = vmatpush1.bf16.xpose.msra.mxu0 0
  %2926 = vmatprep.subr.bf16.mxu0 0
  %2927 = vmatpush1.bf16.xpose.msra.mxu0 0
  %2928 = vmatprep.subr.bf16.mxu0 0
  %2929 = vmatpush1.bf16.xpose.msra.mxu0 0
  %2930 = vmatprep.subr.bf16.mxu0 0
  %2931 = vmatpush1.bf16.xpose.msra.mxu0 0
  %2932 = vmatprep.subr.bf16.mxu0 0
  %2933 = vmatpush1.bf16.xpose.msra.mxu0 0
  %2934 = vmatprep.mubr.bf16.mxu0 0
  %2935 = vmatmul.mubr.bf16.gmra.mrb[0].mxu0 %v2897
  %v2936 = vpop.f32.mrb[0].mxu0
  %v2937 = vadd.f32 0.0, %v2936
  %v2938 = vpop.f32.mrb[0].mxu0
  %v2939 = vpop.f32.mrb[0].mxu0
  %v2940 = vadd.f32 0.0, %v2939
  %v2941 = vpop.f32.mrb[0].mxu0
  %2942 = vdwg.mxu0
  %v2943 = vmul.f32 %v2937, 0.17677669
  %v2944 = vmul.f32 %v2940, 0.17677669
  %v2945 = vadd.f32 %v2943, %v71
  %v2946 = vadd.f32 %v2944, %v72
  %v2947 = vsel %vm976, %v2945, -inf
  %2948 = vmax.xlane.f32.xlu0 %v2947
  %v2949 = vpop.xlane.xlu0 %2948
  %v2950 = vsel %vm976, %v2946, -inf
  %2951 = vmax.xlane.f32.xlu0 %v2950
  %v2952 = vpop.xlane.xlu0 %2951
  %v2953 = vsub.f32 %v2945, %v2949
  %v2954 = vsub.f32 %v2946, %v2952
  %v2955 = vmul.f32 %v2953, 1.442695
  %v2956 = vpow.pop %v2955
  %v2957 = vmul.f32 %v2954, 1.442695
  %v2958 = vpow.pop %v2957
  %v2959 = vsel %vm976, %v2956, 0.0
  %2960 = vadd.xlane.f32.xlu0 %v2959
  %v2961 = vpop.xlane.xlu0 %2960
  %v2962 = vsel %vm976, %v2958, 0.0
  %2963 = vadd.xlane.f32.xlu0 %v2962
  %v2964 = vpop.xlane.xlu0 %2963
  %v2965 = vrcp.pop %v2961
  %v2966 = vrcp.pop %v2964
  %v2967 = vmul.f32 %v2956, %v2965
  %v2968 = vmul.f32 %v2958, %v2966
  %v2969 = vpack.c.bf16 %v2968, %v2967
  %2970 = vrot.lane.b32.xlu0 %v2645, 64
  %v2971 = vpop.permute.xlu0 %2970
  %v2974 = vsel %vm976, %v2969, 0
  %2976 = vmatprep.subr.bf16.mxu0 0
  %2977 = vmatpush1.bf16.msra.mxu0 %v2971
  %2978 = vmatprep.subr.bf16.mxu0 0
  %2979 = vmatpush1.bf16.msra.mxu0 0
  %2980 = vmatprep.subr.bf16.mxu0 0
  %2981 = vmatpush1.bf16.msra.mxu0 0
  %2982 = vmatprep.subr.bf16.mxu0 0
  %2983 = vmatpush1.bf16.msra.mxu0 0
  %2984 = vmatprep.subr.bf16.mxu0 0
  %2985 = vmatpush1.bf16.msra.mxu0 0
  %2986 = vmatprep.subr.bf16.mxu0 0
  %2987 = vmatpush1.bf16.msra.mxu0 0
  %2988 = vmatprep.subr.bf16.mxu0 0
  %2989 = vmatpush1.bf16.msra.mxu0 0
  %2990 = vmatprep.subr.bf16.mxu0 0
  %2991 = vmatpush1.bf16.msra.mxu0 0
  %2992 = vmatprep.subr.bf16.mxu0 0
  %2993 = vmatpush1.bf16.msra.mxu0 0
  %2994 = vmatprep.subr.bf16.mxu0 0
  %2995 = vmatpush1.bf16.msra.mxu0 0
  %2996 = vmatprep.subr.bf16.mxu0 0
  %2997 = vmatpush1.bf16.msra.mxu0 0
  %2998 = vmatprep.subr.bf16.mxu0 0
  %2999 = vmatpush1.bf16.msra.mxu0 0
  %3000 = vmatprep.subr.bf16.mxu0 0
  %3001 = vmatpush1.bf16.msra.mxu0 0
  %3002 = vmatprep.subr.bf16.mxu0 0
  %3003 = vmatpush1.bf16.msra.mxu0 0
  %3004 = vmatprep.subr.bf16.mxu0 0
  %3005 = vmatpush1.bf16.msra.mxu0 0
  %3006 = vmatprep.subr.bf16.mxu0 0
  %3007 = vmatpush1.bf16.msra.mxu0 0
  %3008 = vmatprep.mubr.bf16.mxu0 0
  %3009 = vmatmul.mubr.bf16.gmra.mrb[0].mxu0 %v2974
  %v3010 = vpop.f32.mrb[0].mxu0
  %v3011 = vadd.f32 0.0, %v3010
  %v3012 = vpop.f32.mrb[0].mxu0
  %v3013 = vpop.f32.mrb[0].mxu0
  %v3014 = vadd.f32 0.0, %v3013
  %v3015 = vpop.f32.mrb[0].mxu0
  %3016 = vdwg.mxu0
  %3017 = vrot.lane.b32.xlu0 %v2643, 32
  %v3018 = vpop.permute.xlu0 %3017
  %3019 = vrot.lane.b32.xlu0 %v2644, 32
  %v3020 = vpop.permute.xlu0 %3019
  %v3022 = vsel %vm924, %v3018, 0
  %v3025 = vsel %vm924, %v3020, 0
  %3027 = vmatprep.subr.bf16.mxu0 0
  %3028 = vmatpush1.bf16.xpose.msra.mxu0 %v3025
  %3029 = vmatprep.subr.bf16.mxu0 0
  %3030 = vmatpush1.bf16.xpose.msra.mxu0 0
  %3031 = vmatprep.subr.bf16.mxu0 0
  %3032 = vmatpush1.bf16.xpose.msra.mxu0 0
  %3033 = vmatprep.subr.bf16.mxu0 0
  %3034 = vmatpush1.bf16.xpose.msra.mxu0 0
  %3035 = vmatprep.subr.bf16.mxu0 0
  %3036 = vmatpush1.bf16.xpose.msra.mxu0 0
  %3037 = vmatprep.subr.bf16.mxu0 0
  %3038 = vmatpush1.bf16.xpose.msra.mxu0 0
  %3039 = vmatprep.subr.bf16.mxu0 0
  %3040 = vmatpush1.bf16.xpose.msra.mxu0 0
  %3041 = vmatprep.subr.bf16.mxu0 0
  %3042 = vmatpush1.bf16.xpose.msra.mxu0 0
  %3043 = vmatprep.subr.bf16.mxu0 0
  %3044 = vmatpush1.bf16.xpose.msra.mxu0 0
  %3045 = vmatprep.subr.bf16.mxu0 0
  %3046 = vmatpush1.bf16.xpose.msra.mxu0 0
  %3047 = vmatprep.subr.bf16.mxu0 0
  %3048 = vmatpush1.bf16.xpose.msra.mxu0 0
  %3049 = vmatprep.subr.bf16.mxu0 0
  %3050 = vmatpush1.bf16.xpose.msra.mxu0 0
  %3051 = vmatprep.subr.bf16.mxu0 0
  %3052 = vmatpush1.bf16.xpose.msra.mxu0 0
  %3053 = vmatprep.subr.bf16.mxu0 0
  %3054 = vmatpush1.bf16.xpose.msra.mxu0 0
  %3055 = vmatprep.subr.bf16.mxu0 0
  %3056 = vmatpush1.bf16.xpose.msra.mxu0 0
  %3057 = vmatprep.subr.bf16.mxu0 0
  %3058 = vmatpush1.bf16.xpose.msra.mxu0 0
  %3059 = vmatprep.mubr.bf16.mxu0 0
  %3060 = vmatmul.mubr.bf16.gmra.mrb[0].mxu0 %v3022
  %v3061 = vpop.f32.mrb[0].mxu0
  %v3062 = vadd.f32 0.0, %v3061
  %v3063 = vpop.f32.mrb[0].mxu0
  %v3064 = vpop.f32.mrb[0].mxu0
  %v3065 = vadd.f32 0.0, %v3064
  %v3066 = vpop.f32.mrb[0].mxu0
  %3067 = vdwg.mxu0
  %v3068 = vmul.f32 %v3062, 0.17677669
  %v3069 = vmul.f32 %v3065, 0.17677669
  %v3070 = vadd.f32 %v3068, %v71
  %v3071 = vadd.f32 %v3069, %v72
  %v3072 = vsel %vm976, %v3070, -inf
  %3073 = vmax.xlane.f32.xlu0 %v3072
  %v3074 = vpop.xlane.xlu0 %3073
  %v3075 = vsel %vm976, %v3071, -inf
  %3076 = vmax.xlane.f32.xlu0 %v3075
  %v3077 = vpop.xlane.xlu0 %3076
  %v3078 = vsub.f32 %v3070, %v3074
  %v3079 = vsub.f32 %v3071, %v3077
  %v3080 = vmul.f32 %v3078, 1.442695
  %v3081 = vpow.pop %v3080
  %v3082 = vmul.f32 %v3079, 1.442695
  %v3083 = vpow.pop %v3082
  %v3084 = vsel %vm976, %v3081, 0.0
  %3085 = vadd.xlane.f32.xlu0 %v3084
  %v3086 = vpop.xlane.xlu0 %3085
  %v3087 = vsel %vm976, %v3083, 0.0
  %3088 = vadd.xlane.f32.xlu0 %v3087
  %v3089 = vpop.xlane.xlu0 %3088
  %v3090 = vrcp.pop %v3086
  %v3091 = vrcp.pop %v3089
  %v3092 = vmul.f32 %v3081, %v3090
  %v3093 = vmul.f32 %v3083, %v3091
  %v3094 = vpack.c.bf16 %v3093, %v3092
  %3095 = vrot.lane.b32.xlu0 %v2645, 32
  %v3096 = vpop.permute.xlu0 %3095
  %v3099 = vsel %vm976, %v3094, 0
  %3101 = vmatprep.subr.bf16.mxu0 0
  %3102 = vmatpush1.bf16.msra.mxu0 %v3096
  %3103 = vmatprep.subr.bf16.mxu0 0
  %3104 = vmatpush1.bf16.msra.mxu0 0
  %3105 = vmatprep.subr.bf16.mxu0 0
  %3106 = vmatpush1.bf16.msra.mxu0 0
  %3107 = vmatprep.subr.bf16.mxu0 0
  %3108 = vmatpush1.bf16.msra.mxu0 0
  %3109 = vmatprep.subr.bf16.mxu0 0
  %3110 = vmatpush1.bf16.msra.mxu0 0
  %3111 = vmatprep.subr.bf16.mxu0 0
  %3112 = vmatpush1.bf16.msra.mxu0 0
  %3113 = vmatprep.subr.bf16.mxu0 0
  %3114 = vmatpush1.bf16.msra.mxu0 0
  %3115 = vmatprep.subr.bf16.mxu0 0
  %3116 = vmatpush1.bf16.msra.mxu0 0
  %3117 = vmatprep.subr.bf16.mxu0 0
  %3118 = vmatpush1.bf16.msra.mxu0 0
  %3119 = vmatprep.subr.bf16.mxu0 0
  %3120 = vmatpush1.bf16.msra.mxu0 0
  %3121 = vmatprep.subr.bf16.mxu0 0
  %3122 = vmatpush1.bf16.msra.mxu0 0
  %3123 = vmatprep.subr.bf16.mxu0 0
  %3124 = vmatpush1.bf16.msra.mxu0 0
  %3125 = vmatprep.subr.bf16.mxu0 0
  %3126 = vmatpush1.bf16.msra.mxu0 0
  %3127 = vmatprep.subr.bf16.mxu0 0
  %3128 = vmatpush1.bf16.msra.mxu0 0
  %3129 = vmatprep.subr.bf16.mxu0 0
  %3130 = vmatpush1.bf16.msra.mxu0 0
  %3131 = vmatprep.subr.bf16.mxu0 0
  %3132 = vmatpush1.bf16.msra.mxu0 0
  %3133 = vmatprep.mubr.bf16.mxu0 0
  %3134 = vmatmul.mubr.bf16.gmra.mrb[0].mxu0 %v3099
  %v3135 = vpop.f32.mrb[0].mxu0
  %v3136 = vadd.f32 0.0, %v3135
  %v3137 = vpop.f32.mrb[0].mxu0
  %v3138 = vpop.f32.mrb[0].mxu0
  %v3139 = vadd.f32 0.0, %v3138
  %v3140 = vpop.f32.mrb[0].mxu0
  %3141 = vdwg.mxu0
  %3144 = vrot.lane.b32.xlu0 %v2886, 32
  %v3145 = vpop.permute.xlu0 %3144
  %3146 = vrot.lane.b32.xlu0 %v2889, 32
  %v3147 = vpop.permute.xlu0 %3146
  %3152 = vrot.lane.b32.xlu0 %v3011, 64
  %v3153 = vpop.permute.xlu0 %3152
  %3154 = vrot.lane.b32.xlu0 %v3014, 64
  %v3155 = vpop.permute.xlu0 %3154
  %3160 = vrot.lane.b32.xlu0 %v3136, 96
  %v3161 = vpop.permute.xlu0 %3160
  %3162 = vrot.lane.b32.xlu0 %v3139, 96
  %v3163 = vpop.permute.xlu0 %3162
  %v3166 = vsel %vm924, %v2758, %v3145
  %v3167 = vsel %vm924, %v2761, %v3147
  %v3168 = vsel %vm1448, %v3166, %v3153
  %v3169 = vsel %vm1448, %v3167, %v3155
  %v3170 = vsel %vm1451, %v3168, %v3161
  %v3171 = vsel %vm1451, %v3169, %v3163
  %s3172 = scalar_lea.vmem %s9, 64
  %v3173 = vld [vmem:[%s3172] sm:$0xf]
  %v3174 = vld [vmem:[%s3172 + $0x4] sm:$0xf]
  %v3175 = vld [vmem:[%s3172 + $0x8] sm:$0xf]
  %v3176 = vld [vmem:[%s3172 + $0xc] sm:$0xf]
  %v3177 = vld [vmem:[%s3172 + $0x10] sm:$0xf]
  %v3178 = vld [vmem:[%s3172 + $0x14] sm:$0xf]
  %v3179 = vld [vmem:[%s3172 + $0x18] sm:$0xf]
  %v3180 = vld [vmem:[%s3172 + $0x1c] sm:$0xf]
  %v3181 = vld [vmem:[%s3172 + $0x20] sm:$0xf]
  %v3182 = vld [vmem:[%s3172 + $0x24] sm:$0xf]
  %v3183 = vld [vmem:[%s3172 + $0x28] sm:$0xf]
  %v3184 = vld [vmem:[%s3172 + $0x2c] sm:$0xf]
  %v3185 = vld [vmem:[%s3172 + $0x30] sm:$0xf]
  %v3186 = vld [vmem:[%s3172 + $0x34] sm:$0xf]
  %v3187 = vld [vmem:[%s3172 + $0x38] sm:$0xf]
  %v3188 = vld [vmem:[%s3172 + $0x3c] sm:$0xf]
  %v3189 = vpack.c.bf16 %v3171, %v3170
  %v3206 = vunpack.c.l.b16 %v3173
  %v3207 = vunpack.c.l.b16 %v3174
  %v3208 = vunpack.c.l.b16 %v3175
  %v3209 = vunpack.c.l.b16 %v3176
  %v3210 = vunpack.c.l.b16 %v3177
  %v3211 = vunpack.c.l.b16 %v3178
  %v3212 = vunpack.c.l.b16 %v3179
  %v3213 = vunpack.c.l.b16 %v3180
  %v3214 = vunpack.c.l.b16 %v3181
  %v3215 = vunpack.c.l.b16 %v3182
  %v3216 = vunpack.c.l.b16 %v3183
  %v3217 = vunpack.c.l.b16 %v3184
  %v3218 = vunpack.c.l.b16 %v3185
  %v3219 = vunpack.c.l.b16 %v3186
  %v3220 = vunpack.c.l.b16 %v3187
  %v3221 = vunpack.c.l.b16 %v3188
  %v3222 = vpack.c.b16 %v3207, %v3206
  %v3223 = vpack.c.b16 %v3209, %v3208
  %v3224 = vpack.c.b16 %v3211, %v3210
  %v3225 = vpack.c.b16 %v3213, %v3212
  %v3226 = vpack.c.b16 %v3215, %v3214
  %v3227 = vpack.c.b16 %v3217, %v3216
  %v3228 = vpack.c.b16 %v3219, %v3218
  %v3229 = vpack.c.b16 %v3221, %v3220
  %3238 = vmatprep.subr.bf16.mxu0 0
  %3239 = vmatpush1.bf16.msra.mxu0 %v3222
  %3240 = vmatprep.subr.bf16.mxu0 0
  %3241 = vmatpush1.bf16.msra.mxu0 %v3223
  %3242 = vmatprep.subr.bf16.mxu0 0
  %3243 = vmatpush1.bf16.msra.mxu0 %v3224
  %3244 = vmatprep.subr.bf16.mxu0 0
  %3245 = vmatpush1.bf16.msra.mxu0 %v3225
  %3246 = vmatprep.subr.bf16.mxu0 0
  %3247 = vmatpush1.bf16.msra.mxu0 %v3226
  %3248 = vmatprep.subr.bf16.mxu0 0
  %3249 = vmatpush1.bf16.msra.mxu0 %v3227
  %3250 = vmatprep.subr.bf16.mxu0 0
  %3251 = vmatpush1.bf16.msra.mxu0 %v3228
  %3252 = vmatprep.subr.bf16.mxu0 0
  %3253 = vmatpush1.bf16.msra.mxu0 %v3229
  %3254 = vmatprep.subr.bf16.mxu0 0
  %3255 = vmatpush1.bf16.msra.mxu0 0
  %3256 = vmatprep.subr.bf16.mxu0 0
  %3257 = vmatpush1.bf16.msra.mxu0 0
  %3258 = vmatprep.subr.bf16.mxu0 0
  %3259 = vmatpush1.bf16.msra.mxu0 0
  %3260 = vmatprep.subr.bf16.mxu0 0
  %3261 = vmatpush1.bf16.msra.mxu0 0
  %3262 = vmatprep.subr.bf16.mxu0 0
  %3263 = vmatpush1.bf16.msra.mxu0 0
  %3264 = vmatprep.subr.bf16.mxu0 0
  %3265 = vmatpush1.bf16.msra.mxu0 0
  %3266 = vmatprep.subr.bf16.mxu0 0
  %3267 = vmatpush1.bf16.msra.mxu0 0
  %3268 = vmatprep.subr.bf16.mxu0 0
  %3269 = vmatpush1.bf16.msra.mxu0 0
  %3270 = vmatprep.mubr.bf16.mxu0 0
  %3271 = vmatmul.mubr.bf16.gmra.mrb[0].mxu0 %v3189
  %v3272 = vpop.f32.mrb[0].mxu0
  %v3273 = vadd.f32 0.0, %v3272
  %v3274 = vpop.f32.mrb[0].mxu0
  %v3275 = vpop.f32.mrb[0].mxu0
  %v3276 = vadd.f32 0.0, %v3275
  %v3277 = vpop.f32.mrb[0].mxu0
  %3278 = vdwg.mxu0
  %v3279 = vadd.f32 %v2335, %v3273
  %v3280 = vadd.f32 %v2336, %v3276
  %s3281 = scalar_lea.vmem %s10, 1
  %v3282 = vld [vmem:[%s3281] sm:$0x1]
  %v3284 = vlaneseq
  %v3285 = vshrl.u32 %v3284, 7
  %v3286 = vsub.s32 0, %v3285
  %v3287 = vrot.slane %v3282, %v3286
  %v3289 = vadd.f32 %v3279, %v3287
  %v3290 = vadd.f32 %v3280, %v3287
  %s3291 = scalar_lea.vmem %s11, 1
  %v3292 = vld [vmem:[%s3291] sm:$0x1]
  %s3293 = scalar_lea.vmem %s12, 1
  %v3294 = vld [vmem:[%s3293] sm:$0x1]
  %3295 = vadd.xlane.f32.xlu0 %v3289
  %v3296 = vpop.xlane.xlu0 %3295
  %3297 = vadd.xlane.f32.xlu0 %v3290
  %v3298 = vpop.xlane.xlu0 %3297
  %v3299 = vmul.f32 %v3296, %v624
  %v3300 = vmul.f32 %v3298, %v624
  %v3301 = vsub.f32 %v3289, %v3299
  %v3302 = vsub.f32 %v3290, %v3300
  %v3303 = vmul.f32 %v3301, %v3301
  %v3304 = vmul.f32 %v3302, %v3302
  %3305 = vadd.xlane.f32.xlu0 %v3303
  %v3306 = vpop.xlane.xlu0 %3305
  %3307 = vadd.xlane.f32.xlu0 %v3304
  %v3308 = vpop.xlane.xlu0 %3307
  %v3309 = vmul.f32 %v3306, %v624
  %v3310 = vmul.f32 %v3308, %v624
  %v3311 = vadd.f32 %v3309, 1e-06
  %v3312 = vadd.f32 %v3310, 1e-06
  %v3313 = vrsqrt.pop %v3311
  %v3314 = vrsqrt.pop %v3312
  %v3315 = vmul.f32 %v3301, %v3313
  %v3316 = vmul.f32 %v3302, %v3314
  %v3318 = vlaneseq
  %v3319 = vshrl.u32 %v3318, 7
  %v3320 = vsub.s32 0, %v3319
  %v3321 = vrot.slane %v3292, %v3320
  %v3323 = vmul.f32 %v3315, %v3321
  %v3324 = vmul.f32 %v3316, %v3321
  %v3326 = vlaneseq
  %v3327 = vshrl.u32 %v3326, 7
  %v3328 = vsub.s32 0, %v3327
  %v3329 = vrot.slane %v3294, %v3328
  %v3331 = vadd.f32 %v3323, %v3329
  %v3332 = vadd.f32 %v3324, %v3329
  %s3333 = scalar_lea.vmem %s13, 256
  %v3334 = vld [vmem:[%s3333] sm:$0xff]
  %v3335 = vld [vmem:[%s3333 + $0x8] sm:$0xff]
  %v3336 = vld [vmem:[%s3333 + $0x10] sm:$0xff]
  %v3337 = vld [vmem:[%s3333 + $0x18] sm:$0xff]
  %v3338 = vld [vmem:[%s3333 + $0x20] sm:$0xff]
  %v3339 = vld [vmem:[%s3333 + $0x28] sm:$0xff]
  %v3340 = vld [vmem:[%s3333 + $0x30] sm:$0xff]
  %v3341 = vld [vmem:[%s3333 + $0x38] sm:$0xff]
  %v3342 = vld [vmem:[%s3333 + $0x40] sm:$0xff]
  %v3343 = vld [vmem:[%s3333 + $0x48] sm:$0xff]
  %v3344 = vld [vmem:[%s3333 + $0x50] sm:$0xff]
  %v3345 = vld [vmem:[%s3333 + $0x58] sm:$0xff]
  %v3346 = vld [vmem:[%s3333 + $0x60] sm:$0xff]
  %v3347 = vld [vmem:[%s3333 + $0x68] sm:$0xff]
  %v3348 = vld [vmem:[%s3333 + $0x70] sm:$0xff]
  %v3349 = vld [vmem:[%s3333 + $0x78] sm:$0xff]
  %v3350 = vld [vmem:[%s3333 + $0x80] sm:$0xff]
  %v3351 = vld [vmem:[%s3333 + $0x88] sm:$0xff]
  %v3352 = vld [vmem:[%s3333 + $0x90] sm:$0xff]
  %v3353 = vld [vmem:[%s3333 + $0x98] sm:$0xff]
  %v3354 = vld [vmem:[%s3333 + $0xa0] sm:$0xff]
  %v3355 = vld [vmem:[%s3333 + $0xa8] sm:$0xff]
  %v3356 = vld [vmem:[%s3333 + $0xb0] sm:$0xff]
  %v3357 = vld [vmem:[%s3333 + $0xb8] sm:$0xff]
  %v3358 = vld [vmem:[%s3333 + $0xc0] sm:$0xff]
  %v3359 = vld [vmem:[%s3333 + $0xc8] sm:$0xff]
  %v3360 = vld [vmem:[%s3333 + $0xd0] sm:$0xff]
  %v3361 = vld [vmem:[%s3333 + $0xd8] sm:$0xff]
  %v3362 = vld [vmem:[%s3333 + $0xe0] sm:$0xff]
  %v3363 = vld [vmem:[%s3333 + $0xe8] sm:$0xff]
  %v3364 = vld [vmem:[%s3333 + $0xf0] sm:$0xff]
  %v3365 = vld [vmem:[%s3333 + $0xf8] sm:$0xff]
  %v3366 = vpack.c.bf16 %v3332, %v3331
  %s3367 = scalar_lea.vmem %s14, 4
  %v3368 = vld [vmem:[%s3367] sm:$0xf]
  %v3370 = vlaneseq
  %v3371 = vshrl.u32 %v3370, 7
  %v3372 = vsub.s32 0, %v3371
  %v3373 = vrot.slane %v3368, %v3372
  %v3374 = vlaneseq
  %v3375 = vshrl.u32 %v3374, 7
  %v3376 = vsub.s32 1, %v3375
  %v3377 = vrot.slane %v3368, %v3376
  %v3378 = vlaneseq
  %v3379 = vshrl.u32 %v3378, 7
  %v3380 = vsub.s32 2, %v3379
  %v3381 = vrot.slane %v3368, %v3380
  %v3382 = vlaneseq
  %v3383 = vshrl.u32 %v3382, 7
  %v3384 = vsub.s32 3, %v3383
  %v3385 = vrot.slane %v3368, %v3384
  %v3422 = vunpack.c.l.b16 %v3334
  %v3423 = vunpack.c.h.b16 %v3334
  %v3424 = vunpack.c.l.b16 %v3335
  %v3425 = vunpack.c.h.b16 %v3335
  %v3426 = vunpack.c.l.b16 %v3336
  %v3427 = vunpack.c.h.b16 %v3336
  %v3428 = vunpack.c.l.b16 %v3337
  %v3429 = vunpack.c.h.b16 %v3337
  %v3430 = vunpack.c.l.b16 %v3338
  %v3431 = vunpack.c.h.b16 %v3338
  %v3432 = vunpack.c.l.b16 %v3339
  %v3433 = vunpack.c.h.b16 %v3339
  %v3434 = vunpack.c.l.b16 %v3340
  %v3435 = vunpack.c.h.b16 %v3340
  %v3436 = vunpack.c.l.b16 %v3341
  %v3437 = vunpack.c.h.b16 %v3341
  %v3438 = vunpack.c.l.b16 %v3342
  %v3439 = vunpack.c.h.b16 %v3342
  %v3440 = vunpack.c.l.b16 %v3343
  %v3441 = vunpack.c.h.b16 %v3343
  %v3442 = vunpack.c.l.b16 %v3344
  %v3443 = vunpack.c.h.b16 %v3344
  %v3444 = vunpack.c.l.b16 %v3345
  %v3445 = vunpack.c.h.b16 %v3345
  %v3446 = vunpack.c.l.b16 %v3346
  %v3447 = vunpack.c.h.b16 %v3346
  %v3448 = vunpack.c.l.b16 %v3347
  %v3449 = vunpack.c.h.b16 %v3347
  %v3450 = vunpack.c.l.b16 %v3348
  %v3451 = vunpack.c.h.b16 %v3348
  %v3452 = vunpack.c.l.b16 %v3349
  %v3453 = vunpack.c.h.b16 %v3349
  %v3454 = vunpack.c.l.b16 %v3350
  %v3455 = vunpack.c.h.b16 %v3350
  %v3456 = vunpack.c.l.b16 %v3351
  %v3457 = vunpack.c.h.b16 %v3351
  %v3458 = vunpack.c.l.b16 %v3352
  %v3459 = vunpack.c.h.b16 %v3352
  %v3460 = vunpack.c.l.b16 %v3353
  %v3461 = vunpack.c.h.b16 %v3353
  %v3462 = vunpack.c.l.b16 %v3354
  %v3463 = vunpack.c.h.b16 %v3354
  %v3464 = vunpack.c.l.b16 %v3355
  %v3465 = vunpack.c.h.b16 %v3355
  %v3466 = vunpack.c.l.b16 %v3356
  %v3467 = vunpack.c.h.b16 %v3356
  %v3468 = vunpack.c.l.b16 %v3357
  %v3469 = vunpack.c.h.b16 %v3357
  %v3470 = vunpack.c.l.b16 %v3358
  %v3471 = vunpack.c.h.b16 %v3358
  %v3472 = vunpack.c.l.b16 %v3359
  %v3473 = vunpack.c.h.b16 %v3359
  %v3474 = vunpack.c.l.b16 %v3360
  %v3475 = vunpack.c.h.b16 %v3360
  %v3476 = vunpack.c.l.b16 %v3361
  %v3477 = vunpack.c.h.b16 %v3361
  %v3478 = vunpack.c.l.b16 %v3362
  %v3479 = vunpack.c.h.b16 %v3362
  %v3480 = vunpack.c.l.b16 %v3363
  %v3481 = vunpack.c.h.b16 %v3363
  %v3482 = vunpack.c.l.b16 %v3364
  %v3483 = vunpack.c.h.b16 %v3364
  %v3484 = vunpack.c.l.b16 %v3365
  %v3485 = vunpack.c.h.b16 %v3365
  %v3486 = vpack.c.b16 %v3426, %v3422
  %v3487 = vpack.c.b16 %v3427, %v3423
  %v3488 = vpack.c.b16 %v3428, %v3424
  %v3489 = vpack.c.b16 %v3429, %v3425
  %v3490 = vpack.c.b16 %v3434, %v3430
  %v3491 = vpack.c.b16 %v3435, %v3431
  %v3492 = vpack.c.b16 %v3436, %v3432
  %v3493 = vpack.c.b16 %v3437, %v3433
  %v3494 = vpack.c.b16 %v3442, %v3438
  %v3495 = vpack.c.b16 %v3443, %v3439
  %v3496 = vpack.c.b16 %v3444, %v3440
  %v3497 = vpack.c.b16 %v3445, %v3441
  %v3498 = vpack.c.b16 %v3450, %v3446
  %v3499 = vpack.c.b16 %v3451, %v3447
  %v3500 = vpack.c.b16 %v3452, %v3448
  %v3501 = vpack.c.b16 %v3453, %v3449
  %v3502 = vpack.c.b16 %v3458, %v3454
  %v3503 = vpack.c.b16 %v3459, %v3455
  %v3504 = vpack.c.b16 %v3460, %v3456
  %v3505 = vpack.c.b16 %v3461, %v3457
  %v3506 = vpack.c.b16 %v3466, %v3462
  %v3507 = vpack.c.b16 %v3467, %v3463
  %v3508 = vpack.c.b16 %v3468, %v3464
  %v3509 = vpack.c.b16 %v3469, %v3465
  %v3510 = vpack.c.b16 %v3474, %v3470
  %v3511 = vpack.c.b16 %v3475, %v3471
  %v3512 = vpack.c.b16 %v3476, %v3472
  %v3513 = vpack.c.b16 %v3477, %v3473
  %v3514 = vpack.c.b16 %v3482, %v3478
  %v3515 = vpack.c.b16 %v3483, %v3479
  %v3516 = vpack.c.b16 %v3484, %v3480
  %v3517 = vpack.c.b16 %v3485, %v3481
  %3550 = vmatprep.subr.bf16.mxu0 %v3487
  %3551 = vmatpush1.bf16.msra.mxu0 %v3486
  %3552 = vmatprep.subr.bf16.mxu0 %v3491
  %3553 = vmatpush1.bf16.msra.mxu0 %v3490
  %3554 = vmatprep.subr.bf16.mxu0 %v3495
  %3555 = vmatpush1.bf16.msra.mxu0 %v3494
  %3556 = vmatprep.subr.bf16.mxu0 %v3499
  %3557 = vmatpush1.bf16.msra.mxu0 %v3498
  %3558 = vmatprep.subr.bf16.mxu0 %v3503
  %3559 = vmatpush1.bf16.msra.mxu0 %v3502
  %3560 = vmatprep.subr.bf16.mxu0 %v3507
  %3561 = vmatpush1.bf16.msra.mxu0 %v3506
  %3562 = vmatprep.subr.bf16.mxu0 %v3511
  %3563 = vmatpush1.bf16.msra.mxu0 %v3510
  %3564 = vmatprep.subr.bf16.mxu0 %v3515
  %3565 = vmatpush1.bf16.msra.mxu0 %v3514
  %3566 = vmatprep.subr.bf16.mxu0 0
  %3567 = vmatpush1.bf16.msra.mxu0 0
  %3568 = vmatprep.subr.bf16.mxu0 0
  %3569 = vmatpush1.bf16.msra.mxu0 0
  %3570 = vmatprep.subr.bf16.mxu0 0
  %3571 = vmatpush1.bf16.msra.mxu0 0
  %3572 = vmatprep.subr.bf16.mxu0 0
  %3573 = vmatpush1.bf16.msra.mxu0 0
  %3574 = vmatprep.subr.bf16.mxu0 0
  %3575 = vmatpush1.bf16.msra.mxu0 0
  %3576 = vmatprep.subr.bf16.mxu0 0
  %3577 = vmatpush1.bf16.msra.mxu0 0
  %3578 = vmatprep.subr.bf16.mxu0 0
  %3579 = vmatpush1.bf16.msra.mxu0 0
  %3580 = vmatprep.subr.bf16.mxu0 0
  %3581 = vmatpush1.bf16.msra.mxu0 0
  %3582 = vmatprep.mubr.bf16.mxu0 0
  %3583 = vmatmul.mubr.bf16.gmra.mrb[0].mxu0 %v3366
  %v3584 = vpop.f32.mrb[0].mxu0
  %v3585 = vadd.f32 %v3373, %v3584
  %v3586 = vpop.f32.mrb[0].mxu0
  %v3587 = vadd.f32 %v3377, %v3586
  %v3588 = vpop.f32.mrb[0].mxu0
  %v3589 = vadd.f32 %v3373, %v3588
  %v3590 = vpop.f32.mrb[0].mxu0
  %v3591 = vadd.f32 %v3377, %v3590
  %3592 = vdwg.mxu0
  %3593 = vmatprep.subr.bf16.mxu0 %v3489
  %3594 = vmatpush1.bf16.msra.mxu0 %v3488
  %3595 = vmatprep.subr.bf16.mxu0 %v3493
  %3596 = vmatpush1.bf16.msra.mxu0 %v3492
  %3597 = vmatprep.subr.bf16.mxu0 %v3497
  %3598 = vmatpush1.bf16.msra.mxu0 %v3496
  %3599 = vmatprep.subr.bf16.mxu0 %v3501
  %3600 = vmatpush1.bf16.msra.mxu0 %v3500
  %3601 = vmatprep.subr.bf16.mxu0 %v3505
  %3602 = vmatpush1.bf16.msra.mxu0 %v3504
  %3603 = vmatprep.subr.bf16.mxu0 %v3509
  %3604 = vmatpush1.bf16.msra.mxu0 %v3508
  %3605 = vmatprep.subr.bf16.mxu0 %v3513
  %3606 = vmatpush1.bf16.msra.mxu0 %v3512
  %3607 = vmatprep.subr.bf16.mxu0 %v3517
  %3608 = vmatpush1.bf16.msra.mxu0 %v3516
  %3609 = vmatprep.subr.bf16.mxu0 0
  %3610 = vmatpush1.bf16.msra.mxu0 0
  %3611 = vmatprep.subr.bf16.mxu0 0
  %3612 = vmatpush1.bf16.msra.mxu0 0
  %3613 = vmatprep.subr.bf16.mxu0 0
  %3614 = vmatpush1.bf16.msra.mxu0 0
  %3615 = vmatprep.subr.bf16.mxu0 0
  %3616 = vmatpush1.bf16.msra.mxu0 0
  %3617 = vmatprep.subr.bf16.mxu0 0
  %3618 = vmatpush1.bf16.msra.mxu0 0
  %3619 = vmatprep.subr.bf16.mxu0 0
  %3620 = vmatpush1.bf16.msra.mxu0 0
  %3621 = vmatprep.subr.bf16.mxu0 0
  %3622 = vmatpush1.bf16.msra.mxu0 0
  %3623 = vmatprep.subr.bf16.mxu0 0
  %3624 = vmatpush1.bf16.msra.mxu0 0
  %3625 = vmatprep.mubr.bf16.mxu0 0
  %3626 = vmatmul.mubr.bf16.gmra.mrb[0].mxu0 %v3366
  %v3627 = vpop.f32.mrb[0].mxu0
  %v3628 = vadd.f32 %v3381, %v3627
  %v3629 = vpop.f32.mrb[0].mxu0
  %v3630 = vadd.f32 %v3385, %v3629
  %v3631 = vpop.f32.mrb[0].mxu0
  %v3632 = vadd.f32 %v3381, %v3631
  %v3633 = vpop.f32.mrb[0].mxu0
  %v3634 = vadd.f32 %v3385, %v3633
  %3635 = vdwg.mxu0
  %v3636 = vmul.f32 %v3585, %v3585
  %v3637 = vmul.f32 %v3587, %v3587
  %v3638 = vmul.f32 %v3628, %v3628
  %v3639 = vmul.f32 %v3630, %v3630
  %v3640 = vmul.f32 %v3589, %v3589
  %v3641 = vmul.f32 %v3591, %v3591
  %v3642 = vmul.f32 %v3632, %v3632
  %v3643 = vmul.f32 %v3634, %v3634
  %v3644 = vmul.f32 %v3585, %v3636
  %v3645 = vmul.f32 %v3587, %v3637
  %v3646 = vmul.f32 %v3628, %v3638
  %v3647 = vmul.f32 %v3630, %v3639
  %v3648 = vmul.f32 %v3589, %v3640
  %v3649 = vmul.f32 %v3591, %v3641
  %v3650 = vmul.f32 %v3632, %v3642
  %v3651 = vmul.f32 %v3634, %v3643
  %v3652 = vmul.f32 %v3644, 0.044715
  %v3653 = vmul.f32 %v3645, 0.044715
  %v3654 = vmul.f32 %v3646, 0.044715
  %v3655 = vmul.f32 %v3647, 0.044715
  %v3656 = vmul.f32 %v3648, 0.044715
  %v3657 = vmul.f32 %v3649, 0.044715
  %v3658 = vmul.f32 %v3650, 0.044715
  %v3659 = vmul.f32 %v3651, 0.044715
  %v3660 = vadd.f32 %v3585, %v3652
  %v3661 = vadd.f32 %v3587, %v3653
  %v3662 = vadd.f32 %v3628, %v3654
  %v3663 = vadd.f32 %v3630, %v3655
  %v3664 = vadd.f32 %v3589, %v3656
  %v3665 = vadd.f32 %v3591, %v3657
  %v3666 = vadd.f32 %v3632, %v3658
  %v3667 = vadd.f32 %v3634, %v3659
  %v3668 = vmul.f32 %v3660, 0.7978846
  %v3669 = vmul.f32 %v3661, 0.7978846
  %v3670 = vmul.f32 %v3662, 0.7978846
  %v3671 = vmul.f32 %v3663, 0.7978846
  %v3672 = vmul.f32 %v3664, 0.7978846
  %v3673 = vmul.f32 %v3665, 0.7978846
  %v3674 = vmul.f32 %v3666, 0.7978846
  %v3675 = vmul.f32 %v3667, 0.7978846
  %v3676 = vtanh.pop %v3668
  %v3677 = vtanh.pop %v3669
  %v3678 = vtanh.pop %v3670
  %v3679 = vtanh.pop %v3671
  %v3680 = vtanh.pop %v3672
  %v3681 = vtanh.pop %v3673
  %v3682 = vtanh.pop %v3674
  %v3683 = vtanh.pop %v3675
  %v3684 = vadd.f32 %v3676, 1.0
  %v3685 = vadd.f32 %v3677, 1.0
  %v3686 = vadd.f32 %v3678, 1.0
  %v3687 = vadd.f32 %v3679, 1.0
  %v3688 = vadd.f32 %v3680, 1.0
  %v3689 = vadd.f32 %v3681, 1.0
  %v3690 = vadd.f32 %v3682, 1.0
  %v3691 = vadd.f32 %v3683, 1.0
  %v3692 = vmul.f32 %v3684, 0.5
  %v3693 = vmul.f32 %v3685, 0.5
  %v3694 = vmul.f32 %v3686, 0.5
  %v3695 = vmul.f32 %v3687, 0.5
  %v3696 = vmul.f32 %v3688, 0.5
  %v3697 = vmul.f32 %v3689, 0.5
  %v3698 = vmul.f32 %v3690, 0.5
  %v3699 = vmul.f32 %v3691, 0.5
  %v3700 = vmul.f32 %v3585, %v3692
  %v3701 = vmul.f32 %v3587, %v3693
  %v3702 = vmul.f32 %v3628, %v3694
  %v3703 = vmul.f32 %v3630, %v3695
  %v3704 = vmul.f32 %v3589, %v3696
  %v3705 = vmul.f32 %v3591, %v3697
  %v3706 = vmul.f32 %v3632, %v3698
  %v3707 = vmul.f32 %v3634, %v3699
  %s3708 = scalar_lea.vmem %s15, 256
  %v3709 = vld [vmem:[%s3708] sm:$0xf]
  %v3710 = vld [vmem:[%s3708 + $0x4] sm:$0xf]
  %v3711 = vld [vmem:[%s3708 + $0x8] sm:$0xf]
  %v3712 = vld [vmem:[%s3708 + $0xc] sm:$0xf]
  %v3713 = vld [vmem:[%s3708 + $0x10] sm:$0xf]
  %v3714 = vld [vmem:[%s3708 + $0x14] sm:$0xf]
  %v3715 = vld [vmem:[%s3708 + $0x18] sm:$0xf]
  %v3716 = vld [vmem:[%s3708 + $0x1c] sm:$0xf]
  %v3717 = vld [vmem:[%s3708 + $0x20] sm:$0xf]
  %v3718 = vld [vmem:[%s3708 + $0x24] sm:$0xf]
  %v3719 = vld [vmem:[%s3708 + $0x28] sm:$0xf]
  %v3720 = vld [vmem:[%s3708 + $0x2c] sm:$0xf]
  %v3721 = vld [vmem:[%s3708 + $0x30] sm:$0xf]
  %v3722 = vld [vmem:[%s3708 + $0x34] sm:$0xf]
  %v3723 = vld [vmem:[%s3708 + $0x38] sm:$0xf]
  %v3724 = vld [vmem:[%s3708 + $0x3c] sm:$0xf]
  %v3725 = vld [vmem:[%s3708 + $0x40] sm:$0xf]
  %v3726 = vld [vmem:[%s3708 + $0x44] sm:$0xf]
  %v3727 = vld [vmem:[%s3708 + $0x48] sm:$0xf]
  %v3728 = vld [vmem:[%s3708 + $0x4c] sm:$0xf]
  %v3729 = vld [vmem:[%s3708 + $0x50] sm:$0xf]
  %v3730 = vld [vmem:[%s3708 + $0x54] sm:$0xf]
  %v3731 = vld [vmem:[%s3708 + $0x58] sm:$0xf]
  %v3732 = vld [vmem:[%s3708 + $0x5c] sm:$0xf]
  %v3733 = vld [vmem:[%s3708 + $0x60] sm:$0xf]
  %v3734 = vld [vmem:[%s3708 + $0x64] sm:$0xf]
  %v3735 = vld [vmem:[%s3708 + $0x68] sm:$0xf]
  %v3736 = vld [vmem:[%s3708 + $0x6c] sm:$0xf]
  %v3737 = vld [vmem:[%s3708 + $0x70] sm:$0xf]
  %v3738 = vld [vmem:[%s3708 + $0x74] sm:$0xf]
  %v3739 = vld [vmem:[%s3708 + $0x78] sm:$0xf]
  %v3740 = vld [vmem:[%s3708 + $0x7c] sm:$0xf]
  %v3741 = vld [vmem:[%s3708 + $0x80] sm:$0xf]
  %v3742 = vld [vmem:[%s3708 + $0x84] sm:$0xf]
  %v3743 = vld [vmem:[%s3708 + $0x88] sm:$0xf]
  %v3744 = vld [vmem:[%s3708 + $0x8c] sm:$0xf]
  %v3745 = vld [vmem:[%s3708 + $0x90] sm:$0xf]
  %v3746 = vld [vmem:[%s3708 + $0x94] sm:$0xf]
  %v3747 = vld [vmem:[%s3708 + $0x98] sm:$0xf]
  %v3748 = vld [vmem:[%s3708 + $0x9c] sm:$0xf]
  %v3749 = vld [vmem:[%s3708 + $0xa0] sm:$0xf]
  %v3750 = vld [vmem:[%s3708 + $0xa4] sm:$0xf]
  %v3751 = vld [vmem:[%s3708 + $0xa8] sm:$0xf]
  %v3752 = vld [vmem:[%s3708 + $0xac] sm:$0xf]
  %v3753 = vld [vmem:[%s3708 + $0xb0] sm:$0xf]
  %v3754 = vld [vmem:[%s3708 + $0xb4] sm:$0xf]
  %v3755 = vld [vmem:[%s3708 + $0xb8] sm:$0xf]
  %v3756 = vld [vmem:[%s3708 + $0xbc] sm:$0xf]
  %v3757 = vld [vmem:[%s3708 + $0xc0] sm:$0xf]
  %v3758 = vld [vmem:[%s3708 + $0xc4] sm:$0xf]
  %v3759 = vld [vmem:[%s3708 + $0xc8] sm:$0xf]
  %v3760 = vld [vmem:[%s3708 + $0xcc] sm:$0xf]
  %v3761 = vld [vmem:[%s3708 + $0xd0] sm:$0xf]
  %v3762 = vld [vmem:[%s3708 + $0xd4] sm:$0xf]
  %v3763 = vld [vmem:[%s3708 + $0xd8] sm:$0xf]
  %v3764 = vld [vmem:[%s3708 + $0xdc] sm:$0xf]
  %v3765 = vld [vmem:[%s3708 + $0xe0] sm:$0xf]
  %v3766 = vld [vmem:[%s3708 + $0xe4] sm:$0xf]
  %v3767 = vld [vmem:[%s3708 + $0xe8] sm:$0xf]
  %v3768 = vld [vmem:[%s3708 + $0xec] sm:$0xf]
  %v3769 = vld [vmem:[%s3708 + $0xf0] sm:$0xf]
  %v3770 = vld [vmem:[%s3708 + $0xf4] sm:$0xf]
  %v3771 = vld [vmem:[%s3708 + $0xf8] sm:$0xf]
  %v3772 = vld [vmem:[%s3708 + $0xfc] sm:$0xf]
  %v3773 = vpack.c.bf16 %v3704, %v3700
  %v3774 = vpack.c.bf16 %v3705, %v3701
  %v3775 = vpack.c.bf16 %v3706, %v3702
  %v3776 = vpack.c.bf16 %v3707, %v3703
  %v3841 = vunpack.c.l.b16 %v3709
  %v3842 = vunpack.c.l.b16 %v3710
  %v3843 = vunpack.c.l.b16 %v3711
  %v3844 = vunpack.c.l.b16 %v3712
  %v3845 = vunpack.c.l.b16 %v3713
  %v3846 = vunpack.c.l.b16 %v3714
  %v3847 = vunpack.c.l.b16 %v3715
  %v3848 = vunpack.c.l.b16 %v3716
  %v3849 = vunpack.c.l.b16 %v3717
  %v3850 = vunpack.c.l.b16 %v3718
  %v3851 = vunpack.c.l.b16 %v3719
  %v3852 = vunpack.c.l.b16 %v3720
  %v3853 = vunpack.c.l.b16 %v3721
  %v3854 = vunpack.c.l.b16 %v3722
  %v3855 = vunpack.c.l.b16 %v3723
  %v3856 = vunpack.c.l.b16 %v3724
  %v3857 = vunpack.c.l.b16 %v3725
  %v3858 = vunpack.c.l.b16 %v3726
  %v3859 = vunpack.c.l.b16 %v3727
  %v3860 = vunpack.c.l.b16 %v3728
  %v3861 = vunpack.c.l.b16 %v3729
  %v3862 = vunpack.c.l.b16 %v3730
  %v3863 = vunpack.c.l.b16 %v3731
  %v3864 = vunpack.c.l.b16 %v3732
  %v3865 = vunpack.c.l.b16 %v3733
  %v3866 = vunpack.c.l.b16 %v3734
  %v3867 = vunpack.c.l.b16 %v3735
  %v3868 = vunpack.c.l.b16 %v3736
  %v3869 = vunpack.c.l.b16 %v3737
  %v3870 = vunpack.c.l.b16 %v3738
  %v3871 = vunpack.c.l.b16 %v3739
  %v3872 = vunpack.c.l.b16 %v3740
  %v3873 = vunpack.c.l.b16 %v3741
  %v3874 = vunpack.c.l.b16 %v3742
  %v3875 = vunpack.c.l.b16 %v3743
  %v3876 = vunpack.c.l.b16 %v3744
  %v3877 = vunpack.c.l.b16 %v3745
  %v3878 = vunpack.c.l.b16 %v3746
  %v3879 = vunpack.c.l.b16 %v3747
  %v3880 = vunpack.c.l.b16 %v3748
  %v3881 = vunpack.c.l.b16 %v3749
  %v3882 = vunpack.c.l.b16 %v3750
  %v3883 = vunpack.c.l.b16 %v3751
  %v3884 = vunpack.c.l.b16 %v3752
  %v3885 = vunpack.c.l.b16 %v3753
  %v3886 = vunpack.c.l.b16 %v3754
  %v3887 = vunpack.c.l.b16 %v3755
  %v3888 = vunpack.c.l.b16 %v3756
  %v3889 = vunpack.c.l.b16 %v3757
  %v3890 = vunpack.c.l.b16 %v3758
  %v3891 = vunpack.c.l.b16 %v3759
  %v3892 = vunpack.c.l.b16 %v3760
  %v3893 = vunpack.c.l.b16 %v3761
  %v3894 = vunpack.c.l.b16 %v3762
  %v3895 = vunpack.c.l.b16 %v3763
  %v3896 = vunpack.c.l.b16 %v3764
  %v3897 = vunpack.c.l.b16 %v3765
  %v3898 = vunpack.c.l.b16 %v3766
  %v3899 = vunpack.c.l.b16 %v3767
  %v3900 = vunpack.c.l.b16 %v3768
  %v3901 = vunpack.c.l.b16 %v3769
  %v3902 = vunpack.c.l.b16 %v3770
  %v3903 = vunpack.c.l.b16 %v3771
  %v3904 = vunpack.c.l.b16 %v3772
  %v3905 = vpack.c.b16 %v3842, %v3841
  %v3906 = vpack.c.b16 %v3844, %v3843
  %v3907 = vpack.c.b16 %v3846, %v3845
  %v3908 = vpack.c.b16 %v3848, %v3847
  %v3909 = vpack.c.b16 %v3850, %v3849
  %v3910 = vpack.c.b16 %v3852, %v3851
  %v3911 = vpack.c.b16 %v3854, %v3853
  %v3912 = vpack.c.b16 %v3856, %v3855
  %v3913 = vpack.c.b16 %v3858, %v3857
  %v3914 = vpack.c.b16 %v3860, %v3859
  %v3915 = vpack.c.b16 %v3862, %v3861
  %v3916 = vpack.c.b16 %v3864, %v3863
  %v3917 = vpack.c.b16 %v3866, %v3865
  %v3918 = vpack.c.b16 %v3868, %v3867
  %v3919 = vpack.c.b16 %v3870, %v3869
  %v3920 = vpack.c.b16 %v3872, %v3871
  %v3921 = vpack.c.b16 %v3874, %v3873
  %v3922 = vpack.c.b16 %v3876, %v3875
  %v3923 = vpack.c.b16 %v3878, %v3877
  %v3924 = vpack.c.b16 %v3880, %v3879
  %v3925 = vpack.c.b16 %v3882, %v3881
  %v3926 = vpack.c.b16 %v3884, %v3883
  %v3927 = vpack.c.b16 %v3886, %v3885
  %v3928 = vpack.c.b16 %v3888, %v3887
  %v3929 = vpack.c.b16 %v3890, %v3889
  %v3930 = vpack.c.b16 %v3892, %v3891
  %v3931 = vpack.c.b16 %v3894, %v3893
  %v3932 = vpack.c.b16 %v3896, %v3895
  %v3933 = vpack.c.b16 %v3898, %v3897
  %v3934 = vpack.c.b16 %v3900, %v3899
  %v3935 = vpack.c.b16 %v3902, %v3901
  %v3936 = vpack.c.b16 %v3904, %v3903
  %3969 = vmatprep.subr.bf16.mxu0 0
  %3970 = vmatpush1.bf16.msra.mxu0 %v3905
  %3971 = vmatprep.subr.bf16.mxu0 0
  %3972 = vmatpush1.bf16.msra.mxu0 %v3906
  %3973 = vmatprep.subr.bf16.mxu0 0
  %3974 = vmatpush1.bf16.msra.mxu0 %v3907
  %3975 = vmatprep.subr.bf16.mxu0 0
  %3976 = vmatpush1.bf16.msra.mxu0 %v3908
  %3977 = vmatprep.subr.bf16.mxu0 0
  %3978 = vmatpush1.bf16.msra.mxu0 %v3909
  %3979 = vmatprep.subr.bf16.mxu0 0
  %3980 = vmatpush1.bf16.msra.mxu0 %v3910
  %3981 = vmatprep.subr.bf16.mxu0 0
  %3982 = vmatpush1.bf16.msra.mxu0 %v3911
  %3983 = vmatprep.subr.bf16.mxu0 0
  %3984 = vmatpush1.bf16.msra.mxu0 %v3912
  %3985 = vmatprep.subr.bf16.mxu0 0
  %3986 = vmatpush1.bf16.msra.mxu0 %v3913
  %3987 = vmatprep.subr.bf16.mxu0 0
  %3988 = vmatpush1.bf16.msra.mxu0 %v3914
  %3989 = vmatprep.subr.bf16.mxu0 0
  %3990 = vmatpush1.bf16.msra.mxu0 %v3915
  %3991 = vmatprep.subr.bf16.mxu0 0
  %3992 = vmatpush1.bf16.msra.mxu0 %v3916
  %3993 = vmatprep.subr.bf16.mxu0 0
  %3994 = vmatpush1.bf16.msra.mxu0 %v3917
  %3995 = vmatprep.subr.bf16.mxu0 0
  %3996 = vmatpush1.bf16.msra.mxu0 %v3918
  %3997 = vmatprep.subr.bf16.mxu0 0
  %3998 = vmatpush1.bf16.msra.mxu0 %v3919
  %3999 = vmatprep.subr.bf16.mxu0 0
  %4000 = vmatpush1.bf16.msra.mxu0 %v3920
  %4001 = vmatprep.mubr.bf16.mxu0 %v3774
  %4002 = vmatmul.mubr.bf16.gmra.mrb[0].mxu0 %v3773
  %v4003 = vpop.f32.mrb[0].mxu0
  %v4004 = vadd.f32 0.0, %v4003
  %v4005 = vpop.f32.mrb[0].mxu0
  %v4006 = vpop.f32.mrb[0].mxu0
  %v4007 = vadd.f32 0.0, %v4006
  %v4008 = vpop.f32.mrb[0].mxu0
  %4009 = vdwg.mxu0
  %4010 = vmatprep.subr.bf16.mxu0 0
  %4011 = vmatpush1.bf16.msra.mxu0 %v3921
  %4012 = vmatprep.subr.bf16.mxu0 0
  %4013 = vmatpush1.bf16.msra.mxu0 %v3922
  %4014 = vmatprep.subr.bf16.mxu0 0
  %4015 = vmatpush1.bf16.msra.mxu0 %v3923
  %4016 = vmatprep.subr.bf16.mxu0 0
  %4017 = vmatpush1.bf16.msra.mxu0 %v3924
  %4018 = vmatprep.subr.bf16.mxu0 0
  %4019 = vmatpush1.bf16.msra.mxu0 %v3925
  %4020 = vmatprep.subr.bf16.mxu0 0
  %4021 = vmatpush1.bf16.msra.mxu0 %v3926
  %4022 = vmatprep.subr.bf16.mxu0 0
  %4023 = vmatpush1.bf16.msra.mxu0 %v3927
  %4024 = vmatprep.subr.bf16.mxu0 0
  %4025 = vmatpush1.bf16.msra.mxu0 %v3928
  %4026 = vmatprep.subr.bf16.mxu0 0
  %4027 = vmatpush1.bf16.msra.mxu0 %v3929
  %4028 = vmatprep.subr.bf16.mxu0 0
  %4029 = vmatpush1.bf16.msra.mxu0 %v3930
  %4030 = vmatprep.subr.bf16.mxu0 0
  %4031 = vmatpush1.bf16.msra.mxu0 %v3931
  %4032 = vmatprep.subr.bf16.mxu0 0
  %4033 = vmatpush1.bf16.msra.mxu0 %v3932
  %4034 = vmatprep.subr.bf16.mxu0 0
  %4035 = vmatpush1.bf16.msra.mxu0 %v3933
  %4036 = vmatprep.subr.bf16.mxu0 0
  %4037 = vmatpush1.bf16.msra.mxu0 %v3934
  %4038 = vmatprep.subr.bf16.mxu0 0
  %4039 = vmatpush1.bf16.msra.mxu0 %v3935
  %4040 = vmatprep.subr.bf16.mxu0 0
  %4041 = vmatpush1.bf16.msra.mxu0 %v3936
  %4042 = vmatprep.mubr.bf16.mxu0 %v3776
  %4043 = vmatmul.mubr.bf16.gmra.mrb[0].mxu0 %v3775
  %v4044 = vpop.f32.mrb[0].mxu0
  %v4045 = vadd.f32 %v4004, %v4044
  %v4046 = vpop.f32.mrb[0].mxu0
  %v4047 = vpop.f32.mrb[0].mxu0
  %v4048 = vadd.f32 %v4007, %v4047
  %v4049 = vpop.f32.mrb[0].mxu0
  %4050 = vdwg.mxu0
  %v4051 = vadd.f32 %v3289, %v4045
  %v4052 = vadd.f32 %v3290, %v4048
  %s4053 = scalar_lea.vmem %s16, 1
  %v4054 = vld [vmem:[%s4053] sm:$0x1]
  %v4056 = vlaneseq
  %v4057 = vshrl.u32 %v4056, 7
  %v4058 = vsub.s32 0, %v4057
  %v4059 = vrot.slane %v4054, %v4058
  %v4061 = vadd.f32 %v4051, %v4059
  %v4062 = vadd.f32 %v4052, %v4059
  %v4063 = vld [vmem:[%s17] sm:$0x1]
  %v4064 = vld [vmem:[%s18] sm:$0x1]
  %4065 = vadd.xlane.f32.xlu0 %v4061
  %v4066 = vpop.xlane.xlu0 %4065
  %4067 = vadd.xlane.f32.xlu0 %v4062
  %v4068 = vpop.xlane.xlu0 %4067
  %v4069 = vmul.f32 %v4066, %v624
  %v4070 = vmul.f32 %v4068, %v624
  %v4071 = vsub.f32 %v4061, %v4069
  %v4072 = vsub.f32 %v4062, %v4070
  %v4073 = vmul.f32 %v4071, %v4071
  %v4074 = vmul.f32 %v4072, %v4072
  %4075 = vadd.xlane.f32.xlu0 %v4073
  %v4076 = vpop.xlane.xlu0 %4075
  %4077 = vadd.xlane.f32.xlu0 %v4074
  %v4078 = vpop.xlane.xlu0 %4077
  %v4079 = vmul.f32 %v4076, %v624
  %v4080 = vmul.f32 %v4078, %v624
  %v4081 = vadd.f32 %v4079, 1e-06
  %v4082 = vadd.f32 %v4080, 1e-06
  %v4083 = vrsqrt.pop %v4081
  %v4084 = vrsqrt.pop %v4082
  %v4085 = vmul.f32 %v4071, %v4083
  %v4086 = vmul.f32 %v4072, %v4084
  %v4088 = vlaneseq
  %v4089 = vshrl.u32 %v4088, 7
  %v4090 = vsub.s32 0, %v4089
  %v4091 = vrot.slane %v4063, %v4090
  %v4093 = vmul.f32 %v4085, %v4091
  %v4094 = vmul.f32 %v4086, %v4091
  %v4096 = vlaneseq
  %v4097 = vshrl.u32 %v4096, 7
  %v4098 = vsub.s32 0, %v4097
  %v4099 = vrot.slane %v4064, %v4098
  %v4101 = vadd.f32 %v4093, %v4099
  %v4102 = vadd.f32 %v4094, %v4099
  %v4103 = vld [vmem:[%s19] sm:$0xf]
  %v4104 = vld [vmem:[%s19 + $0x4] sm:$0xf]
  %v4105 = vld [vmem:[%s19 + $0x8] sm:$0xf]
  %v4106 = vld [vmem:[%s19 + $0xc] sm:$0xf]
  %v4107 = vld [vmem:[%s19 + $0x10] sm:$0xf]
  %v4108 = vld [vmem:[%s19 + $0x14] sm:$0xf]
  %v4109 = vld [vmem:[%s19 + $0x18] sm:$0xf]
  %v4110 = vld [vmem:[%s19 + $0x1c] sm:$0xf]
  %v4111 = vld [vmem:[%s19 + $0x20] sm:$0xf]
  %v4112 = vld [vmem:[%s19 + $0x24] sm:$0xf]
  %v4113 = vld [vmem:[%s19 + $0x28] sm:$0xf]
  %v4114 = vld [vmem:[%s19 + $0x2c] sm:$0xf]
  %v4115 = vld [vmem:[%s19 + $0x30] sm:$0xf]
  %v4116 = vld [vmem:[%s19 + $0x34] sm:$0xf]
  %v4117 = vld [vmem:[%s19 + $0x38] sm:$0xf]
  %v4118 = vld [vmem:[%s19 + $0x3c] sm:$0xf]
  %v4119 = vpack.c.bf16 %v4102, %v4101
  %v4120 = vld [vmem:[%s20] sm:$0x1]
  %v4122 = vlaneseq
  %v4123 = vshrl.u32 %v4122, 7
  %v4124 = vsub.s32 0, %v4123
  %v4125 = vrot.slane %v4120, %v4124
  %v4143 = vunpack.c.l.b16 %v4103
  %v4144 = vunpack.c.l.b16 %v4104
  %v4145 = vunpack.c.l.b16 %v4105
  %v4146 = vunpack.c.l.b16 %v4106
  %v4147 = vunpack.c.l.b16 %v4107
  %v4148 = vunpack.c.l.b16 %v4108
  %v4149 = vunpack.c.l.b16 %v4109
  %v4150 = vunpack.c.l.b16 %v4110
  %v4151 = vunpack.c.l.b16 %v4111
  %v4152 = vunpack.c.l.b16 %v4112
  %v4153 = vunpack.c.l.b16 %v4113
  %v4154 = vunpack.c.l.b16 %v4114
  %v4155 = vunpack.c.l.b16 %v4115
  %v4156 = vunpack.c.l.b16 %v4116
  %v4157 = vunpack.c.l.b16 %v4117
  %v4158 = vunpack.c.l.b16 %v4118
  %v4159 = vpack.c.b16 %v4144, %v4143
  %v4160 = vpack.c.b16 %v4146, %v4145
  %v4161 = vpack.c.b16 %v4148, %v4147
  %v4162 = vpack.c.b16 %v4150, %v4149
  %v4163 = vpack.c.b16 %v4152, %v4151
  %v4164 = vpack.c.b16 %v4154, %v4153
  %v4165 = vpack.c.b16 %v4156, %v4155
  %v4166 = vpack.c.b16 %v4158, %v4157
  %4175 = vmatprep.subr.bf16.mxu0 0
  %4176 = vmatpush1.bf16.msra.mxu0 %v4159
  %4177 = vmatprep.subr.bf16.mxu0 0
  %4178 = vmatpush1.bf16.msra.mxu0 %v4160
  %4179 = vmatprep.subr.bf16.mxu0 0
  %4180 = vmatpush1.bf16.msra.mxu0 %v4161
  %4181 = vmatprep.subr.bf16.mxu0 0
  %4182 = vmatpush1.bf16.msra.mxu0 %v4162
  %4183 = vmatprep.subr.bf16.mxu0 0
  %4184 = vmatpush1.bf16.msra.mxu0 %v4163
  %4185 = vmatprep.subr.bf16.mxu0 0
  %4186 = vmatpush1.bf16.msra.mxu0 %v4164
  %4187 = vmatprep.subr.bf16.mxu0 0
  %4188 = vmatpush1.bf16.msra.mxu0 %v4165
  %4189 = vmatprep.subr.bf16.mxu0 0
  %4190 = vmatpush1.bf16.msra.mxu0 %v4166
  %4191 = vmatprep.subr.bf16.mxu0 0
  %4192 = vmatpush1.bf16.msra.mxu0 0
  %4193 = vmatprep.subr.bf16.mxu0 0
  %4194 = vmatpush1.bf16.msra.mxu0 0
  %4195 = vmatprep.subr.bf16.mxu0 0
  %4196 = vmatpush1.bf16.msra.mxu0 0
  %4197 = vmatprep.subr.bf16.mxu0 0
  %4198 = vmatpush1.bf16.msra.mxu0 0
  %4199 = vmatprep.subr.bf16.mxu0 0
  %4200 = vmatpush1.bf16.msra.mxu0 0
  %4201 = vmatprep.subr.bf16.mxu0 0
  %4202 = vmatpush1.bf16.msra.mxu0 0
  %4203 = vmatprep.subr.bf16.mxu0 0
  %4204 = vmatpush1.bf16.msra.mxu0 0
  %4205 = vmatprep.subr.bf16.mxu0 0
  %4206 = vmatpush1.bf16.msra.mxu0 0
  %4207 = vmatprep.mubr.bf16.mxu0 0
  %4208 = vmatmul.mubr.bf16.gmra.mrb[0].mxu0 %v4119
  %v4209 = vpop.f32.mrb[0].mxu0
  %v4210 = vadd.f32 %v4125, %v4209
  %v4211 = vpop.f32.mrb[0].mxu0
  %v4212 = vpop.f32.mrb[0].mxu0
  %v4213 = vadd.f32 %v4125, %v4212
  %v4214 = vpop.f32.mrb[0].mxu0
  %4215 = vdwg.mxu0
  %4216 = vst [vmem:[%s22] sm:$0xff] %v4210
  %4217 = vst [vmem:[%s22 + $0x8] sm:$0xff] %v4213
  %v4218 = vld [vmem:[%s3] sm:$0x1]
  %v4220 = vlaneseq
  %v4221 = vshrl.u32 %v4220, 7
  %v4222 = vsub.s32 0, %v4221
  %v4223 = vrot.slane %v4218, %v4222
  %v4225 = vadd.f32 %v4210, %v4223
  %v4226 = vadd.f32 %v4213, %v4223
  %4227 = vmax.xlane.f32.xlu0 %v4225
  %v4228 = vpop.xlane.xlu0 %4227
  %4229 = vmax.xlane.f32.xlu0 %v4226
  %v4230 = vpop.xlane.xlu0 %4229
  %v4231 = vsub.f32 %v4225, %v4228
  %v4232 = vsub.f32 %v4226, %v4230
  %v4233 = vmul.f32 %v4231, 1.442695
  %v4234 = vpow.pop %v4233
  %v4235 = vmul.f32 %v4232, 1.442695
  %v4236 = vpow.pop %v4235
  %4237 = vadd.xlane.f32.xlu0 %v4234
  %v4238 = vpop.xlane.xlu0 %4237
  %4239 = vadd.xlane.f32.xlu0 %v4236
  %v4240 = vpop.xlane.xlu0 %4239
  %v4241 = vrcp.pop %v4238
  %v4242 = vmul.f32 %v4234, %v4241
  %v4243 = vrcp.pop %v4240
  %v4244 = vmul.f32 %v4236, %v4243
  %4245 = vst [vmem:[%s21] sm:$0xff] %v4242
  %4246 = vst [vmem:[%s21 + $0x8] sm:$0xff] %v4244
  // Predicated region
  $region86: #{vit_forward.1} parent=0 // pred_check
    _
  $region87: #{vit_forward.1} parent=0 // pred_check_branch
    %4248 = sbr.rel (0) target = $region89
  $region88: #{vit_forward.1} parent=0 // pred_region
    _
  $region89: #{vit_forward.1} parent=0 // pred_fallthru
    _
  // Predicated region
  $region90: #{vit_forward.1} parent=0 // pred_check
    _
  $region91: #{vit_forward.1} parent=0 // pred_check_branch
    %4250 = sbr.rel (0) target = $region93
  $region92: #{vit_forward.1} parent=0 // pred_region
    _
  $region93: #{vit_forward.1} parent=0 // pred_fallthru
    _
  // Predicated region
  $region94: #{vit_forward.1} parent=0 // pred_check
    _
  $region95: #{vit_forward.1} parent=0 // pred_check_branch
    %4252 = sbr.rel (0) target = $region97
  $region96: #{vit_forward.1} parent=0 // pred_region
    _
  $region97: #{vit_forward.1} parent=0 // pred_fallthru
    _
  // Predicated region
  $region98: #{vit_forward.1} parent=0 // pred_check
    _
  $region99: #{vit_forward.1} parent=0 // pred_check_branch
    %4254 = sbr.rel (0) target = $region101
  $region100: #{vit_forward.1} parent=0 // pred_region
    _
  $region101: #{vit_forward.1} parent=0 // pred_fallthru
    _

</llo_original>
